<compile_context>
chip_gen: v7x
topology: tpu7x:2x2x1
jax: 0.10.0
libtpu: 0.0.40
codegen_flags: <defaults>
</compile_context>

<pallas_src>
import functools
import jax
import jax.numpy as jnp
import numpy as np
from jax import lax
from jax.experimental import pallas as pl
from jax.experimental.pallas import tpu as pltpu


def lstm_kernel(x_ref, w_ih0_ref, w_hh0_ref, b0_ref,
                w_ih1_ref, w_hh1_ref, b1_ref,
                gamma_ref, beta_ref,
                w_fc1_ref, b_fc1_ref, w_fc2_ref, b_fc2_ref,
                out_ref, *, hidden_size, seq_len, eps=1e-5):
    H = hidden_size
    T = seq_len
    Bb = x_ref.shape[1]
    D = x_ref.shape[2]

    def sigmoid(v):
        # Single EUP tanh per gate (avoids exp + reciprocal lowering).
        return 0.5 * (jnp.tanh(0.5 * v) + 1.0)

    def gate_step(pre_act, h, c, w_hh_ref):
        # pre_act already contains x_t @ W_ih + (b_ih + b_hh), in f32.
        gates = pre_act + jnp.dot(h.astype(jnp.bfloat16), w_hh_ref[...],
                                  preferred_element_type=jnp.float32)
        # PyTorch gate order [i, f, g, o]; H=128 -> each slice a full vreg row.
        i = sigmoid(gates[:, 0 * H:1 * H])
        f = sigmoid(gates[:, 1 * H:2 * H])
        g = jnp.tanh(gates[:, 2 * H:3 * H])
        o = sigmoid(gates[:, 3 * H:4 * H])
        c_new = f * c + i * g
        h_new = o * jnp.tanh(c_new)
        return h_new, c_new

    def in_proj1(h):
        # Layer-1 input-side projection for one timestep (bf16 MXU, f32 acc).
        return (jnp.dot(h.astype(jnp.bfloat16), w_ih1_ref[...],
                        preferred_element_type=jnp.float32) + b1_ref[...])

    # ---- layer 0 input projection: ONE batched bf16 matmul over all
    #      timesteps; time-major so xp0[t] is a cheap leading-axis slice.
    x2 = x_ref[...].reshape(T * Bb, D).astype(jnp.bfloat16)
    xp0 = (jnp.dot(x2, w_ih0_ref[...], preferred_element_type=jnp.float32)
           + b0_ref[...]).reshape(T, Bb, 4 * H)

    # ---- skewed two-layer recurrence (statically unrolled, T=8):
    #      super-step t runs layer-0 step t and layer-1 step t-1.
    h0 = jnp.zeros((Bb, H), jnp.float32)
    c0 = jnp.zeros((Bb, H), jnp.float32)
    h1 = jnp.zeros((Bb, H), jnp.float32)
    c1 = jnp.zeros((Bb, H), jnp.float32)

    h0, c0 = gate_step(xp0[0], h0, c0, w_hh0_ref)          # layer-0 step 0
    xp1 = in_proj1(h0)                                     # layer-1 step-0 input
    for t in range(1, T):                                  # static unroll
        h0_new, c0_new = gate_step(xp0[t], h0, c0, w_hh0_ref)   # chain A
        h1, c1 = gate_step(xp1, h1, c1, w_hh1_ref)              # chain B (indep.)
        xp1 = in_proj1(h0_new)
        h0, c0 = h0_new, c0_new
    h1, c1 = gate_step(xp1, h1, c1, w_hh1_ref)             # drain layer 1
    # TODO(synk): inter-layer LSTM dropout (p=0.3) and nn.Dropout are identity
    # in eval-mode forward; no masks applied.

    # ---- out[:, -1, :] -> LayerNorm over features (biased var, eps=1e-5).
    mu = jnp.mean(h1, axis=-1, keepdims=True)
    var = jnp.mean((h1 - mu) ** 2, axis=-1, keepdims=True)
    normed = (h1 - mu) * lax.rsqrt(var + eps) * gamma_ref[...] + beta_ref[...]

    # ---- fc head: Linear -> ReLU -> Linear (f32, lane-padded output).
    hidden = jnp.maximum(
        jnp.dot(normed, w_fc1_ref[...], preferred_element_type=jnp.float32)
        + b_fc1_ref[...], 0.0)
    out_ref[...] = (jnp.dot(hidden, w_fc2_ref[...],
                            preferred_element_type=jnp.float32)
                    + b_fc2_ref[...])


def _batch_blocking(B):
    """Generation-aware batch blocking: 1 block on single-TC chips (v5e/v6e),
    2 blocks on v7x (2 TensorCores/chip)."""
    nblocks = 1
    try:
        kind = jax.devices()[0].device_kind.lower()
        if "7" in kind:          # v7x: one batch block per TensorCore
            nblocks = 2
    except Exception:
        pass
    if B < 16:                   # each block needs >= 8 sublane rows
        nblocks = 1
    gran = 8 * nblocks
    Bp = ((B + gran - 1) // gran) * gran
    return Bp, Bp // nblocks, nblocks


def lstm_forward(x, p):
    """x: (B, T, D) float32. Returns (B, output_size) float32."""
    x = x.astype(jnp.float32)
    B, T, D = x.shape
    H = p["w_hh0"].shape[0]
    O = p["w_fc2"].shape[1]
    O_pad = ((O + 127) // 128) * 128

    Bp, block_b, nblocks = _batch_blocking(B)

    # Lane-dense fc2 head: pad output dim to a 128-lane multiple; slice after.
    w_fc2p = jnp.zeros((H, O_pad), jnp.float32).at[:, :O].set(p["w_fc2"])
    b_fc2p = jnp.zeros((1, O_pad), jnp.float32).at[:, :O].set(p["b_fc2"])

    if Bp != B:
        x = jnp.pad(x, ((0, Bp - B), (0, 0), (0, 0)))
    # Time-major (T, B, D): per-step slices are leading-axis indexes in-kernel.
    x_tm = jnp.transpose(x, (1, 0, 2))

    # bf16 MXU operands for all LSTM matmul weights (f32 accumulation).
    bf16 = lambda w: w.astype(jnp.bfloat16)
    weights = [bf16(p["w_ih0"]), bf16(p["w_hh0"]), p["b0"],
               bf16(p["w_ih1"]), bf16(p["w_hh1"]), p["b1"],
               p["gamma"], p["beta"],
               p["w_fc1"], p["b_fc1"], w_fc2p, b_fc2p]
    weight_specs = [pl.BlockSpec(w.shape, lambda b: (0, 0)) for w in weights]

    kernel = functools.partial(lstm_kernel, hidden_size=H, seq_len=T)
    out = pl.pallas_call(
        kernel,
        out_shape=jax.ShapeDtypeStruct((Bp, O_pad), jnp.float32),
        grid_spec=pltpu.PrefetchScalarGridSpec(
            num_scalar_prefetch=0,
            grid=(nblocks,),
            in_specs=[pl.BlockSpec((T, block_b, D), lambda b: (0, b, 0))]
                     + weight_specs,
            out_specs=pl.BlockSpec((block_b, O_pad), lambda b: (b, 0))),
        compiler_params=pltpu.CompilerParams(
            dimension_semantics=("parallel",)),
    )(x_tm, *weights)
    return out[:B, :O]


def lstm_reference(x, p):
    """Pure-JAX reference mirroring PyTorch eval-mode forward (f32 HIGHEST)."""
    B, T, D = x.shape
    H = p["w_hh0"].shape[0]
    dot = functools.partial(jnp.dot, precision=lax.Precision.HIGHEST)

    def cell(x_t, h, c, w_ih, w_hh, b):
        g = dot(x_t, w_ih) + dot(h, w_hh) + b
        i, f, gg, o = (jax.nn.sigmoid(g[:, :H]), jax.nn.sigmoid(g[:, H:2 * H]),
                       jnp.tanh(g[:, 2 * H:3 * H]), jax.nn.sigmoid(g[:, 3 * H:]))
        c = f * c + i * gg
        return o * jnp.tanh(c), c

    h0 = c0 = h1 = c1 = jnp.zeros((B, H), jnp.float32)
    for t in range(T):
        h0, c0 = cell(x[:, t, :], h0, c0, p["w_ih0"], p["w_hh0"], p["b0"])
        h1, c1 = cell(h0, h1, c1, p["w_ih1"], p["w_hh1"], p["b1"])
    mu = jnp.mean(h1, -1, keepdims=True)
    var = jnp.mean((h1 - mu) ** 2, -1, keepdims=True)
    y = (h1 - mu) / jnp.sqrt(var + 1e-5) * p["gamma"] + p["beta"]
    y = jnp.maximum(dot(y, p["w_fc1"]) + p["b_fc1"], 0.0)
    return dot(y, p["w_fc2"]) + p["b_fc2"]


def init_params(key, input_size, hidden_size, output_size):
    H, D, O = hidden_size, input_size, output_size
    k = 1.0 / np.sqrt(H)
    keys = jax.random.split(key, 10)
    u = lambda kk, shape, s: jax.random.uniform(kk, shape, jnp.float32, -s, s)
    return {
        # layer 0 (pre-transposed to (in, 4H)); b0 = b_ih + b_hh fused.
        "w_ih0": u(keys[0], (D, 4 * H), k), "w_hh0": u(keys[1], (H, 4 * H), k),
        "b0": u(keys[2], (1, 4 * H), k),
        # layer 1
        "w_ih1": u(keys[3], (H, 4 * H), k), "w_hh1": u(keys[4], (H, 4 * H), k),
        "b1": u(keys[5], (1, 4 * H), k),
        # LayerNorm
        "gamma": jnp.ones((1, H), jnp.float32),
        "beta": jnp.zeros((1, H), jnp.float32),
        # fc head
        "w_fc1": u(keys[6], (H, H), k), "b_fc1": u(keys[7], (1, H), k),
        "w_fc2": u(keys[8], (H, O), k), "b_fc2": u(keys[9], (1, O), k),
    }


if __name__ == "__main__":
    B, T, D, H, O = 16, 8, 16, 128, 12   # hidden=128, output=12 = module defaults
    key = jax.random.PRNGKey(0)
    kx, kp = jax.random.split(key)
    x = jax.random.normal(kx, (B, T, D), jnp.float32)
    params = init_params(kp, input_size=D, hidden_size=H, output_size=O)

    out = jax.block_until_ready(lstm_forward(x, params))
    ref = jax.block_until_ready(lstm_reference(x, params))
    # bf16 MXU operands in the kernel vs f32 HIGHEST reference -> ~1e-2 tol.
    np.testing.assert_allclose(np.asarray(out), np.asarray(ref),
                               rtol=2e-2, atol=2e-2)
    assert out.shape == (B, O)
    print("KERNEL_OK")
</pallas_src>

<mosaic_0001>
module attributes {stable_mosaic.version = 11 : i64} {
  func.func @lstm_kernel(%arg0: i32, %arg1: memref<8x16x16xf32, #tpu.memory_space<vmem>>, %arg2: memref<16x512xbf16, #tpu.memory_space<vmem>>, %arg3: memref<128x512xbf16, #tpu.memory_space<vmem>>, %arg4: memref<1x512xf32, #tpu.memory_space<vmem>>, %arg5: memref<128x512xbf16, #tpu.memory_space<vmem>>, %arg6: memref<128x512xbf16, #tpu.memory_space<vmem>>, %arg7: memref<1x512xf32, #tpu.memory_space<vmem>>, %arg8: memref<1x128xf32, #tpu.memory_space<vmem>>, %arg9: memref<1x128xf32, #tpu.memory_space<vmem>>, %arg10: memref<128x128xf32, #tpu.memory_space<vmem>>, %arg11: memref<1x128xf32, #tpu.memory_space<vmem>>, %arg12: memref<128x128xf32, #tpu.memory_space<vmem>>, %arg13: memref<1x128xf32, #tpu.memory_space<vmem>>, %arg14: memref<16x128xf32, #tpu.memory_space<vmem>>) attributes {dimension_semantics = [#tpu.dimension_semantics<parallel>], iteration_bounds = array<i64: 1>, scalar_prefetch = 0 : i64, scratch_operands = 0 : i64, tpu.core_type = #tpu.core_type<tc>, window_params = [{transform_indices = @transform_0, window_bounds = array<i64: 8, 16, 16>}, {pipeline_mode = #tpu.pipeline_mode<synchronous>, transform_indices = @transform_1, window_bounds = array<i64: 16, 512>}, {pipeline_mode = #tpu.pipeline_mode<synchronous>, transform_indices = @transform_2, window_bounds = array<i64: 128, 512>}, {pipeline_mode = #tpu.pipeline_mode<synchronous>, transform_indices = @transform_3, window_bounds = array<i64: 1, 512>}, {pipeline_mode = #tpu.pipeline_mode<synchronous>, transform_indices = @transform_4, window_bounds = array<i64: 128, 512>}, {pipeline_mode = #tpu.pipeline_mode<synchronous>, transform_indices = @transform_5, window_bounds = array<i64: 128, 512>}, {pipeline_mode = #tpu.pipeline_mode<synchronous>, transform_indices = @transform_6, window_bounds = array<i64: 1, 512>}, {pipeline_mode = #tpu.pipeline_mode<synchronous>, transform_indices = @transform_7, window_bounds = array<i64: 1, 128>}, {pipeline_mode = #tpu.pipeline_mode<synchronous>, transform_indices = @transform_8, window_bounds = array<i64: 1, 128>}, {pipeline_mode = #tpu.pipeline_mode<synchronous>, transform_indices = @transform_9, window_bounds = array<i64: 128, 128>}, {pipeline_mode = #tpu.pipeline_mode<synchronous>, transform_indices = @transform_10, window_bounds = array<i64: 1, 128>}, {pipeline_mode = #tpu.pipeline_mode<synchronous>, transform_indices = @transform_11, window_bounds = array<i64: 128, 128>}, {pipeline_mode = #tpu.pipeline_mode<synchronous>, transform_indices = @transform_12, window_bounds = array<i64: 1, 128>}, {transform_indices = @transform_13, window_bounds = array<i64: 16, 128>}]} {
    %c0 = arith.constant 0 : index
    %c0_0 = arith.constant 0 : index
    %c0_1 = arith.constant 0 : index
    %0 = vector.load %arg1[%c0, %c0_0, %c0_1] : memref<8x16x16xf32, #tpu.memory_space<vmem>>, vector<8x16x16xf32>
    %1 = vector.shape_cast %0 : vector<8x16x16xf32> to vector<128x16xf32>
    %2 = arith.truncf %1 : vector<128x16xf32> to vector<128x16xbf16>
    %c0_2 = arith.constant 0 : index
    %c0_3 = arith.constant 0 : index
    %3 = vector.load %arg2[%c0_2, %c0_3] : memref<16x512xbf16, #tpu.memory_space<vmem>>, vector<16x512xbf16>
    %cst = arith.constant dense<0.000000e+00> : vector<128x512xf32>
    %4 = tpu.matmul %2, %3, %cst {dimension_numbers = #tpu.dot_dimension_numbers<[1], [0], [0], [1], [0, 0, 1, 1], [], []>} : vector<128x16xbf16>, vector<16x512xbf16>, vector<128x512xf32> -> vector<128x512xf32>
    %c0_4 = arith.constant 0 : index
    %c0_5 = arith.constant 0 : index
    %5 = vector.load %arg4[%c0_4, %c0_5] : memref<1x512xf32, #tpu.memory_space<vmem>>, vector<1x512xf32>
    %6 = vector.broadcast %5 : vector<1x512xf32> to vector<128x512xf32>
    %7 = arith.addf %4, %6 : vector<128x512xf32>
    %8 = vector.shape_cast %7 : vector<128x512xf32> to vector<8x16x512xf32>
    %cst_6 = arith.constant 0.000000e+00 : f32
    %9 = vector.broadcast %cst_6 : f32 to vector<16x128xf32>
    %cst_7 = arith.constant 0.000000e+00 : f32
    %10 = vector.broadcast %cst_7 : f32 to vector<16x128xf32>
    %cst_8 = arith.constant 0.000000e+00 : f32
    %11 = vector.broadcast %cst_8 : f32 to vector<16x128xf32>
    %cst_9 = arith.constant 0.000000e+00 : f32
    %12 = vector.broadcast %cst_9 : f32 to vector<16x128xf32>
    %13 = vector.extract_strided_slice %8 {offsets = [0, 0, 0], sizes = [1, 16, 512], strides = [1, 1, 1]} : vector<8x16x512xf32> to vector<1x16x512xf32>
    %14 = vector.shape_cast %13 : vector<1x16x512xf32> to vector<16x512xf32>
    %15 = arith.truncf %9 : vector<16x128xf32> to vector<16x128xbf16>
    %c0_10 = arith.constant 0 : index
    %c0_11 = arith.constant 0 : index
    %16 = vector.load %arg3[%c0_10, %c0_11] : memref<128x512xbf16, #tpu.memory_space<vmem>>, vector<128x512xbf16>
    %cst_12 = arith.constant dense<0.000000e+00> : vector<16x512xf32>
    %17 = tpu.matmul %15, %16, %cst_12 {dimension_numbers = #tpu.dot_dimension_numbers<[1], [0], [0], [1], [0, 0, 1, 1], [], []>} : vector<16x128xbf16>, vector<128x512xbf16>, vector<16x512xf32> -> vector<16x512xf32>
    %18 = arith.addf %14, %17 : vector<16x512xf32>
    %19 = vector.extract_strided_slice %18 {offsets = [0, 0], sizes = [16, 128], strides = [1, 1]} : vector<16x512xf32> to vector<16x128xf32>
    %cst_13 = arith.constant 5.000000e-01 : f32
    %20 = vector.broadcast %cst_13 : f32 to vector<16x128xf32>
    %21 = arith.mulf %20, %19 : vector<16x128xf32>
    %22 = math.tanh %21 : vector<16x128xf32>
    %cst_14 = arith.constant 1.000000e+00 : f32
    %23 = vector.broadcast %cst_14 : f32 to vector<16x128xf32>
    %24 = arith.addf %22, %23 : vector<16x128xf32>
    %cst_15 = arith.constant 5.000000e-01 : f32
    %25 = vector.broadcast %cst_15 : f32 to vector<16x128xf32>
    %26 = arith.mulf %25, %24 : vector<16x128xf32>
    %27 = vector.extract_strided_slice %18 {offsets = [0, 128], sizes = [16, 128], strides = [1, 1]} : vector<16x512xf32> to vector<16x128xf32>
    %cst_16 = arith.constant 5.000000e-01 : f32
    %28 = vector.broadcast %cst_16 : f32 to vector<16x128xf32>
    %29 = arith.mulf %28, %27 : vector<16x128xf32>
    %30 = math.tanh %29 : vector<16x128xf32>
    %cst_17 = arith.constant 1.000000e+00 : f32
    %31 = vector.broadcast %cst_17 : f32 to vector<16x128xf32>
    %32 = arith.addf %30, %31 : vector<16x128xf32>
    %cst_18 = arith.constant 5.000000e-01 : f32
    %33 = vector.broadcast %cst_18 : f32 to vector<16x128xf32>
    %34 = arith.mulf %33, %32 : vector<16x128xf32>
    %35 = vector.extract_strided_slice %18 {offsets = [0, 256], sizes = [16, 128], strides = [1, 1]} : vector<16x512xf32> to vector<16x128xf32>
    %36 = math.tanh %35 : vector<16x128xf32>
    %37 = vector.extract_strided_slice %18 {offsets = [0, 384], sizes = [16, 128], strides = [1, 1]} : vector<16x512xf32> to vector<16x128xf32>
    %cst_19 = arith.constant 5.000000e-01 : f32
    %38 = vector.broadcast %cst_19 : f32 to vector<16x128xf32>
    %39 = arith.mulf %38, %37 : vector<16x128xf32>
    %40 = math.tanh %39 : vector<16x128xf32>
    %cst_20 = arith.constant 1.000000e+00 : f32
    %41 = vector.broadcast %cst_20 : f32 to vector<16x128xf32>
    %42 = arith.addf %40, %41 : vector<16x128xf32>
    %cst_21 = arith.constant 5.000000e-01 : f32
    %43 = vector.broadcast %cst_21 : f32 to vector<16x128xf32>
    %44 = arith.mulf %43, %42 : vector<16x128xf32>
    %45 = arith.mulf %34, %10 : vector<16x128xf32>
    %46 = arith.mulf %26, %36 : vector<16x128xf32>
    %47 = arith.addf %45, %46 : vector<16x128xf32>
    %48 = math.tanh %47 : vector<16x128xf32>
    %49 = arith.mulf %44, %48 : vector<16x128xf32>
    %50 = arith.truncf %49 : vector<16x128xf32> to vector<16x128xbf16>
    %c0_22 = arith.constant 0 : index
    %c0_23 = arith.constant 0 : index
    %51 = vector.load %arg5[%c0_22, %c0_23] : memref<128x512xbf16, #tpu.memory_space<vmem>>, vector<128x512xbf16>
    %cst_24 = arith.constant dense<0.000000e+00> : vector<16x512xf32>
    %52 = tpu.matmul %50, %51, %cst_24 {dimension_numbers = #tpu.dot_dimension_numbers<[1], [0], [0], [1], [0, 0, 1, 1], [], []>} : vector<16x128xbf16>, vector<128x512xbf16>, vector<16x512xf32> -> vector<16x512xf32>
    %c0_25 = arith.constant 0 : index
    %c0_26 = arith.constant 0 : index
    %53 = vector.load %arg7[%c0_25, %c0_26] : memref<1x512xf32, #tpu.memory_space<vmem>>, vector<1x512xf32>
    %54 = vector.broadcast %53 : vector<1x512xf32> to vector<16x512xf32>
    %55 = arith.addf %52, %54 : vector<16x512xf32>
    %56 = vector.extract_strided_slice %8 {offsets = [1, 0, 0], sizes = [1, 16, 512], strides = [1, 1, 1]} : vector<8x16x512xf32> to vector<1x16x512xf32>
    %57 = vector.shape_cast %56 : vector<1x16x512xf32> to vector<16x512xf32>
    %58 = arith.truncf %49 : vector<16x128xf32> to vector<16x128xbf16>
    %c0_27 = arith.constant 0 : index
    %c0_28 = arith.constant 0 : index
    %59 = vector.load %arg3[%c0_27, %c0_28] : memref<128x512xbf16, #tpu.memory_space<vmem>>, vector<128x512xbf16>
    %cst_29 = arith.constant dense<0.000000e+00> : vector<16x512xf32>
    %60 = tpu.matmul %58, %59, %cst_29 {dimension_numbers = #tpu.dot_dimension_numbers<[1], [0], [0], [1], [0, 0, 1, 1], [], []>} : vector<16x128xbf16>, vector<128x512xbf16>, vector<16x512xf32> -> vector<16x512xf32>
    %61 = arith.addf %57, %60 : vector<16x512xf32>
    %62 = vector.extract_strided_slice %61 {offsets = [0, 0], sizes = [16, 128], strides = [1, 1]} : vector<16x512xf32> to vector<16x128xf32>
    %cst_30 = arith.constant 5.000000e-01 : f32
    %63 = vector.broadcast %cst_30 : f32 to vector<16x128xf32>
    %64 = arith.mulf %63, %62 : vector<16x128xf32>
    %65 = math.tanh %64 : vector<16x128xf32>
    %cst_31 = arith.constant 1.000000e+00 : f32
    %66 = vector.broadcast %cst_31 : f32 to vector<16x128xf32>
    %67 = arith.addf %65, %66 : vector<16x128xf32>
    %cst_32 = arith.constant 5.000000e-01 : f32
    %68 = vector.broadcast %cst_32 : f32 to vector<16x128xf32>
    %69 = arith.mulf %68, %67 : vector<16x128xf32>
    %70 = vector.extract_strided_slice %61 {offsets = [0, 128], sizes = [16, 128], strides = [1, 1]} : vector<16x512xf32> to vector<16x128xf32>
    %cst_33 = arith.constant 5.000000e-01 : f32
    %71 = vector.broadcast %cst_33 : f32 to vector<16x128xf32>
    %72 = arith.mulf %71, %70 : vector<16x128xf32>
    %73 = math.tanh %72 : vector<16x128xf32>
    %cst_34 = arith.constant 1.000000e+00 : f32
    %74 = vector.broadcast %cst_34 : f32 to vector<16x128xf32>
    %75 = arith.addf %73, %74 : vector<16x128xf32>
    %cst_35 = arith.constant 5.000000e-01 : f32
    %76 = vector.broadcast %cst_35 : f32 to vector<16x128xf32>
    %77 = arith.mulf %76, %75 : vector<16x128xf32>
    %78 = vector.extract_strided_slice %61 {offsets = [0, 256], sizes = [16, 128], strides = [1, 1]} : vector<16x512xf32> to vector<16x128xf32>
    %79 = math.tanh %78 : vector<16x128xf32>
    %80 = vector.extract_strided_slice %61 {offsets = [0, 384], sizes = [16, 128], strides = [1, 1]} : vector<16x512xf32> to vector<16x128xf32>
    %cst_36 = arith.constant 5.000000e-01 : f32
    %81 = vector.broadcast %cst_36 : f32 to vector<16x128xf32>
    %82 = arith.mulf %81, %80 : vector<16x128xf32>
    %83 = math.tanh %82 : vector<16x128xf32>
    %cst_37 = arith.constant 1.000000e+00 : f32
    %84 = vector.broadcast %cst_37 : f32 to vector<16x128xf32>
    %85 = arith.addf %83, %84 : vector<16x128xf32>
    %cst_38 = arith.constant 5.000000e-01 : f32
    %86 = vector.broadcast %cst_38 : f32 to vector<16x128xf32>
    %87 = arith.mulf %86, %85 : vector<16x128xf32>
    %88 = arith.mulf %77, %47 : vector<16x128xf32>
    %89 = arith.mulf %69, %79 : vector<16x128xf32>
    %90 = arith.addf %88, %89 : vector<16x128xf32>
    %91 = math.tanh %90 : vector<16x128xf32>
    %92 = arith.mulf %87, %91 : vector<16x128xf32>
    %93 = arith.truncf %11 : vector<16x128xf32> to vector<16x128xbf16>
    %c0_39 = arith.constant 0 : index
    %c0_40 = arith.constant 0 : index
    %94 = vector.load %arg6[%c0_39, %c0_40] : memref<128x512xbf16, #tpu.memory_space<vmem>>, vector<128x512xbf16>
    %cst_41 = arith.constant dense<0.000000e+00> : vector<16x512xf32>
    %95 = tpu.matmul %93, %94, %cst_41 {dimension_numbers = #tpu.dot_dimension_numbers<[1], [0], [0], [1], [0, 0, 1, 1], [], []>} : vector<16x128xbf16>, vector<128x512xbf16>, vector<16x512xf32> -> vector<16x512xf32>
    %96 = arith.addf %55, %95 : vector<16x512xf32>
    %97 = vector.extract_strided_slice %96 {offsets = [0, 0], sizes = [16, 128], strides = [1, 1]} : vector<16x512xf32> to vector<16x128xf32>
    %cst_42 = arith.constant 5.000000e-01 : f32
    %98 = vector.broadcast %cst_42 : f32 to vector<16x128xf32>
    %99 = arith.mulf %98, %97 : vector<16x128xf32>
    %100 = math.tanh %99 : vector<16x128xf32>
    %cst_43 = arith.constant 1.000000e+00 : f32
    %101 = vector.broadcast %cst_43 : f32 to vector<16x128xf32>
    %102 = arith.addf %100, %101 : vector<16x128xf32>
    %cst_44 = arith.constant 5.000000e-01 : f32
    %103 = vector.broadcast %cst_44 : f32 to vector<16x128xf32>
    %104 = arith.mulf %103, %102 : vector<16x128xf32>
    %105 = vector.extract_strided_slice %96 {offsets = [0, 128], sizes = [16, 128], strides = [1, 1]} : vector<16x512xf32> to vector<16x128xf32>
    %cst_45 = arith.constant 5.000000e-01 : f32
    %106 = vector.broadcast %cst_45 : f32 to vector<16x128xf32>
    %107 = arith.mulf %106, %105 : vector<16x128xf32>
    %108 = math.tanh %107 : vector<16x128xf32>
    %cst_46 = arith.constant 1.000000e+00 : f32
    %109 = vector.broadcast %cst_46 : f32 to vector<16x128xf32>
    %110 = arith.addf %108, %109 : vector<16x128xf32>
    %cst_47 = arith.constant 5.000000e-01 : f32
    %111 = vector.broadcast %cst_47 : f32 to vector<16x128xf32>
    %112 = arith.mulf %111, %110 : vector<16x128xf32>
    %113 = vector.extract_strided_slice %96 {offsets = [0, 256], sizes = [16, 128], strides = [1, 1]} : vector<16x512xf32> to vector<16x128xf32>
    %114 = math.tanh %113 : vector<16x128xf32>
    %115 = vector.extract_strided_slice %96 {offsets = [0, 384], sizes = [16, 128], strides = [1, 1]} : vector<16x512xf32> to vector<16x128xf32>
    %cst_48 = arith.constant 5.000000e-01 : f32
    %116 = vector.broadcast %cst_48 : f32 to vector<16x128xf32>
    %117 = arith.mulf %116, %115 : vector<16x128xf32>
    %118 = math.tanh %117 : vector<16x128xf32>
    %cst_49 = arith.constant 1.000000e+00 : f32
    %119 = vector.broadcast %cst_49 : f32 to vector<16x128xf32>
    %120 = arith.addf %118, %119 : vector<16x128xf32>
    %cst_50 = arith.constant 5.000000e-01 : f32
    %121 = vector.broadcast %cst_50 : f32 to vector<16x128xf32>
    %122 = arith.mulf %121, %120 : vector<16x128xf32>
    %123 = arith.mulf %112, %12 : vector<16x128xf32>
    %124 = arith.mulf %104, %114 : vector<16x128xf32>
    %125 = arith.addf %123, %124 : vector<16x128xf32>
    %126 = math.tanh %125 : vector<16x128xf32>
    %127 = arith.mulf %122, %126 : vector<16x128xf32>
    %128 = arith.truncf %92 : vector<16x128xf32> to vector<16x128xbf16>
    %c0_51 = arith.constant 0 : index
    %c0_52 = arith.constant 0 : index
    %129 = vector.load %arg5[%c0_51, %c0_52] : memref<128x512xbf16, #tpu.memory_space<vmem>>, vector<128x512xbf16>
    %cst_53 = arith.constant dense<0.000000e+00> : vector<16x512xf32>
    %130 = tpu.matmul %128, %129, %cst_53 {dimension_numbers = #tpu.dot_dimension_numbers<[1], [0], [0], [1], [0, 0, 1, 1], [], []>} : vector<16x128xbf16>, vector<128x512xbf16>, vector<16x512xf32> -> vector<16x512xf32>
    %c0_54 = arith.constant 0 : index
    %c0_55 = arith.constant 0 : index
    %131 = vector.load %arg7[%c0_54, %c0_55] : memref<1x512xf32, #tpu.memory_space<vmem>>, vector<1x512xf32>
    %132 = vector.broadcast %131 : vector<1x512xf32> to vector<16x512xf32>
    %133 = arith.addf %130, %132 : vector<16x512xf32>
    %134 = vector.extract_strided_slice %8 {offsets = [2, 0, 0], sizes = [1, 16, 512], strides = [1, 1, 1]} : vector<8x16x512xf32> to vector<1x16x512xf32>
    %135 = vector.shape_cast %134 : vector<1x16x512xf32> to vector<16x512xf32>
    %136 = arith.truncf %92 : vector<16x128xf32> to vector<16x128xbf16>
    %c0_56 = arith.constant 0 : index
    %c0_57 = arith.constant 0 : index
    %137 = vector.load %arg3[%c0_56, %c0_57] : memref<128x512xbf16, #tpu.memory_space<vmem>>, vector<128x512xbf16>
    %cst_58 = arith.constant dense<0.000000e+00> : vector<16x512xf32>
    %138 = tpu.matmul %136, %137, %cst_58 {dimension_numbers = #tpu.dot_dimension_numbers<[1], [0], [0], [1], [0, 0, 1, 1], [], []>} : vector<16x128xbf16>, vector<128x512xbf16>, vector<16x512xf32> -> vector<16x512xf32>
    %139 = arith.addf %135, %138 : vector<16x512xf32>
    %140 = vector.extract_strided_slice %139 {offsets = [0, 0], sizes = [16, 128], strides = [1, 1]} : vector<16x512xf32> to vector<16x128xf32>
    %cst_59 = arith.constant 5.000000e-01 : f32
    %141 = vector.broadcast %cst_59 : f32 to vector<16x128xf32>
    %142 = arith.mulf %141, %140 : vector<16x128xf32>
    %143 = math.tanh %142 : vector<16x128xf32>
    %cst_60 = arith.constant 1.000000e+00 : f32
    %144 = vector.broadcast %cst_60 : f32 to vector<16x128xf32>
    %145 = arith.addf %143, %144 : vector<16x128xf32>
    %cst_61 = arith.constant 5.000000e-01 : f32
    %146 = vector.broadcast %cst_61 : f32 to vector<16x128xf32>
    %147 = arith.mulf %146, %145 : vector<16x128xf32>
    %148 = vector.extract_strided_slice %139 {offsets = [0, 128], sizes = [16, 128], strides = [1, 1]} : vector<16x512xf32> to vector<16x128xf32>
    %cst_62 = arith.constant 5.000000e-01 : f32
    %149 = vector.broadcast %cst_62 : f32 to vector<16x128xf32>
    %150 = arith.mulf %149, %148 : vector<16x128xf32>
    %151 = math.tanh %150 : vector<16x128xf32>
    %cst_63 = arith.constant 1.000000e+00 : f32
    %152 = vector.broadcast %cst_63 : f32 to vector<16x128xf32>
    %153 = arith.addf %151, %152 : vector<16x128xf32>
    %cst_64 = arith.constant 5.000000e-01 : f32
    %154 = vector.broadcast %cst_64 : f32 to vector<16x128xf32>
    %155 = arith.mulf %154, %153 : vector<16x128xf32>
    %156 = vector.extract_strided_slice %139 {offsets = [0, 256], sizes = [16, 128], strides = [1, 1]} : vector<16x512xf32> to vector<16x128xf32>
    %157 = math.tanh %156 : vector<16x128xf32>
    %158 = vector.extract_strided_slice %139 {offsets = [0, 384], sizes = [16, 128], strides = [1, 1]} : vector<16x512xf32> to vector<16x128xf32>
    %cst_65 = arith.constant 5.000000e-01 : f32
    %159 = vector.broadcast %cst_65 : f32 to vector<16x128xf32>
    %160 = arith.mulf %159, %158 : vector<16x128xf32>
    %161 = math.tanh %160 : vector<16x128xf32>
    %cst_66 = arith.constant 1.000000e+00 : f32
    %162 = vector.broadcast %cst_66 : f32 to vector<16x128xf32>
    %163 = arith.addf %161, %162 : vector<16x128xf32>
    %cst_67 = arith.constant 5.000000e-01 : f32
    %164 = vector.broadcast %cst_67 : f32 to vector<16x128xf32>
    %165 = arith.mulf %164, %163 : vector<16x128xf32>
    %166 = arith.mulf %155, %90 : vector<16x128xf32>
    %167 = arith.mulf %147, %157 : vector<16x128xf32>
    %168 = arith.addf %166, %167 : vector<16x128xf32>
    %169 = math.tanh %168 : vector<16x128xf32>
    %170 = arith.mulf %165, %169 : vector<16x128xf32>
    %171 = arith.truncf %127 : vector<16x128xf32> to vector<16x128xbf16>
    %c0_68 = arith.constant 0 : index
    %c0_69 = arith.constant 0 : index
    %172 = vector.load %arg6[%c0_68, %c0_69] : memref<128x512xbf16, #tpu.memory_space<vmem>>, vector<128x512xbf16>
    %cst_70 = arith.constant dense<0.000000e+00> : vector<16x512xf32>
    %173 = tpu.matmul %171, %172, %cst_70 {dimension_numbers = #tpu.dot_dimension_numbers<[1], [0], [0], [1], [0, 0, 1, 1], [], []>} : vector<16x128xbf16>, vector<128x512xbf16>, vector<16x512xf32> -> vector<16x512xf32>
    %174 = arith.addf %133, %173 : vector<16x512xf32>
    %175 = vector.extract_strided_slice %174 {offsets = [0, 0], sizes = [16, 128], strides = [1, 1]} : vector<16x512xf32> to vector<16x128xf32>
    %cst_71 = arith.constant 5.000000e-01 : f32
    %176 = vector.broadcast %cst_71 : f32 to vector<16x128xf32>
    %177 = arith.mulf %176, %175 : vector<16x128xf32>
    %178 = math.tanh %177 : vector<16x128xf32>
    %cst_72 = arith.constant 1.000000e+00 : f32
    %179 = vector.broadcast %cst_72 : f32 to vector<16x128xf32>
    %180 = arith.addf %178, %179 : vector<16x128xf32>
    %cst_73 = arith.constant 5.000000e-01 : f32
    %181 = vector.broadcast %cst_73 : f32 to vector<16x128xf32>
    %182 = arith.mulf %181, %180 : vector<16x128xf32>
    %183 = vector.extract_strided_slice %174 {offsets = [0, 128], sizes = [16, 128], strides = [1, 1]} : vector<16x512xf32> to vector<16x128xf32>
    %cst_74 = arith.constant 5.000000e-01 : f32
    %184 = vector.broadcast %cst_74 : f32 to vector<16x128xf32>
    %185 = arith.mulf %184, %183 : vector<16x128xf32>
    %186 = math.tanh %185 : vector<16x128xf32>
    %cst_75 = arith.constant 1.000000e+00 : f32
    %187 = vector.broadcast %cst_75 : f32 to vector<16x128xf32>
    %188 = arith.addf %186, %187 : vector<16x128xf32>
    %cst_76 = arith.constant 5.000000e-01 : f32
    %189 = vector.broadcast %cst_76 : f32 to vector<16x128xf32>
    %190 = arith.mulf %189, %188 : vector<16x128xf32>
    %191 = vector.extract_strided_slice %174 {offsets = [0, 256], sizes = [16, 128], strides = [1, 1]} : vector<16x512xf32> to vector<16x128xf32>
    %192 = math.tanh %191 : vector<16x128xf32>
    %193 = vector.extract_strided_slice %174 {offsets = [0, 384], sizes = [16, 128], strides = [1, 1]} : vector<16x512xf32> to vector<16x128xf32>
    %cst_77 = arith.constant 5.000000e-01 : f32
    %194 = vector.broadcast %cst_77 : f32 to vector<16x128xf32>
    %195 = arith.mulf %194, %193 : vector<16x128xf32>
    %196 = math.tanh %195 : vector<16x128xf32>
    %cst_78 = arith.constant 1.000000e+00 : f32
    %197 = vector.broadcast %cst_78 : f32 to vector<16x128xf32>
    %198 = arith.addf %196, %197 : vector<16x128xf32>
    %cst_79 = arith.constant 5.000000e-01 : f32
    %199 = vector.broadcast %cst_79 : f32 to vector<16x128xf32>
    %200 = arith.mulf %199, %198 : vector<16x128xf32>
    %201 = arith.mulf %190, %125 : vector<16x128xf32>
    %202 = arith.mulf %182, %192 : vector<16x128xf32>
    %203 = arith.addf %201, %202 : vector<16x128xf32>
    %204 = math.tanh %203 : vector<16x128xf32>
    %205 = arith.mulf %200, %204 : vector<16x128xf32>
    %206 = arith.truncf %170 : vector<16x128xf32> to vector<16x128xbf16>
    %c0_80 = arith.constant 0 : index
    %c0_81 = arith.constant 0 : index
    %207 = vector.load %arg5[%c0_80, %c0_81] : memref<128x512xbf16, #tpu.memory_space<vmem>>, vector<128x512xbf16>
    %cst_82 = arith.constant dense<0.000000e+00> : vector<16x512xf32>
    %208 = tpu.matmul %206, %207, %cst_82 {dimension_numbers = #tpu.dot_dimension_numbers<[1], [0], [0], [1], [0, 0, 1, 1], [], []>} : vector<16x128xbf16>, vector<128x512xbf16>, vector<16x512xf32> -> vector<16x512xf32>
    %c0_83 = arith.constant 0 : index
    %c0_84 = arith.constant 0 : index
    %209 = vector.load %arg7[%c0_83, %c0_84] : memref<1x512xf32, #tpu.memory_space<vmem>>, vector<1x512xf32>
    %210 = vector.broadcast %209 : vector<1x512xf32> to vector<16x512xf32>
    %211 = arith.addf %208, %210 : vector<16x512xf32>
    %212 = vector.extract_strided_slice %8 {offsets = [3, 0, 0], sizes = [1, 16, 512], strides = [1, 1, 1]} : vector<8x16x512xf32> to vector<1x16x512xf32>
    %213 = vector.shape_cast %212 : vector<1x16x512xf32> to vector<16x512xf32>
    %214 = arith.truncf %170 : vector<16x128xf32> to vector<16x128xbf16>
    %c0_85 = arith.constant 0 : index
    %c0_86 = arith.constant 0 : index
    %215 = vector.load %arg3[%c0_85, %c0_86] : memref<128x512xbf16, #tpu.memory_space<vmem>>, vector<128x512xbf16>
    %cst_87 = arith.constant dense<0.000000e+00> : vector<16x512xf32>
    %216 = tpu.matmul %214, %215, %cst_87 {dimension_numbers = #tpu.dot_dimension_numbers<[1], [0], [0], [1], [0, 0, 1, 1], [], []>} : vector<16x128xbf16>, vector<128x512xbf16>, vector<16x512xf32> -> vector<16x512xf32>
    %217 = arith.addf %213, %216 : vector<16x512xf32>
    %218 = vector.extract_strided_slice %217 {offsets = [0, 0], sizes = [16, 128], strides = [1, 1]} : vector<16x512xf32> to vector<16x128xf32>
    %cst_88 = arith.constant 5.000000e-01 : f32
    %219 = vector.broadcast %cst_88 : f32 to vector<16x128xf32>
    %220 = arith.mulf %219, %218 : vector<16x128xf32>
    %221 = math.tanh %220 : vector<16x128xf32>
    %cst_89 = arith.constant 1.000000e+00 : f32
    %222 = vector.broadcast %cst_89 : f32 to vector<16x128xf32>
    %223 = arith.addf %221, %222 : vector<16x128xf32>
    %cst_90 = arith.constant 5.000000e-01 : f32
    %224 = vector.broadcast %cst_90 : f32 to vector<16x128xf32>
    %225 = arith.mulf %224, %223 : vector<16x128xf32>
    %226 = vector.extract_strided_slice %217 {offsets = [0, 128], sizes = [16, 128], strides = [1, 1]} : vector<16x512xf32> to vector<16x128xf32>
    %cst_91 = arith.constant 5.000000e-01 : f32
    %227 = vector.broadcast %cst_91 : f32 to vector<16x128xf32>
    %228 = arith.mulf %227, %226 : vector<16x128xf32>
    %229 = math.tanh %228 : vector<16x128xf32>
    %cst_92 = arith.constant 1.000000e+00 : f32
    %230 = vector.broadcast %cst_92 : f32 to vector<16x128xf32>
    %231 = arith.addf %229, %230 : vector<16x128xf32>
    %cst_93 = arith.constant 5.000000e-01 : f32
    %232 = vector.broadcast %cst_93 : f32 to vector<16x128xf32>
    %233 = arith.mulf %232, %231 : vector<16x128xf32>
    %234 = vector.extract_strided_slice %217 {offsets = [0, 256], sizes = [16, 128], strides = [1, 1]} : vector<16x512xf32> to vector<16x128xf32>
    %235 = math.tanh %234 : vector<16x128xf32>
    %236 = vector.extract_strided_slice %217 {offsets = [0, 384], sizes = [16, 128], strides = [1, 1]} : vector<16x512xf32> to vector<16x128xf32>
    %cst_94 = arith.constant 5.000000e-01 : f32
    %237 = vector.broadcast %cst_94 : f32 to vector<16x128xf32>
    %238 = arith.mulf %237, %236 : vector<16x128xf32>
    %239 = math.tanh %238 : vector<16x128xf32>
    %cst_95 = arith.constant 1.000000e+00 : f32
    %240 = vector.broadcast %cst_95 : f32 to vector<16x128xf32>
    %241 = arith.addf %239, %240 : vector<16x128xf32>
    %cst_96 = arith.constant 5.000000e-01 : f32
    %242 = vector.broadcast %cst_96 : f32 to vector<16x128xf32>
    %243 = arith.mulf %242, %241 : vector<16x128xf32>
    %244 = arith.mulf %233, %168 : vector<16x128xf32>
    %245 = arith.mulf %225, %235 : vector<16x128xf32>
    %246 = arith.addf %244, %245 : vector<16x128xf32>
    %247 = math.tanh %246 : vector<16x128xf32>
    %248 = arith.mulf %243, %247 : vector<16x128xf32>
    %249 = arith.truncf %205 : vector<16x128xf32> to vector<16x128xbf16>
    %c0_97 = arith.constant 0 : index
    %c0_98 = arith.constant 0 : index
    %250 = vector.load %arg6[%c0_97, %c0_98] : memref<128x512xbf16, #tpu.memory_space<vmem>>, vector<128x512xbf16>
    %cst_99 = arith.constant dense<0.000000e+00> : vector<16x512xf32>
    %251 = tpu.matmul %249, %250, %cst_99 {dimension_numbers = #tpu.dot_dimension_numbers<[1], [0], [0], [1], [0, 0, 1, 1], [], []>} : vector<16x128xbf16>, vector<128x512xbf16>, vector<16x512xf32> -> vector<16x512xf32>
    %252 = arith.addf %211, %251 : vector<16x512xf32>
    %253 = vector.extract_strided_slice %252 {offsets = [0, 0], sizes = [16, 128], strides = [1, 1]} : vector<16x512xf32> to vector<16x128xf32>
    %cst_100 = arith.constant 5.000000e-01 : f32
    %254 = vector.broadcast %cst_100 : f32 to vector<16x128xf32>
    %255 = arith.mulf %254, %253 : vector<16x128xf32>
    %256 = math.tanh %255 : vector<16x128xf32>
    %cst_101 = arith.constant 1.000000e+00 : f32
    %257 = vector.broadcast %cst_101 : f32 to vector<16x128xf32>
    %258 = arith.addf %256, %257 : vector<16x128xf32>
    %cst_102 = arith.constant 5.000000e-01 : f32
    %259 = vector.broadcast %cst_102 : f32 to vector<16x128xf32>
    %260 = arith.mulf %259, %258 : vector<16x128xf32>
    %261 = vector.extract_strided_slice %252 {offsets = [0, 128], sizes = [16, 128], strides = [1, 1]} : vector<16x512xf32> to vector<16x128xf32>
    %cst_103 = arith.constant 5.000000e-01 : f32
    %262 = vector.broadcast %cst_103 : f32 to vector<16x128xf32>
    %263 = arith.mulf %262, %261 : vector<16x128xf32>
    %264 = math.tanh %263 : vector<16x128xf32>
    %cst_104 = arith.constant 1.000000e+00 : f32
    %265 = vector.broadcast %cst_104 : f32 to vector<16x128xf32>
    %266 = arith.addf %264, %265 : vector<16x128xf32>
    %cst_105 = arith.constant 5.000000e-01 : f32
    %267 = vector.broadcast %cst_105 : f32 to vector<16x128xf32>
    %268 = arith.mulf %267, %266 : vector<16x128xf32>
    %269 = vector.extract_strided_slice %252 {offsets = [0, 256], sizes = [16, 128], strides = [1, 1]} : vector<16x512xf32> to vector<16x128xf32>
    %270 = math.tanh %269 : vector<16x128xf32>
    %271 = vector.extract_strided_slice %252 {offsets = [0, 384], sizes = [16, 128], strides = [1, 1]} : vector<16x512xf32> to vector<16x128xf32>
    %cst_106 = arith.constant 5.000000e-01 : f32
    %272 = vector.broadcast %cst_106 : f32 to vector<16x128xf32>
    %273 = arith.mulf %272, %271 : vector<16x128xf32>
    %274 = math.tanh %273 : vector<16x128xf32>
    %cst_107 = arith.constant 1.000000e+00 : f32
    %275 = vector.broadcast %cst_107 : f32 to vector<16x128xf32>
    %276 = arith.addf %274, %275 : vector<16x128xf32>
    %cst_108 = arith.constant 5.000000e-01 : f32
    %277 = vector.broadcast %cst_108 : f32 to vector<16x128xf32>
    %278 = arith.mulf %277, %276 : vector<16x128xf32>
    %279 = arith.mulf %268, %203 : vector<16x128xf32>
    %280 = arith.mulf %260, %270 : vector<16x128xf32>
    %281 = arith.addf %279, %280 : vector<16x128xf32>
    %282 = math.tanh %281 : vector<16x128xf32>
    %283 = arith.mulf %278, %282 : vector<16x128xf32>
    %284 = arith.truncf %248 : vector<16x128xf32> to vector<16x128xbf16>
    %c0_109 = arith.constant 0 : index
    %c0_110 = arith.constant 0 : index
    %285 = vector.load %arg5[%c0_109, %c0_110] : memref<128x512xbf16, #tpu.memory_space<vmem>>, vector<128x512xbf16>
    %cst_111 = arith.constant dense<0.000000e+00> : vector<16x512xf32>
    %286 = tpu.matmul %284, %285, %cst_111 {dimension_numbers = #tpu.dot_dimension_numbers<[1], [0], [0], [1], [0, 0, 1, 1], [], []>} : vector<16x128xbf16>, vector<128x512xbf16>, vector<16x512xf32> -> vector<16x512xf32>
    %c0_112 = arith.constant 0 : index
    %c0_113 = arith.constant 0 : index
    %287 = vector.load %arg7[%c0_112, %c0_113] : memref<1x512xf32, #tpu.memory_space<vmem>>, vector<1x512xf32>
    %288 = vector.broadcast %287 : vector<1x512xf32> to vector<16x512xf32>
    %289 = arith.addf %286, %288 : vector<16x512xf32>
    %290 = vector.extract_strided_slice %8 {offsets = [4, 0, 0], sizes = [1, 16, 512], strides = [1, 1, 1]} : vector<8x16x512xf32> to vector<1x16x512xf32>
    %291 = vector.shape_cast %290 : vector<1x16x512xf32> to vector<16x512xf32>
    %292 = arith.truncf %248 : vector<16x128xf32> to vector<16x128xbf16>
    %c0_114 = arith.constant 0 : index
    %c0_115 = arith.constant 0 : index
    %293 = vector.load %arg3[%c0_114, %c0_115] : memref<128x512xbf16, #tpu.memory_space<vmem>>, vector<128x512xbf16>
    %cst_116 = arith.constant dense<0.000000e+00> : vector<16x512xf32>
    %294 = tpu.matmul %292, %293, %cst_116 {dimension_numbers = #tpu.dot_dimension_numbers<[1], [0], [0], [1], [0, 0, 1, 1], [], []>} : vector<16x128xbf16>, vector<128x512xbf16>, vector<16x512xf32> -> vector<16x512xf32>
    %295 = arith.addf %291, %294 : vector<16x512xf32>
    %296 = vector.extract_strided_slice %295 {offsets = [0, 0], sizes = [16, 128], strides = [1, 1]} : vector<16x512xf32> to vector<16x128xf32>
    %cst_117 = arith.constant 5.000000e-01 : f32
    %297 = vector.broadcast %cst_117 : f32 to vector<16x128xf32>
    %298 = arith.mulf %297, %296 : vector<16x128xf32>
    %299 = math.tanh %298 : vector<16x128xf32>
    %cst_118 = arith.constant 1.000000e+00 : f32
    %300 = vector.broadcast %cst_118 : f32 to vector<16x128xf32>
    %301 = arith.addf %299, %300 : vector<16x128xf32>
    %cst_119 = arith.constant 5.000000e-01 : f32
    %302 = vector.broadcast %cst_119 : f32 to vector<16x128xf32>
    %303 = arith.mulf %302, %301 : vector<16x128xf32>
    %304 = vector.extract_strided_slice %295 {offsets = [0, 128], sizes = [16, 128], strides = [1, 1]} : vector<16x512xf32> to vector<16x128xf32>
    %cst_120 = arith.constant 5.000000e-01 : f32
    %305 = vector.broadcast %cst_120 : f32 to vector<16x128xf32>
    %306 = arith.mulf %305, %304 : vector<16x128xf32>
    %307 = math.tanh %306 : vector<16x128xf32>
    %cst_121 = arith.constant 1.000000e+00 : f32
    %308 = vector.broadcast %cst_121 : f32 to vector<16x128xf32>
    %309 = arith.addf %307, %308 : vector<16x128xf32>
    %cst_122 = arith.constant 5.000000e-01 : f32
    %310 = vector.broadcast %cst_122 : f32 to vector<16x128xf32>
    %311 = arith.mulf %310, %309 : vector<16x128xf32>
    %312 = vector.extract_strided_slice %295 {offsets = [0, 256], sizes = [16, 128], strides = [1, 1]} : vector<16x512xf32> to vector<16x128xf32>
    %313 = math.tanh %312 : vector<16x128xf32>
    %314 = vector.extract_strided_slice %295 {offsets = [0, 384], sizes = [16, 128], strides = [1, 1]} : vector<16x512xf32> to vector<16x128xf32>
    %cst_123 = arith.constant 5.000000e-01 : f32
    %315 = vector.broadcast %cst_123 : f32 to vector<16x128xf32>
    %316 = arith.mulf %315, %314 : vector<16x128xf32>
    %317 = math.tanh %316 : vector<16x128xf32>
    %cst_124 = arith.constant 1.000000e+00 : f32
    %318 = vector.broadcast %cst_124 : f32 to vector<16x128xf32>
    %319 = arith.addf %317, %318 : vector<16x128xf32>
    %cst_125 = arith.constant 5.000000e-01 : f32
    %320 = vector.broadcast %cst_125 : f32 to vector<16x128xf32>
    %321 = arith.mulf %320, %319 : vector<16x128xf32>
    %322 = arith.mulf %311, %246 : vector<16x128xf32>
    %323 = arith.mulf %303, %313 : vector<16x128xf32>
    %324 = arith.addf %322, %323 : vector<16x128xf32>
    %325 = math.tanh %324 : vector<16x128xf32>
    %326 = arith.mulf %321, %325 : vector<16x128xf32>
    %327 = arith.truncf %283 : vector<16x128xf32> to vector<16x128xbf16>
    %c0_126 = arith.constant 0 : index
    %c0_127 = arith.constant 0 : index
    %328 = vector.load %arg6[%c0_126, %c0_127] : memref<128x512xbf16, #tpu.memory_space<vmem>>, vector<128x512xbf16>
    %cst_128 = arith.constant dense<0.000000e+00> : vector<16x512xf32>
    %329 = tpu.matmul %327, %328, %cst_128 {dimension_numbers = #tpu.dot_dimension_numbers<[1], [0], [0], [1], [0, 0, 1, 1], [], []>} : vector<16x128xbf16>, vector<128x512xbf16>, vector<16x512xf32> -> vector<16x512xf32>
    %330 = arith.addf %289, %329 : vector<16x512xf32>
    %331 = vector.extract_strided_slice %330 {offsets = [0, 0], sizes = [16, 128], strides = [1, 1]} : vector<16x512xf32> to vector<16x128xf32>
    %cst_129 = arith.constant 5.000000e-01 : f32
    %332 = vector.broadcast %cst_129 : f32 to vector<16x128xf32>
    %333 = arith.mulf %332, %331 : vector<16x128xf32>
    %334 = math.tanh %333 : vector<16x128xf32>
    %cst_130 = arith.constant 1.000000e+00 : f32
    %335 = vector.broadcast %cst_130 : f32 to vector<16x128xf32>
    %336 = arith.addf %334, %335 : vector<16x128xf32>
    %cst_131 = arith.constant 5.000000e-01 : f32
    %337 = vector.broadcast %cst_131 : f32 to vector<16x128xf32>
    %338 = arith.mulf %337, %336 : vector<16x128xf32>
    %339 = vector.extract_strided_slice %330 {offsets = [0, 128], sizes = [16, 128], strides = [1, 1]} : vector<16x512xf32> to vector<16x128xf32>
    %cst_132 = arith.constant 5.000000e-01 : f32
    %340 = vector.broadcast %cst_132 : f32 to vector<16x128xf32>
    %341 = arith.mulf %340, %339 : vector<16x128xf32>
    %342 = math.tanh %341 : vector<16x128xf32>
    %cst_133 = arith.constant 1.000000e+00 : f32
    %343 = vector.broadcast %cst_133 : f32 to vector<16x128xf32>
    %344 = arith.addf %342, %343 : vector<16x128xf32>
    %cst_134 = arith.constant 5.000000e-01 : f32
    %345 = vector.broadcast %cst_134 : f32 to vector<16x128xf32>
    %346 = arith.mulf %345, %344 : vector<16x128xf32>
    %347 = vector.extract_strided_slice %330 {offsets = [0, 256], sizes = [16, 128], strides = [1, 1]} : vector<16x512xf32> to vector<16x128xf32>
    %348 = math.tanh %347 : vector<16x128xf32>
    %349 = vector.extract_strided_slice %330 {offsets = [0, 384], sizes = [16, 128], strides = [1, 1]} : vector<16x512xf32> to vector<16x128xf32>
    %cst_135 = arith.constant 5.000000e-01 : f32
    %350 = vector.broadcast %cst_135 : f32 to vector<16x128xf32>
    %351 = arith.mulf %350, %349 : vector<16x128xf32>
    %352 = math.tanh %351 : vector<16x128xf32>
    %cst_136 = arith.constant 1.000000e+00 : f32
    %353 = vector.broadcast %cst_136 : f32 to vector<16x128xf32>
    %354 = arith.addf %352, %353 : vector<16x128xf32>
    %cst_137 = arith.constant 5.000000e-01 : f32
    %355 = vector.broadcast %cst_137 : f32 to vector<16x128xf32>
    %356 = arith.mulf %355, %354 : vector<16x128xf32>
    %357 = arith.mulf %346, %281 : vector<16x128xf32>
    %358 = arith.mulf %338, %348 : vector<16x128xf32>
    %359 = arith.addf %357, %358 : vector<16x128xf32>
    %360 = math.tanh %359 : vector<16x128xf32>
    %361 = arith.mulf %356, %360 : vector<16x128xf32>
    %362 = arith.truncf %326 : vector<16x128xf32> to vector<16x128xbf16>
    %c0_138 = arith.constant 0 : index
    %c0_139 = arith.constant 0 : index
    %363 = vector.load %arg5[%c0_138, %c0_139] : memref<128x512xbf16, #tpu.memory_space<vmem>>, vector<128x512xbf16>
    %cst_140 = arith.constant dense<0.000000e+00> : vector<16x512xf32>
    %364 = tpu.matmul %362, %363, %cst_140 {dimension_numbers = #tpu.dot_dimension_numbers<[1], [0], [0], [1], [0, 0, 1, 1], [], []>} : vector<16x128xbf16>, vector<128x512xbf16>, vector<16x512xf32> -> vector<16x512xf32>
    %c0_141 = arith.constant 0 : index
    %c0_142 = arith.constant 0 : index
    %365 = vector.load %arg7[%c0_141, %c0_142] : memref<1x512xf32, #tpu.memory_space<vmem>>, vector<1x512xf32>
    %366 = vector.broadcast %365 : vector<1x512xf32> to vector<16x512xf32>
    %367 = arith.addf %364, %366 : vector<16x512xf32>
    %368 = vector.extract_strided_slice %8 {offsets = [5, 0, 0], sizes = [1, 16, 512], strides = [1, 1, 1]} : vector<8x16x512xf32> to vector<1x16x512xf32>
    %369 = vector.shape_cast %368 : vector<1x16x512xf32> to vector<16x512xf32>
    %370 = arith.truncf %326 : vector<16x128xf32> to vector<16x128xbf16>
    %c0_143 = arith.constant 0 : index
    %c0_144 = arith.constant 0 : index
    %371 = vector.load %arg3[%c0_143, %c0_144] : memref<128x512xbf16, #tpu.memory_space<vmem>>, vector<128x512xbf16>
    %cst_145 = arith.constant dense<0.000000e+00> : vector<16x512xf32>
    %372 = tpu.matmul %370, %371, %cst_145 {dimension_numbers = #tpu.dot_dimension_numbers<[1], [0], [0], [1], [0, 0, 1, 1], [], []>} : vector<16x128xbf16>, vector<128x512xbf16>, vector<16x512xf32> -> vector<16x512xf32>
    %373 = arith.addf %369, %372 : vector<16x512xf32>
    %374 = vector.extract_strided_slice %373 {offsets = [0, 0], sizes = [16, 128], strides = [1, 1]} : vector<16x512xf32> to vector<16x128xf32>
    %cst_146 = arith.constant 5.000000e-01 : f32
    %375 = vector.broadcast %cst_146 : f32 to vector<16x128xf32>
    %376 = arith.mulf %375, %374 : vector<16x128xf32>
    %377 = math.tanh %376 : vector<16x128xf32>
    %cst_147 = arith.constant 1.000000e+00 : f32
    %378 = vector.broadcast %cst_147 : f32 to vector<16x128xf32>
    %379 = arith.addf %377, %378 : vector<16x128xf32>
    %cst_148 = arith.constant 5.000000e-01 : f32
    %380 = vector.broadcast %cst_148 : f32 to vector<16x128xf32>
    %381 = arith.mulf %380, %379 : vector<16x128xf32>
    %382 = vector.extract_strided_slice %373 {offsets = [0, 128], sizes = [16, 128], strides = [1, 1]} : vector<16x512xf32> to vector<16x128xf32>
    %cst_149 = arith.constant 5.000000e-01 : f32
    %383 = vector.broadcast %cst_149 : f32 to vector<16x128xf32>
    %384 = arith.mulf %383, %382 : vector<16x128xf32>
    %385 = math.tanh %384 : vector<16x128xf32>
    %cst_150 = arith.constant 1.000000e+00 : f32
    %386 = vector.broadcast %cst_150 : f32 to vector<16x128xf32>
    %387 = arith.addf %385, %386 : vector<16x128xf32>
    %cst_151 = arith.constant 5.000000e-01 : f32
    %388 = vector.broadcast %cst_151 : f32 to vector<16x128xf32>
    %389 = arith.mulf %388, %387 : vector<16x128xf32>
    %390 = vector.extract_strided_slice %373 {offsets = [0, 256], sizes = [16, 128], strides = [1, 1]} : vector<16x512xf32> to vector<16x128xf32>
    %391 = math.tanh %390 : vector<16x128xf32>
    %392 = vector.extract_strided_slice %373 {offsets = [0, 384], sizes = [16, 128], strides = [1, 1]} : vector<16x512xf32> to vector<16x128xf32>
    %cst_152 = arith.constant 5.000000e-01 : f32
    %393 = vector.broadcast %cst_152 : f32 to vector<16x128xf32>
    %394 = arith.mulf %393, %392 : vector<16x128xf32>
    %395 = math.tanh %394 : vector<16x128xf32>
    %cst_153 = arith.constant 1.000000e+00 : f32
    %396 = vector.broadcast %cst_153 : f32 to vector<16x128xf32>
    %397 = arith.addf %395, %396 : vector<16x128xf32>
    %cst_154 = arith.constant 5.000000e-01 : f32
    %398 = vector.broadcast %cst_154 : f32 to vector<16x128xf32>
    %399 = arith.mulf %398, %397 : vector<16x128xf32>
    %400 = arith.mulf %389, %324 : vector<16x128xf32>
    %401 = arith.mulf %381, %391 : vector<16x128xf32>
    %402 = arith.addf %400, %401 : vector<16x128xf32>
    %403 = math.tanh %402 : vector<16x128xf32>
    %404 = arith.mulf %399, %403 : vector<16x128xf32>
    %405 = arith.truncf %361 : vector<16x128xf32> to vector<16x128xbf16>
    %c0_155 = arith.constant 0 : index
    %c0_156 = arith.constant 0 : index
    %406 = vector.load %arg6[%c0_155, %c0_156] : memref<128x512xbf16, #tpu.memory_space<vmem>>, vector<128x512xbf16>
    %cst_157 = arith.constant dense<0.000000e+00> : vector<16x512xf32>
    %407 = tpu.matmul %405, %406, %cst_157 {dimension_numbers = #tpu.dot_dimension_numbers<[1], [0], [0], [1], [0, 0, 1, 1], [], []>} : vector<16x128xbf16>, vector<128x512xbf16>, vector<16x512xf32> -> vector<16x512xf32>
    %408 = arith.addf %367, %407 : vector<16x512xf32>
    %409 = vector.extract_strided_slice %408 {offsets = [0, 0], sizes = [16, 128], strides = [1, 1]} : vector<16x512xf32> to vector<16x128xf32>
    %cst_158 = arith.constant 5.000000e-01 : f32
    %410 = vector.broadcast %cst_158 : f32 to vector<16x128xf32>
    %411 = arith.mulf %410, %409 : vector<16x128xf32>
    %412 = math.tanh %411 : vector<16x128xf32>
    %cst_159 = arith.constant 1.000000e+00 : f32
    %413 = vector.broadcast %cst_159 : f32 to vector<16x128xf32>
    %414 = arith.addf %412, %413 : vector<16x128xf32>
    %cst_160 = arith.constant 5.000000e-01 : f32
    %415 = vector.broadcast %cst_160 : f32 to vector<16x128xf32>
    %416 = arith.mulf %415, %414 : vector<16x128xf32>
    %417 = vector.extract_strided_slice %408 {offsets = [0, 128], sizes = [16, 128], strides = [1, 1]} : vector<16x512xf32> to vector<16x128xf32>
    %cst_161 = arith.constant 5.000000e-01 : f32
    %418 = vector.broadcast %cst_161 : f32 to vector<16x128xf32>
    %419 = arith.mulf %418, %417 : vector<16x128xf32>
    %420 = math.tanh %419 : vector<16x128xf32>
    %cst_162 = arith.constant 1.000000e+00 : f32
    %421 = vector.broadcast %cst_162 : f32 to vector<16x128xf32>
    %422 = arith.addf %420, %421 : vector<16x128xf32>
    %cst_163 = arith.constant 5.000000e-01 : f32
    %423 = vector.broadcast %cst_163 : f32 to vector<16x128xf32>
    %424 = arith.mulf %423, %422 : vector<16x128xf32>
    %425 = vector.extract_strided_slice %408 {offsets = [0, 256], sizes = [16, 128], strides = [1, 1]} : vector<16x512xf32> to vector<16x128xf32>
    %426 = math.tanh %425 : vector<16x128xf32>
    %427 = vector.extract_strided_slice %408 {offsets = [0, 384], sizes = [16, 128], strides = [1, 1]} : vector<16x512xf32> to vector<16x128xf32>
    %cst_164 = arith.constant 5.000000e-01 : f32
    %428 = vector.broadcast %cst_164 : f32 to vector<16x128xf32>
    %429 = arith.mulf %428, %427 : vector<16x128xf32>
    %430 = math.tanh %429 : vector<16x128xf32>
    %cst_165 = arith.constant 1.000000e+00 : f32
    %431 = vector.broadcast %cst_165 : f32 to vector<16x128xf32>
    %432 = arith.addf %430, %431 : vector<16x128xf32>
    %cst_166 = arith.constant 5.000000e-01 : f32
    %433 = vector.broadcast %cst_166 : f32 to vector<16x128xf32>
    %434 = arith.mulf %433, %432 : vector<16x128xf32>
    %435 = arith.mulf %424, %359 : vector<16x128xf32>
    %436 = arith.mulf %416, %426 : vector<16x128xf32>
    %437 = arith.addf %435, %436 : vector<16x128xf32>
    %438 = math.tanh %437 : vector<16x128xf32>
    %439 = arith.mulf %434, %438 : vector<16x128xf32>
    %440 = arith.truncf %404 : vector<16x128xf32> to vector<16x128xbf16>
    %c0_167 = arith.constant 0 : index
    %c0_168 = arith.constant 0 : index
    %441 = vector.load %arg5[%c0_167, %c0_168] : memref<128x512xbf16, #tpu.memory_space<vmem>>, vector<128x512xbf16>
    %cst_169 = arith.constant dense<0.000000e+00> : vector<16x512xf32>
    %442 = tpu.matmul %440, %441, %cst_169 {dimension_numbers = #tpu.dot_dimension_numbers<[1], [0], [0], [1], [0, 0, 1, 1], [], []>} : vector<16x128xbf16>, vector<128x512xbf16>, vector<16x512xf32> -> vector<16x512xf32>
    %c0_170 = arith.constant 0 : index
    %c0_171 = arith.constant 0 : index
    %443 = vector.load %arg7[%c0_170, %c0_171] : memref<1x512xf32, #tpu.memory_space<vmem>>, vector<1x512xf32>
    %444 = vector.broadcast %443 : vector<1x512xf32> to vector<16x512xf32>
    %445 = arith.addf %442, %444 : vector<16x512xf32>
    %446 = vector.extract_strided_slice %8 {offsets = [6, 0, 0], sizes = [1, 16, 512], strides = [1, 1, 1]} : vector<8x16x512xf32> to vector<1x16x512xf32>
    %447 = vector.shape_cast %446 : vector<1x16x512xf32> to vector<16x512xf32>
    %448 = arith.truncf %404 : vector<16x128xf32> to vector<16x128xbf16>
    %c0_172 = arith.constant 0 : index
    %c0_173 = arith.constant 0 : index
    %449 = vector.load %arg3[%c0_172, %c0_173] : memref<128x512xbf16, #tpu.memory_space<vmem>>, vector<128x512xbf16>
    %cst_174 = arith.constant dense<0.000000e+00> : vector<16x512xf32>
    %450 = tpu.matmul %448, %449, %cst_174 {dimension_numbers = #tpu.dot_dimension_numbers<[1], [0], [0], [1], [0, 0, 1, 1], [], []>} : vector<16x128xbf16>, vector<128x512xbf16>, vector<16x512xf32> -> vector<16x512xf32>
    %451 = arith.addf %447, %450 : vector<16x512xf32>
    %452 = vector.extract_strided_slice %451 {offsets = [0, 0], sizes = [16, 128], strides = [1, 1]} : vector<16x512xf32> to vector<16x128xf32>
    %cst_175 = arith.constant 5.000000e-01 : f32
    %453 = vector.broadcast %cst_175 : f32 to vector<16x128xf32>
    %454 = arith.mulf %453, %452 : vector<16x128xf32>
    %455 = math.tanh %454 : vector<16x128xf32>
    %cst_176 = arith.constant 1.000000e+00 : f32
    %456 = vector.broadcast %cst_176 : f32 to vector<16x128xf32>
    %457 = arith.addf %455, %456 : vector<16x128xf32>
    %cst_177 = arith.constant 5.000000e-01 : f32
    %458 = vector.broadcast %cst_177 : f32 to vector<16x128xf32>
    %459 = arith.mulf %458, %457 : vector<16x128xf32>
    %460 = vector.extract_strided_slice %451 {offsets = [0, 128], sizes = [16, 128], strides = [1, 1]} : vector<16x512xf32> to vector<16x128xf32>
    %cst_178 = arith.constant 5.000000e-01 : f32
    %461 = vector.broadcast %cst_178 : f32 to vector<16x128xf32>
    %462 = arith.mulf %461, %460 : vector<16x128xf32>
    %463 = math.tanh %462 : vector<16x128xf32>
    %cst_179 = arith.constant 1.000000e+00 : f32
    %464 = vector.broadcast %cst_179 : f32 to vector<16x128xf32>
    %465 = arith.addf %463, %464 : vector<16x128xf32>
    %cst_180 = arith.constant 5.000000e-01 : f32
    %466 = vector.broadcast %cst_180 : f32 to vector<16x128xf32>
    %467 = arith.mulf %466, %465 : vector<16x128xf32>
    %468 = vector.extract_strided_slice %451 {offsets = [0, 256], sizes = [16, 128], strides = [1, 1]} : vector<16x512xf32> to vector<16x128xf32>
    %469 = math.tanh %468 : vector<16x128xf32>
    %470 = vector.extract_strided_slice %451 {offsets = [0, 384], sizes = [16, 128], strides = [1, 1]} : vector<16x512xf32> to vector<16x128xf32>
    %cst_181 = arith.constant 5.000000e-01 : f32
    %471 = vector.broadcast %cst_181 : f32 to vector<16x128xf32>
    %472 = arith.mulf %471, %470 : vector<16x128xf32>
    %473 = math.tanh %472 : vector<16x128xf32>
    %cst_182 = arith.constant 1.000000e+00 : f32
    %474 = vector.broadcast %cst_182 : f32 to vector<16x128xf32>
    %475 = arith.addf %473, %474 : vector<16x128xf32>
    %cst_183 = arith.constant 5.000000e-01 : f32
    %476 = vector.broadcast %cst_183 : f32 to vector<16x128xf32>
    %477 = arith.mulf %476, %475 : vector<16x128xf32>
    %478 = arith.mulf %467, %402 : vector<16x128xf32>
    %479 = arith.mulf %459, %469 : vector<16x128xf32>
    %480 = arith.addf %478, %479 : vector<16x128xf32>
    %481 = math.tanh %480 : vector<16x128xf32>
    %482 = arith.mulf %477, %481 : vector<16x128xf32>
    %483 = arith.truncf %439 : vector<16x128xf32> to vector<16x128xbf16>
    %c0_184 = arith.constant 0 : index
    %c0_185 = arith.constant 0 : index
    %484 = vector.load %arg6[%c0_184, %c0_185] : memref<128x512xbf16, #tpu.memory_space<vmem>>, vector<128x512xbf16>
    %cst_186 = arith.constant dense<0.000000e+00> : vector<16x512xf32>
    %485 = tpu.matmul %483, %484, %cst_186 {dimension_numbers = #tpu.dot_dimension_numbers<[1], [0], [0], [1], [0, 0, 1, 1], [], []>} : vector<16x128xbf16>, vector<128x512xbf16>, vector<16x512xf32> -> vector<16x512xf32>
    %486 = arith.addf %445, %485 : vector<16x512xf32>
    %487 = vector.extract_strided_slice %486 {offsets = [0, 0], sizes = [16, 128], strides = [1, 1]} : vector<16x512xf32> to vector<16x128xf32>
    %cst_187 = arith.constant 5.000000e-01 : f32
    %488 = vector.broadcast %cst_187 : f32 to vector<16x128xf32>
    %489 = arith.mulf %488, %487 : vector<16x128xf32>
    %490 = math.tanh %489 : vector<16x128xf32>
    %cst_188 = arith.constant 1.000000e+00 : f32
    %491 = vector.broadcast %cst_188 : f32 to vector<16x128xf32>
    %492 = arith.addf %490, %491 : vector<16x128xf32>
    %cst_189 = arith.constant 5.000000e-01 : f32
    %493 = vector.broadcast %cst_189 : f32 to vector<16x128xf32>
    %494 = arith.mulf %493, %492 : vector<16x128xf32>
    %495 = vector.extract_strided_slice %486 {offsets = [0, 128], sizes = [16, 128], strides = [1, 1]} : vector<16x512xf32> to vector<16x128xf32>
    %cst_190 = arith.constant 5.000000e-01 : f32
    %496 = vector.broadcast %cst_190 : f32 to vector<16x128xf32>
    %497 = arith.mulf %496, %495 : vector<16x128xf32>
    %498 = math.tanh %497 : vector<16x128xf32>
    %cst_191 = arith.constant 1.000000e+00 : f32
    %499 = vector.broadcast %cst_191 : f32 to vector<16x128xf32>
    %500 = arith.addf %498, %499 : vector<16x128xf32>
    %cst_192 = arith.constant 5.000000e-01 : f32
    %501 = vector.broadcast %cst_192 : f32 to vector<16x128xf32>
    %502 = arith.mulf %501, %500 : vector<16x128xf32>
    %503 = vector.extract_strided_slice %486 {offsets = [0, 256], sizes = [16, 128], strides = [1, 1]} : vector<16x512xf32> to vector<16x128xf32>
    %504 = math.tanh %503 : vector<16x128xf32>
    %505 = vector.extract_strided_slice %486 {offsets = [0, 384], sizes = [16, 128], strides = [1, 1]} : vector<16x512xf32> to vector<16x128xf32>
    %cst_193 = arith.constant 5.000000e-01 : f32
    %506 = vector.broadcast %cst_193 : f32 to vector<16x128xf32>
    %507 = arith.mulf %506, %505 : vector<16x128xf32>
    %508 = math.tanh %507 : vector<16x128xf32>
    %cst_194 = arith.constant 1.000000e+00 : f32
    %509 = vector.broadcast %cst_194 : f32 to vector<16x128xf32>
    %510 = arith.addf %508, %509 : vector<16x128xf32>
    %cst_195 = arith.constant 5.000000e-01 : f32
    %511 = vector.broadcast %cst_195 : f32 to vector<16x128xf32>
    %512 = arith.mulf %511, %510 : vector<16x128xf32>
    %513 = arith.mulf %502, %437 : vector<16x128xf32>
    %514 = arith.mulf %494, %504 : vector<16x128xf32>
    %515 = arith.addf %513, %514 : vector<16x128xf32>
    %516 = math.tanh %515 : vector<16x128xf32>
    %517 = arith.mulf %512, %516 : vector<16x128xf32>
    %518 = arith.truncf %482 : vector<16x128xf32> to vector<16x128xbf16>
    %c0_196 = arith.constant 0 : index
    %c0_197 = arith.constant 0 : index
    %519 = vector.load %arg5[%c0_196, %c0_197] : memref<128x512xbf16, #tpu.memory_space<vmem>>, vector<128x512xbf16>
    %cst_198 = arith.constant dense<0.000000e+00> : vector<16x512xf32>
    %520 = tpu.matmul %518, %519, %cst_198 {dimension_numbers = #tpu.dot_dimension_numbers<[1], [0], [0], [1], [0, 0, 1, 1], [], []>} : vector<16x128xbf16>, vector<128x512xbf16>, vector<16x512xf32> -> vector<16x512xf32>
    %c0_199 = arith.constant 0 : index
    %c0_200 = arith.constant 0 : index
    %521 = vector.load %arg7[%c0_199, %c0_200] : memref<1x512xf32, #tpu.memory_space<vmem>>, vector<1x512xf32>
    %522 = vector.broadcast %521 : vector<1x512xf32> to vector<16x512xf32>
    %523 = arith.addf %520, %522 : vector<16x512xf32>
    %524 = vector.extract_strided_slice %8 {offsets = [7, 0, 0], sizes = [1, 16, 512], strides = [1, 1, 1]} : vector<8x16x512xf32> to vector<1x16x512xf32>
    %525 = vector.shape_cast %524 : vector<1x16x512xf32> to vector<16x512xf32>
    %526 = arith.truncf %482 : vector<16x128xf32> to vector<16x128xbf16>
    %c0_201 = arith.constant 0 : index
    %c0_202 = arith.constant 0 : index
    %527 = vector.load %arg3[%c0_201, %c0_202] : memref<128x512xbf16, #tpu.memory_space<vmem>>, vector<128x512xbf16>
    %cst_203 = arith.constant dense<0.000000e+00> : vector<16x512xf32>
    %528 = tpu.matmul %526, %527, %cst_203 {dimension_numbers = #tpu.dot_dimension_numbers<[1], [0], [0], [1], [0, 0, 1, 1], [], []>} : vector<16x128xbf16>, vector<128x512xbf16>, vector<16x512xf32> -> vector<16x512xf32>
    %529 = arith.addf %525, %528 : vector<16x512xf32>
    %530 = vector.extract_strided_slice %529 {offsets = [0, 0], sizes = [16, 128], strides = [1, 1]} : vector<16x512xf32> to vector<16x128xf32>
    %cst_204 = arith.constant 5.000000e-01 : f32
    %531 = vector.broadcast %cst_204 : f32 to vector<16x128xf32>
    %532 = arith.mulf %531, %530 : vector<16x128xf32>
    %533 = math.tanh %532 : vector<16x128xf32>
    %cst_205 = arith.constant 1.000000e+00 : f32
    %534 = vector.broadcast %cst_205 : f32 to vector<16x128xf32>
    %535 = arith.addf %533, %534 : vector<16x128xf32>
    %cst_206 = arith.constant 5.000000e-01 : f32
    %536 = vector.broadcast %cst_206 : f32 to vector<16x128xf32>
    %537 = arith.mulf %536, %535 : vector<16x128xf32>
    %538 = vector.extract_strided_slice %529 {offsets = [0, 128], sizes = [16, 128], strides = [1, 1]} : vector<16x512xf32> to vector<16x128xf32>
    %cst_207 = arith.constant 5.000000e-01 : f32
    %539 = vector.broadcast %cst_207 : f32 to vector<16x128xf32>
    %540 = arith.mulf %539, %538 : vector<16x128xf32>
    %541 = math.tanh %540 : vector<16x128xf32>
    %cst_208 = arith.constant 1.000000e+00 : f32
    %542 = vector.broadcast %cst_208 : f32 to vector<16x128xf32>
    %543 = arith.addf %541, %542 : vector<16x128xf32>
    %cst_209 = arith.constant 5.000000e-01 : f32
    %544 = vector.broadcast %cst_209 : f32 to vector<16x128xf32>
    %545 = arith.mulf %544, %543 : vector<16x128xf32>
    %546 = vector.extract_strided_slice %529 {offsets = [0, 256], sizes = [16, 128], strides = [1, 1]} : vector<16x512xf32> to vector<16x128xf32>
    %547 = math.tanh %546 : vector<16x128xf32>
    %548 = vector.extract_strided_slice %529 {offsets = [0, 384], sizes = [16, 128], strides = [1, 1]} : vector<16x512xf32> to vector<16x128xf32>
    %cst_210 = arith.constant 5.000000e-01 : f32
    %549 = vector.broadcast %cst_210 : f32 to vector<16x128xf32>
    %550 = arith.mulf %549, %548 : vector<16x128xf32>
    %551 = math.tanh %550 : vector<16x128xf32>
    %cst_211 = arith.constant 1.000000e+00 : f32
    %552 = vector.broadcast %cst_211 : f32 to vector<16x128xf32>
    %553 = arith.addf %551, %552 : vector<16x128xf32>
    %cst_212 = arith.constant 5.000000e-01 : f32
    %554 = vector.broadcast %cst_212 : f32 to vector<16x128xf32>
    %555 = arith.mulf %554, %553 : vector<16x128xf32>
    %556 = arith.mulf %545, %480 : vector<16x128xf32>
    %557 = arith.mulf %537, %547 : vector<16x128xf32>
    %558 = arith.addf %556, %557 : vector<16x128xf32>
    %559 = math.tanh %558 : vector<16x128xf32>
    %560 = arith.mulf %555, %559 : vector<16x128xf32>
    %561 = arith.truncf %517 : vector<16x128xf32> to vector<16x128xbf16>
    %c0_213 = arith.constant 0 : index
    %c0_214 = arith.constant 0 : index
    %562 = vector.load %arg6[%c0_213, %c0_214] : memref<128x512xbf16, #tpu.memory_space<vmem>>, vector<128x512xbf16>
    %cst_215 = arith.constant dense<0.000000e+00> : vector<16x512xf32>
    %563 = tpu.matmul %561, %562, %cst_215 {dimension_numbers = #tpu.dot_dimension_numbers<[1], [0], [0], [1], [0, 0, 1, 1], [], []>} : vector<16x128xbf16>, vector<128x512xbf16>, vector<16x512xf32> -> vector<16x512xf32>
    %564 = arith.addf %523, %563 : vector<16x512xf32>
    %565 = vector.extract_strided_slice %564 {offsets = [0, 0], sizes = [16, 128], strides = [1, 1]} : vector<16x512xf32> to vector<16x128xf32>
    %cst_216 = arith.constant 5.000000e-01 : f32
    %566 = vector.broadcast %cst_216 : f32 to vector<16x128xf32>
    %567 = arith.mulf %566, %565 : vector<16x128xf32>
    %568 = math.tanh %567 : vector<16x128xf32>
    %cst_217 = arith.constant 1.000000e+00 : f32
    %569 = vector.broadcast %cst_217 : f32 to vector<16x128xf32>
    %570 = arith.addf %568, %569 : vector<16x128xf32>
    %cst_218 = arith.constant 5.000000e-01 : f32
    %571 = vector.broadcast %cst_218 : f32 to vector<16x128xf32>
    %572 = arith.mulf %571, %570 : vector<16x128xf32>
    %573 = vector.extract_strided_slice %564 {offsets = [0, 128], sizes = [16, 128], strides = [1, 1]} : vector<16x512xf32> to vector<16x128xf32>
    %cst_219 = arith.constant 5.000000e-01 : f32
    %574 = vector.broadcast %cst_219 : f32 to vector<16x128xf32>
    %575 = arith.mulf %574, %573 : vector<16x128xf32>
    %576 = math.tanh %575 : vector<16x128xf32>
    %cst_220 = arith.constant 1.000000e+00 : f32
    %577 = vector.broadcast %cst_220 : f32 to vector<16x128xf32>
    %578 = arith.addf %576, %577 : vector<16x128xf32>
    %cst_221 = arith.constant 5.000000e-01 : f32
    %579 = vector.broadcast %cst_221 : f32 to vector<16x128xf32>
    %580 = arith.mulf %579, %578 : vector<16x128xf32>
    %581 = vector.extract_strided_slice %564 {offsets = [0, 256], sizes = [16, 128], strides = [1, 1]} : vector<16x512xf32> to vector<16x128xf32>
    %582 = math.tanh %581 : vector<16x128xf32>
    %583 = vector.extract_strided_slice %564 {offsets = [0, 384], sizes = [16, 128], strides = [1, 1]} : vector<16x512xf32> to vector<16x128xf32>
    %cst_222 = arith.constant 5.000000e-01 : f32
    %584 = vector.broadcast %cst_222 : f32 to vector<16x128xf32>
    %585 = arith.mulf %584, %583 : vector<16x128xf32>
    %586 = math.tanh %585 : vector<16x128xf32>
    %cst_223 = arith.constant 1.000000e+00 : f32
    %587 = vector.broadcast %cst_223 : f32 to vector<16x128xf32>
    %588 = arith.addf %586, %587 : vector<16x128xf32>
    %cst_224 = arith.constant 5.000000e-01 : f32
    %589 = vector.broadcast %cst_224 : f32 to vector<16x128xf32>
    %590 = arith.mulf %589, %588 : vector<16x128xf32>
    %591 = arith.mulf %580, %515 : vector<16x128xf32>
    %592 = arith.mulf %572, %582 : vector<16x128xf32>
    %593 = arith.addf %591, %592 : vector<16x128xf32>
    %594 = math.tanh %593 : vector<16x128xf32>
    %595 = arith.mulf %590, %594 : vector<16x128xf32>
    %596 = arith.truncf %560 : vector<16x128xf32> to vector<16x128xbf16>
    %c0_225 = arith.constant 0 : index
    %c0_226 = arith.constant 0 : index
    %597 = vector.load %arg5[%c0_225, %c0_226] : memref<128x512xbf16, #tpu.memory_space<vmem>>, vector<128x512xbf16>
    %cst_227 = arith.constant dense<0.000000e+00> : vector<16x512xf32>
    %598 = tpu.matmul %596, %597, %cst_227 {dimension_numbers = #tpu.dot_dimension_numbers<[1], [0], [0], [1], [0, 0, 1, 1], [], []>} : vector<16x128xbf16>, vector<128x512xbf16>, vector<16x512xf32> -> vector<16x512xf32>
    %c0_228 = arith.constant 0 : index
    %c0_229 = arith.constant 0 : index
    %599 = vector.load %arg7[%c0_228, %c0_229] : memref<1x512xf32, #tpu.memory_space<vmem>>, vector<1x512xf32>
    %600 = vector.broadcast %599 : vector<1x512xf32> to vector<16x512xf32>
    %601 = arith.addf %598, %600 : vector<16x512xf32>
    %602 = arith.truncf %595 : vector<16x128xf32> to vector<16x128xbf16>
    %c0_230 = arith.constant 0 : index
    %c0_231 = arith.constant 0 : index
    %603 = vector.load %arg6[%c0_230, %c0_231] : memref<128x512xbf16, #tpu.memory_space<vmem>>, vector<128x512xbf16>
    %cst_232 = arith.constant dense<0.000000e+00> : vector<16x512xf32>
    %604 = tpu.matmul %602, %603, %cst_232 {dimension_numbers = #tpu.dot_dimension_numbers<[1], [0], [0], [1], [0, 0, 1, 1], [], []>} : vector<16x128xbf16>, vector<128x512xbf16>, vector<16x512xf32> -> vector<16x512xf32>
    %605 = arith.addf %601, %604 : vector<16x512xf32>
    %606 = vector.extract_strided_slice %605 {offsets = [0, 0], sizes = [16, 128], strides = [1, 1]} : vector<16x512xf32> to vector<16x128xf32>
    %cst_233 = arith.constant 5.000000e-01 : f32
    %607 = vector.broadcast %cst_233 : f32 to vector<16x128xf32>
    %608 = arith.mulf %607, %606 : vector<16x128xf32>
    %609 = math.tanh %608 : vector<16x128xf32>
    %cst_234 = arith.constant 1.000000e+00 : f32
    %610 = vector.broadcast %cst_234 : f32 to vector<16x128xf32>
    %611 = arith.addf %609, %610 : vector<16x128xf32>
    %cst_235 = arith.constant 5.000000e-01 : f32
    %612 = vector.broadcast %cst_235 : f32 to vector<16x128xf32>
    %613 = arith.mulf %612, %611 : vector<16x128xf32>
    %614 = vector.extract_strided_slice %605 {offsets = [0, 128], sizes = [16, 128], strides = [1, 1]} : vector<16x512xf32> to vector<16x128xf32>
    %cst_236 = arith.constant 5.000000e-01 : f32
    %615 = vector.broadcast %cst_236 : f32 to vector<16x128xf32>
    %616 = arith.mulf %615, %614 : vector<16x128xf32>
    %617 = math.tanh %616 : vector<16x128xf32>
    %cst_237 = arith.constant 1.000000e+00 : f32
    %618 = vector.broadcast %cst_237 : f32 to vector<16x128xf32>
    %619 = arith.addf %617, %618 : vector<16x128xf32>
    %cst_238 = arith.constant 5.000000e-01 : f32
    %620 = vector.broadcast %cst_238 : f32 to vector<16x128xf32>
    %621 = arith.mulf %620, %619 : vector<16x128xf32>
    %622 = vector.extract_strided_slice %605 {offsets = [0, 256], sizes = [16, 128], strides = [1, 1]} : vector<16x512xf32> to vector<16x128xf32>
    %623 = math.tanh %622 : vector<16x128xf32>
    %624 = vector.extract_strided_slice %605 {offsets = [0, 384], sizes = [16, 128], strides = [1, 1]} : vector<16x512xf32> to vector<16x128xf32>
    %cst_239 = arith.constant 5.000000e-01 : f32
    %625 = vector.broadcast %cst_239 : f32 to vector<16x128xf32>
    %626 = arith.mulf %625, %624 : vector<16x128xf32>
    %627 = math.tanh %626 : vector<16x128xf32>
    %cst_240 = arith.constant 1.000000e+00 : f32
    %628 = vector.broadcast %cst_240 : f32 to vector<16x128xf32>
    %629 = arith.addf %627, %628 : vector<16x128xf32>
    %cst_241 = arith.constant 5.000000e-01 : f32
    %630 = vector.broadcast %cst_241 : f32 to vector<16x128xf32>
    %631 = arith.mulf %630, %629 : vector<16x128xf32>
    %632 = arith.mulf %621, %593 : vector<16x128xf32>
    %633 = arith.mulf %613, %623 : vector<16x128xf32>
    %634 = arith.addf %632, %633 : vector<16x128xf32>
    %635 = math.tanh %634 : vector<16x128xf32>
    %636 = arith.mulf %631, %635 : vector<16x128xf32>
    %cst_242 = arith.constant dense<0.000000e+00> : vector<16xf32>
    %637 = vector.multi_reduction <add>, %636, %cst_242 [1] : vector<16x128xf32> to vector<16xf32>
    %638 = vector.shape_cast %637 : vector<16xf32> to vector<16x1xf32>
    %cst_243 = arith.constant 1.280000e+02 : f32
    %639 = vector.broadcast %cst_243 : f32 to vector<16x1xf32>
    %640 = arith.divf %638, %639 : vector<16x1xf32>
    %641 = vector.broadcast %640 : vector<16x1xf32> to vector<16x128xf32>
    %642 = arith.subf %636, %641 : vector<16x128xf32>
    %643 = arith.mulf %642, %642 : vector<16x128xf32>
    %cst_244 = arith.constant dense<0.000000e+00> : vector<16xf32>
    %644 = vector.multi_reduction <add>, %643, %cst_244 [1] : vector<16x128xf32> to vector<16xf32>
    %645 = vector.shape_cast %644 : vector<16xf32> to vector<16x1xf32>
    %cst_245 = arith.constant 1.280000e+02 : f32
    %646 = vector.broadcast %cst_245 : f32 to vector<16x1xf32>
    %647 = arith.divf %645, %646 : vector<16x1xf32>
    %648 = vector.broadcast %640 : vector<16x1xf32> to vector<16x128xf32>
    %649 = arith.subf %636, %648 : vector<16x128xf32>
    %cst_246 = arith.constant 9.99999974E-6 : f32
    %650 = vector.broadcast %cst_246 : f32 to vector<16x1xf32>
    %651 = arith.addf %647, %650 : vector<16x1xf32>
    %652 = math.rsqrt %651 : vector<16x1xf32>
    %653 = vector.broadcast %652 : vector<16x1xf32> to vector<16x128xf32>
    %654 = arith.mulf %649, %653 : vector<16x128xf32>
    %c0_247 = arith.constant 0 : index
    %c0_248 = arith.constant 0 : index
    %655 = vector.load %arg8[%c0_247, %c0_248] : memref<1x128xf32, #tpu.memory_space<vmem>>, vector<1x128xf32>
    %656 = vector.broadcast %655 : vector<1x128xf32> to vector<16x128xf32>
    %657 = arith.mulf %654, %656 : vector<16x128xf32>
    %c0_249 = arith.constant 0 : index
    %c0_250 = arith.constant 0 : index
    %658 = vector.load %arg9[%c0_249, %c0_250] : memref<1x128xf32, #tpu.memory_space<vmem>>, vector<1x128xf32>
    %659 = vector.broadcast %658 : vector<1x128xf32> to vector<16x128xf32>
    %660 = arith.addf %657, %659 : vector<16x128xf32>
    %c0_251 = arith.constant 0 : index
    %c0_252 = arith.constant 0 : index
    %661 = vector.load %arg10[%c0_251, %c0_252] : memref<128x128xf32, #tpu.memory_space<vmem>>, vector<128x128xf32>
    %cst_253 = arith.constant dense<0.000000e+00> : vector<16x128xf32>
    %662 = tpu.matmul %660, %661, %cst_253 {dimension_numbers = #tpu.dot_dimension_numbers<[1], [0], [0], [1], [0, 0, 1, 1], [], []>} : vector<16x128xf32>, vector<128x128xf32>, vector<16x128xf32> -> vector<16x128xf32>
    %c0_254 = arith.constant 0 : index
    %c0_255 = arith.constant 0 : index
    %663 = vector.load %arg11[%c0_254, %c0_255] : memref<1x128xf32, #tpu.memory_space<vmem>>, vector<1x128xf32>
    %664 = vector.broadcast %663 : vector<1x128xf32> to vector<16x128xf32>
    %665 = arith.addf %662, %664 : vector<16x128xf32>
    %cst_256 = arith.constant 0.000000e+00 : f32
    %666 = vector.broadcast %cst_256 : f32 to vector<16x128xf32>
    %667 = arith.maximumf %665, %666 : vector<16x128xf32>
    %c0_257 = arith.constant 0 : index
    %c0_258 = arith.constant 0 : index
    %668 = vector.load %arg12[%c0_257, %c0_258] : memref<128x128xf32, #tpu.memory_space<vmem>>, vector<128x128xf32>
    %cst_259 = arith.constant dense<0.000000e+00> : vector<16x128xf32>
    %669 = tpu.matmul %667, %668, %cst_259 {dimension_numbers = #tpu.dot_dimension_numbers<[1], [0], [0], [1], [0, 0, 1, 1], [], []>} : vector<16x128xf32>, vector<128x128xf32>, vector<16x128xf32> -> vector<16x128xf32>
    %c0_260 = arith.constant 0 : index
    %c0_261 = arith.constant 0 : index
    %670 = vector.load %arg13[%c0_260, %c0_261] : memref<1x128xf32, #tpu.memory_space<vmem>>, vector<1x128xf32>
    %671 = vector.broadcast %670 : vector<1x128xf32> to vector<16x128xf32>
    %672 = arith.addf %669, %671 : vector<16x128xf32>
    %c0_262 = arith.constant 0 : index
    %c0_263 = arith.constant 0 : index
    %673 = vector.load %arg14[%c0_262, %c0_263] : memref<16x128xf32, #tpu.memory_space<vmem>>, vector<16x128xf32>
    tpu.vector_store %arg14[%c0_262, %c0_263], %672 {strides = array<i32>} : memref<16x128xf32, #tpu.memory_space<vmem>>, vector<16x128xf32>,
    return
  }
  func.func @transform_0(%arg0: i32) -> (i32, i32, i32) {
    %c0_i32 = arith.constant 0 : i32
    %c0_i32_0 = arith.constant 0 : i32
    %c0_i32_1 = arith.constant 0 : i32
    return %c0_i32, %arg0, %c0_i32_0 : i32, i32, i32
  }
  func.func @transform_1(%arg0: i32) -> (i32, i32) {
    %c0_i32 = arith.constant 0 : i32
    %c0_i32_0 = arith.constant 0 : i32
    %c0_i32_1 = arith.constant 0 : i32
    return %c0_i32, %c0_i32_0 : i32, i32
  }
  func.func @transform_2(%arg0: i32) -> (i32, i32) {
    %c0_i32 = arith.constant 0 : i32
    %c0_i32_0 = arith.constant 0 : i32
    %c0_i32_1 = arith.constant 0 : i32
    return %c0_i32, %c0_i32_0 : i32, i32
  }
  func.func @transform_3(%arg0: i32) -> (i32, i32) {
    %c0_i32 = arith.constant 0 : i32
    %c0_i32_0 = arith.constant 0 : i32
    %c0_i32_1 = arith.constant 0 : i32
    return %c0_i32, %c0_i32_0 : i32, i32
  }
  func.func @transform_4(%arg0: i32) -> (i32, i32) {
    %c0_i32 = arith.constant 0 : i32
    %c0_i32_0 = arith.constant 0 : i32
    %c0_i32_1 = arith.constant 0 : i32
    return %c0_i32, %c0_i32_0 : i32, i32
  }
  func.func @transform_5(%arg0: i32) -> (i32, i32) {
    %c0_i32 = arith.constant 0 : i32
    %c0_i32_0 = arith.constant 0 : i32
    %c0_i32_1 = arith.constant 0 : i32
    return %c0_i32, %c0_i32_0 : i32, i32
  }
  func.func @transform_6(%arg0: i32) -> (i32, i32) {
    %c0_i32 = arith.constant 0 : i32
    %c0_i32_0 = arith.constant 0 : i32
    %c0_i32_1 = arith.constant 0 : i32
    return %c0_i32, %c0_i32_0 : i32, i32
  }
  func.func @transform_7(%arg0: i32) -> (i32, i32) {
    %c0_i32 = arith.constant 0 : i32
    %c0_i32_0 = arith.constant 0 : i32
    %c0_i32_1 = arith.constant 0 : i32
    return %c0_i32, %c0_i32_0 : i32, i32
  }
  func.func @transform_8(%arg0: i32) -> (i32, i32) {
    %c0_i32 = arith.constant 0 : i32
    %c0_i32_0 = arith.constant 0 : i32
    %c0_i32_1 = arith.constant 0 : i32
    return %c0_i32, %c0_i32_0 : i32, i32
  }
  func.func @transform_9(%arg0: i32) -> (i32, i32) {
    %c0_i32 = arith.constant 0 : i32
    %c0_i32_0 = arith.constant 0 : i32
    %c0_i32_1 = arith.constant 0 : i32
    return %c0_i32, %c0_i32_0 : i32, i32
  }
  func.func @transform_10(%arg0: i32) -> (i32, i32) {
    %c0_i32 = arith.constant 0 : i32
    %c0_i32_0 = arith.constant 0 : i32
    %c0_i32_1 = arith.constant 0 : i32
    return %c0_i32, %c0_i32_0 : i32, i32
  }
  func.func @transform_11(%arg0: i32) -> (i32, i32) {
    %c0_i32 = arith.constant 0 : i32
    %c0_i32_0 = arith.constant 0 : i32
    %c0_i32_1 = arith.constant 0 : i32
    return %c0_i32, %c0_i32_0 : i32, i32
  }
  func.func @transform_12(%arg0: i32) -> (i32, i32) {
    %c0_i32 = arith.constant 0 : i32
    %c0_i32_0 = arith.constant 0 : i32
    %c0_i32_1 = arith.constant 0 : i32
    return %c0_i32, %c0_i32_0 : i32, i32
  }
  func.func @transform_13(%arg0: i32) -> (i32, i32) {
    %c0_i32 = arith.constant 0 : i32
    %c0_i32_0 = arith.constant 0 : i32
    return %arg0, %c0_i32 : i32, i32
  }
}

</mosaic_0001>

<llo_original>
// kernel: tpu_custom_call.1
$region0: #{tpu_custom_call.1}
  #allocation0 [shape = 'u32[]', space=smem, size = 0x4, offset = 0x4, fixed_abs, tag = 'smem constant byte address 0x4 - core index']
  #allocation1 [shape = 'u32[144,128]{1,0:T(1,128)}', space=vmem, size = 0x12000, scoped, tag = 'internal scratch']
  %s0 = inlined_call_operand.hbm [shape: f32[8,16,16], index: 0, kind: input, shape index: {}]
  %s1 = inlined_call_operand.hbm [shape: bf16[16,512], index: 1, kind: input, shape index: {}]
  %s2 = inlined_call_operand.hbm [shape: bf16[128,512], index: 2, kind: input, shape index: {}]
  %s3 = inlined_call_operand.vmem [shape: f32[1,512], index: 3, kind: input, shape index: {}]
  %s4 = inlined_call_operand.hbm [shape: bf16[128,512], index: 4, kind: input, shape index: {}]
  %s5 = inlined_call_operand.hbm [shape: bf16[128,512], index: 5, kind: input, shape index: {}]
  %s6 = inlined_call_operand.vmem [shape: f32[1,512], index: 6, kind: input, shape index: {}]
  %s7 = inlined_call_operand.vmem [shape: f32[1,128], index: 7, kind: input, shape index: {}]
  %s8 = inlined_call_operand.vmem [shape: f32[1,128], index: 8, kind: input, shape index: {}]
  %s9 = inlined_call_operand.hbm [shape: f32[128,128], index: 9, kind: input, shape index: {}]
  %s10 = inlined_call_operand.vmem [shape: f32[1,128], index: 10, kind: input, shape index: {}]
  %s11 = inlined_call_operand.hbm [shape: f32[128,128], index: 11, kind: input, shape index: {}]
  %s12 = inlined_call_operand.vmem [shape: f32[1,128], index: 12, kind: input, shape index: {}]
  %s13 = inlined_call_operand.hbm [shape: f32[16,128], index: 13, kind: output, shape index: {}]
  %s14 = sld [smem:[#allocation0]]
  $region90: #{tpu_custom_call.1} parent=0
    _
  %s16 = ssub.s32 1, %s14
  %s17 = scalar_select 0, %s16, %s14
  $region1: #{tpu_custom_call.1} parent=0
    #allocation2 [shape = 'u8[65536]{0}', space=vmem, size = 0x10000, scoped, tag = 'input window, operand 0, single buffered']
    #allocation3 [shape = 's32[1]{0}', space=sflag, size = 0x4, scoped, tag = 'scoped memory for tpu_custom_call.1']
    #allocation4 [shape = 's32[1]{0}', space=sflag, size = 0x4, scoped, tag = 'scoped memory for tpu_custom_call.1']
    #allocation5 [shape = 'u8[16384]{0}', space=vmem, size = 0x4000, scoped, tag = 'input window, operand 1, single buffered']
    #allocation6 [shape = 's32[1]{0}', space=sflag, size = 0x4, scoped, tag = 'scoped memory for tpu_custom_call.1']
    #allocation7 [shape = 'u8[131072]{0}', space=vmem, size = 0x20000, scoped, tag = 'input window, operand 2, single buffered']
    #allocation8 [shape = 'u8[131072]{0}', space=vmem, size = 0x20000, scoped, tag = 'input window, operand 4, single buffered']
    #allocation9 [shape = 's32[1]{0}', space=sflag, size = 0x4, scoped, tag = 'scoped memory for tpu_custom_call.1']
    #allocation10 [shape = 'u8[131072]{0}', space=vmem, size = 0x20000, scoped, tag = 'input window, operand 5, single buffered']
    #allocation11 [shape = 'u8[65536]{0}', space=vmem, size = 0x10000, scoped, tag = 'input window, operand 9, single buffered']
    #allocation12 [shape = 's32[1]{0}', space=sflag, size = 0x4, scoped, tag = 'scoped memory for tpu_custom_call.1']
    #allocation13 [shape = 'u8[65536]{0}', space=vmem, size = 0x10000, scoped, tag = 'input window, operand 11, single buffered']
    #allocation14 [shape = 'u8[8192]{0}', space=vmem, size = 0x2000, scoped, tag = 'output window, operand 0, single buffered']
    %18 = vsyncpa [#allocation3], 0
    %19 = vsyncpa [#allocation6], 0
    %20 = vsyncpa [#allocation9], 0
    %21 = vsyncpa [#allocation12], 0
    %22 = vsyncpa [#allocation4], 0
    // Predicated region
    $region2: #{tpu_custom_call.1} parent=1 // pred_check
      _
    $region3: #{tpu_custom_call.1} parent=1 // pred_check_branch
      %24 = sbr.rel (0) target = $region5
    $region4: #{tpu_custom_call.1} parent=1 // pred_region
      %s26 = ssub.s32 2048, 2048
      %27 = vsyncadd [#allocation3], %s26
      %s28 = sshll.u32 [#allocation2], 4
      %s29 = int_to_ptr.vmem [resolvable:$true] %s28
      %34 = dma.hbm_to_vmem [thread:$0]  %s0, 2048, %s29, [#allocation3], 128, 128, 8
    $region5: #{tpu_custom_call.1} parent=1 // pred_fallthru
      _
    // Predicated region
    $region6: #{tpu_custom_call.1} parent=1 // pred_check
      _
    $region7: #{tpu_custom_call.1} parent=1 // pred_check_branch
      %36 = sbr.rel (0) target = $region9
    $region8: #{tpu_custom_call.1} parent=1 // pred_region
      %s38 = ssub.s32 512, 512
      %39 = vsyncadd [#allocation6], %s38
      %s40 = sshll.u32 [#allocation5], 4
      %s41 = int_to_ptr.vmem [resolvable:$true] %s40
      %46 = dma.hbm_to_vmem [thread:$0]  %s1, 512, %s41, [#allocation6], 256, 256, 16
    $region9: #{tpu_custom_call.1} parent=1 // pred_fallthru
      _
    // Predicated region
    $region10: #{tpu_custom_call.1} parent=1 // pred_check
      _
    $region11: #{tpu_custom_call.1} parent=1 // pred_check_branch
      %48 = sbr.rel (0) target = $region13
    $region12: #{tpu_custom_call.1} parent=1 // pred_region
      %s50 = ssub.s32 4096, 4096
      %51 = vsyncadd [#allocation6], %s50
      %s52 = sshll.u32 [#allocation7], 4
      %s53 = int_to_ptr.vmem [resolvable:$true] %s52
      %58 = dma.hbm_to_vmem [thread:$0]  %s2, 4096, %s53, [#allocation6], 256, 256, 16
    $region13: #{tpu_custom_call.1} parent=1 // pred_fallthru
      _
    // Predicated region
    $region14: #{tpu_custom_call.1} parent=1 // pred_check
      _
    $region15: #{tpu_custom_call.1} parent=1 // pred_check_branch
      %60 = sbr.rel (0) target = $region17
    $region16: #{tpu_custom_call.1} parent=1 // pred_region
      _
    $region17: #{tpu_custom_call.1} parent=1 // pred_fallthru
      _
    // Predicated region
    $region18: #{tpu_custom_call.1} parent=1 // pred_check
      _
    $region19: #{tpu_custom_call.1} parent=1 // pred_check_branch
      %62 = sbr.rel (0) target = $region21
    $region20: #{tpu_custom_call.1} parent=1 // pred_region
      %s64 = ssub.s32 4096, 4096
      %65 = vsyncadd [#allocation9], %s64
      %s66 = sshll.u32 [#allocation8], 4
      %s67 = int_to_ptr.vmem [resolvable:$true] %s66
      %72 = dma.hbm_to_vmem [thread:$0]  %s4, 4096, %s67, [#allocation9], 256, 256, 16
    $region21: #{tpu_custom_call.1} parent=1 // pred_fallthru
      _
    // Predicated region
    $region22: #{tpu_custom_call.1} parent=1 // pred_check
      _
    $region23: #{tpu_custom_call.1} parent=1 // pred_check_branch
      %74 = sbr.rel (0) target = $region25
    $region24: #{tpu_custom_call.1} parent=1 // pred_region
      %s76 = ssub.s32 4096, 4096
      %77 = vsyncadd [#allocation9], %s76
      %s78 = sshll.u32 [#allocation10], 4
      %s79 = int_to_ptr.vmem [resolvable:$true] %s78
      %84 = dma.hbm_to_vmem [thread:$0]  %s5, 4096, %s79, [#allocation9], 256, 256, 16
    $region25: #{tpu_custom_call.1} parent=1 // pred_fallthru
      _
    // Predicated region
    $region26: #{tpu_custom_call.1} parent=1 // pred_check
      _
    $region27: #{tpu_custom_call.1} parent=1 // pred_check_branch
      %86 = sbr.rel (0) target = $region29
    $region28: #{tpu_custom_call.1} parent=1 // pred_region
      _
    $region29: #{tpu_custom_call.1} parent=1 // pred_fallthru
      _
    // Predicated region
    $region30: #{tpu_custom_call.1} parent=1 // pred_check
      _
    $region31: #{tpu_custom_call.1} parent=1 // pred_check_branch
      %88 = sbr.rel (0) target = $region33
    $region32: #{tpu_custom_call.1} parent=1 // pred_region
      _
    $region33: #{tpu_custom_call.1} parent=1 // pred_fallthru
      _
    // Predicated region
    $region34: #{tpu_custom_call.1} parent=1 // pred_check
      _
    $region35: #{tpu_custom_call.1} parent=1 // pred_check_branch
      %90 = sbr.rel (0) target = $region37
    $region36: #{tpu_custom_call.1} parent=1 // pred_region
      _
    $region37: #{tpu_custom_call.1} parent=1 // pred_fallthru
      _
    // Predicated region
    $region38: #{tpu_custom_call.1} parent=1 // pred_check
      _
    $region39: #{tpu_custom_call.1} parent=1 // pred_check_branch
      %92 = sbr.rel (0) target = $region41
    $region40: #{tpu_custom_call.1} parent=1 // pred_region
      %s94 = ssub.s32 2048, 2048
      %95 = vsyncadd [#allocation12], %s94
      %s96 = sshll.u32 [#allocation11], 4
      %s97 = int_to_ptr.vmem [resolvable:$true] %s96
      %102 = dma.hbm_to_vmem [thread:$0]  %s9, 2048, %s97, [#allocation12], 128, 128, 8
    $region41: #{tpu_custom_call.1} parent=1 // pred_fallthru
      _
    // Predicated region
    $region42: #{tpu_custom_call.1} parent=1 // pred_check
      _
    $region43: #{tpu_custom_call.1} parent=1 // pred_check_branch
      %104 = sbr.rel (0) target = $region45
    $region44: #{tpu_custom_call.1} parent=1 // pred_region
      _
    $region45: #{tpu_custom_call.1} parent=1 // pred_fallthru
      _
    // Predicated region
    $region46: #{tpu_custom_call.1} parent=1 // pred_check
      _
    $region47: #{tpu_custom_call.1} parent=1 // pred_check_branch
      %106 = sbr.rel (0) target = $region49
    $region48: #{tpu_custom_call.1} parent=1 // pred_region
      %s108 = ssub.s32 2048, 2048
      %109 = vsyncadd [#allocation12], %s108
      %s110 = sshll.u32 [#allocation13], 4
      %s111 = int_to_ptr.vmem [resolvable:$true] %s110
      %116 = dma.hbm_to_vmem [thread:$0]  %s11, 2048, %s111, [#allocation12], 128, 128, 8
    $region49: #{tpu_custom_call.1} parent=1 // pred_fallthru
      _
    // Predicated region
    $region50: #{tpu_custom_call.1} parent=1 // pred_check
      _
    $region51: #{tpu_custom_call.1} parent=1 // pred_check_branch
      %118 = sbr.rel (0) target = $region53
    $region52: #{tpu_custom_call.1} parent=1 // pred_region
      _
    $region53: #{tpu_custom_call.1} parent=1 // pred_fallthru
      _
    // Predicated region
    $region54: #{tpu_custom_call.1} parent=1 // pred_check
      _
    $region55: #{tpu_custom_call.1} parent=1 // pred_check_branch
      %120 = sbr.rel (0) target = $region57
    $region56: #{tpu_custom_call.1} parent=1 // pred_region
      %121 = dma.done [#allocation3], 2048
    $region57: #{tpu_custom_call.1} parent=1 // pred_fallthru
      _
    // Predicated region
    $region58: #{tpu_custom_call.1} parent=1 // pred_check
      _
    $region59: #{tpu_custom_call.1} parent=1 // pred_check_branch
      %123 = sbr.rel (0) target = $region61
    $region60: #{tpu_custom_call.1} parent=1 // pred_region
      %124 = dma.done [#allocation6], 512
    $region61: #{tpu_custom_call.1} parent=1 // pred_fallthru
      _
    // Predicated region
    $region62: #{tpu_custom_call.1} parent=1 // pred_check
      _
    $region63: #{tpu_custom_call.1} parent=1 // pred_check_branch
      %126 = sbr.rel (0) target = $region65
    $region64: #{tpu_custom_call.1} parent=1 // pred_region
      %127 = dma.done [#allocation6], 4096
    $region65: #{tpu_custom_call.1} parent=1 // pred_fallthru
      _
    // Predicated region
    $region66: #{tpu_custom_call.1} parent=1 // pred_check
      _
    $region67: #{tpu_custom_call.1} parent=1 // pred_check_branch
      %129 = sbr.rel (0) target = $region69
    $region68: #{tpu_custom_call.1} parent=1 // pred_region
      %130 = dma.done [#allocation9], 4096
    $region69: #{tpu_custom_call.1} parent=1 // pred_fallthru
      _
    // Predicated region
    $region70: #{tpu_custom_call.1} parent=1 // pred_check
      _
    $region71: #{tpu_custom_call.1} parent=1 // pred_check_branch
      %132 = sbr.rel (0) target = $region73
    $region72: #{tpu_custom_call.1} parent=1 // pred_region
      %133 = dma.done [#allocation9], 4096
    $region73: #{tpu_custom_call.1} parent=1 // pred_fallthru
      _
    // Predicated region
    $region74: #{tpu_custom_call.1} parent=1 // pred_check
      _
    $region75: #{tpu_custom_call.1} parent=1 // pred_check_branch
      %135 = sbr.rel (0) target = $region77
    $region76: #{tpu_custom_call.1} parent=1 // pred_region
      %136 = dma.done [#allocation12], 2048
    $region77: #{tpu_custom_call.1} parent=1 // pred_fallthru
      _
    // Predicated region
    $region78: #{tpu_custom_call.1} parent=1 // pred_check
      _
    $region79: #{tpu_custom_call.1} parent=1 // pred_check_branch
      %138 = sbr.rel (0) target = $region81
    $region80: #{tpu_custom_call.1} parent=1 // pred_region
      %139 = dma.done [#allocation12], 2048
    $region81: #{tpu_custom_call.1} parent=1 // pred_fallthru
      _
    %v141 = vld [vmem:[#allocation2] sm:$0xff]
    %v142 = vld [vmem:[#allocation2 + $0x8] sm:$0xff]
    %v143 = vld [vmem:[#allocation2 + $0x10] sm:$0xff]
    %v144 = vld [vmem:[#allocation2 + $0x18] sm:$0xff]
    %v145 = vld [vmem:[#allocation2 + $0x20] sm:$0xff]
    %v146 = vld [vmem:[#allocation2 + $0x28] sm:$0xff]
    %v147 = vld [vmem:[#allocation2 + $0x30] sm:$0xff]
    %v148 = vld [vmem:[#allocation2 + $0x38] sm:$0xff]
    %v149 = vld [vmem:[#allocation2 + $0x40] sm:$0xff]
    %v150 = vld [vmem:[#allocation2 + $0x48] sm:$0xff]
    %v151 = vld [vmem:[#allocation2 + $0x50] sm:$0xff]
    %v152 = vld [vmem:[#allocation2 + $0x58] sm:$0xff]
    %v153 = vld [vmem:[#allocation2 + $0x60] sm:$0xff]
    %v154 = vld [vmem:[#allocation2 + $0x68] sm:$0xff]
    %v155 = vld [vmem:[#allocation2 + $0x70] sm:$0xff]
    %v156 = vld [vmem:[#allocation2 + $0x78] sm:$0xff]
    %v157 = vpack.c.bf16 %v142, %v141
    %v158 = vpack.c.bf16 %v144, %v143
    %v159 = vpack.c.bf16 %v146, %v145
    %v160 = vpack.c.bf16 %v148, %v147
    %v161 = vpack.c.bf16 %v150, %v149
    %v162 = vpack.c.bf16 %v152, %v151
    %v163 = vpack.c.bf16 %v154, %v153
    %v164 = vpack.c.bf16 %v156, %v155
    %v165 = vld [vmem:[#allocation5] sm:$0xff]
    %v166 = vld [vmem:[#allocation5 + $0x8] sm:$0xff]
    %v167 = vld [vmem:[#allocation5 + $0x10] sm:$0xff]
    %v168 = vld [vmem:[#allocation5 + $0x18] sm:$0xff]
    %v169 = vld [vmem:[%s3] sm:$0xf]
    %v171 = vlaneseq
    %v172 = vshrl.u32 %v171, 7
    %v173 = vsub.s32 0, %v172
    %v174 = vrot.slane %v169, %v173
    %v175 = vlaneseq
    %v176 = vshrl.u32 %v175, 7
    %v177 = vsub.s32 1, %v176
    %v178 = vrot.slane %v169, %v177
    %v179 = vlaneseq
    %v180 = vshrl.u32 %v179, 7
    %v181 = vsub.s32 2, %v180
    %v182 = vrot.slane %v169, %v181
    %v183 = vlaneseq
    %v184 = vshrl.u32 %v183, 7
    %v185 = vsub.s32 3, %v184
    %v186 = vrot.slane %v169, %v185
    %v195 = vunpack.c.l.b16 %v165
    %v196 = vunpack.c.h.b16 %v165
    %v197 = vunpack.c.l.b16 %v166
    %v198 = vunpack.c.h.b16 %v166
    %v199 = vunpack.c.l.b16 %v167
    %v200 = vunpack.c.h.b16 %v167
    %v201 = vunpack.c.l.b16 %v168
    %v202 = vunpack.c.h.b16 %v168
    %v203 = vpack.c.b16 %v199, %v195
    %v204 = vpack.c.b16 %v200, %v196
    %v205 = vpack.c.b16 %v201, %v197
    %v206 = vpack.c.b16 %v202, %v198
    %vm211 = vcmask 130048
    %v213 = vsel %vm211, %v157, 0
    %v216 = vsel %vm211, %v158, 0
    %v219 = vsel %vm211, %v159, 0
    %v222 = vsel %vm211, %v160, 0
    %v225 = vsel %vm211, %v161, 0
    %v228 = vsel %vm211, %v162, 0
    %v231 = vsel %vm211, %v163, 0
    %v234 = vsel %vm211, %v164, 0
    %236 = vmatprep.subr.bf16.mxu0 %v204
    %237 = vmatpush1.bf16.msra.mxu0 %v203
    %238 = vmatprep.subr.bf16.mxu0 0
    %239 = vmatpush1.bf16.msra.mxu0 0
    %240 = vmatprep.subr.bf16.mxu0 0
    %241 = vmatpush1.bf16.msra.mxu0 0
    %242 = vmatprep.subr.bf16.mxu0 0
    %243 = vmatpush1.bf16.msra.mxu0 0
    %244 = vmatprep.subr.bf16.mxu0 0
    %245 = vmatpush1.bf16.msra.mxu0 0
    %246 = vmatprep.subr.bf16.mxu0 0
    %247 = vmatpush1.bf16.msra.mxu0 0
    %248 = vmatprep.subr.bf16.mxu0 0
    %249 = vmatpush1.bf16.msra.mxu0 0
    %250 = vmatprep.subr.bf16.mxu0 0
    %251 = vmatpush1.bf16.msra.mxu0 0
    %252 = vmatprep.subr.bf16.mxu0 0
    %253 = vmatpush1.bf16.msra.mxu0 0
    %254 = vmatprep.subr.bf16.mxu0 0
    %255 = vmatpush1.bf16.msra.mxu0 0
    %256 = vmatprep.subr.bf16.mxu0 0
    %257 = vmatpush1.bf16.msra.mxu0 0
    %258 = vmatprep.subr.bf16.mxu0 0
    %259 = vmatpush1.bf16.msra.mxu0 0
    %260 = vmatprep.subr.bf16.mxu0 0
    %261 = vmatpush1.bf16.msra.mxu0 0
    %262 = vmatprep.subr.bf16.mxu0 0
    %263 = vmatpush1.bf16.msra.mxu0 0
    %264 = vmatprep.subr.bf16.mxu0 0
    %265 = vmatpush1.bf16.msra.mxu0 0
    %266 = vmatprep.subr.bf16.mxu0 0
    %267 = vmatpush1.bf16.msra.mxu0 0
    %268 = vmatprep.mubr.bf16.mxu0 0
    %269 = vmatmul.mubr.bf16.gmra.mrb[0].mxu0 %v213
    %v270 = vpop.f32.mrb[0].mxu0
    %v271 = vadd.f32 %v174, %v270
    %v272 = vpop.f32.mrb[0].mxu0
    %v273 = vadd.f32 %v178, %v272
    %v274 = vpop.f32.mrb[0].mxu0
    %v275 = vadd.f32 %v174, %v274
    %v276 = vpop.f32.mrb[0].mxu0
    %v277 = vadd.f32 %v178, %v276
    %278 = vmatprep.mubr.bf16.mxu0 0
    %279 = vmatmul.mubr.bf16.gmra.mrb[0].mxu0 %v216
    %v280 = vpop.f32.mrb[0].mxu0
    %v281 = vadd.f32 %v174, %v280
    %v282 = vpop.f32.mrb[0].mxu0
    %v283 = vadd.f32 %v178, %v282
    %v284 = vpop.f32.mrb[0].mxu0
    %v285 = vadd.f32 %v174, %v284
    %v286 = vpop.f32.mrb[0].mxu0
    %v287 = vadd.f32 %v178, %v286
    %288 = vmatprep.mubr.bf16.mxu0 0
    %289 = vmatmul.mubr.bf16.gmra.mrb[0].mxu0 %v219
    %v290 = vpop.f32.mrb[0].mxu0
    %v291 = vadd.f32 %v174, %v290
    %v292 = vpop.f32.mrb[0].mxu0
    %v293 = vadd.f32 %v178, %v292
    %v294 = vpop.f32.mrb[0].mxu0
    %v295 = vadd.f32 %v174, %v294
    %v296 = vpop.f32.mrb[0].mxu0
    %v297 = vadd.f32 %v178, %v296
    %298 = vmatprep.mubr.bf16.mxu0 0
    %299 = vmatmul.mubr.bf16.gmra.mrb[0].mxu0 %v222
    %v300 = vpop.f32.mrb[0].mxu0
    %v301 = vadd.f32 %v174, %v300
    %v302 = vpop.f32.mrb[0].mxu0
    %v303 = vadd.f32 %v178, %v302
    %v304 = vpop.f32.mrb[0].mxu0
    %v305 = vadd.f32 %v174, %v304
    %v306 = vpop.f32.mrb[0].mxu0
    %v307 = vadd.f32 %v178, %v306
    %308 = vmatprep.mubr.bf16.mxu0 0
    %309 = vmatmul.mubr.bf16.gmra.mrb[0].mxu0 %v225
    %v310 = vpop.f32.mrb[0].mxu0
    %v311 = vadd.f32 %v174, %v310
    %v312 = vpop.f32.mrb[0].mxu0
    %v313 = vadd.f32 %v178, %v312
    %v314 = vpop.f32.mrb[0].mxu0
    %v315 = vadd.f32 %v174, %v314
    %v316 = vpop.f32.mrb[0].mxu0
    %v317 = vadd.f32 %v178, %v316
    %318 = vmatprep.mubr.bf16.mxu0 0
    %319 = vmatmul.mubr.bf16.gmra.mrb[0].mxu0 %v228
    %v320 = vpop.f32.mrb[0].mxu0
    %v321 = vadd.f32 %v174, %v320
    %v322 = vpop.f32.mrb[0].mxu0
    %v323 = vadd.f32 %v178, %v322
    %v324 = vpop.f32.mrb[0].mxu0
    %v325 = vadd.f32 %v174, %v324
    %v326 = vpop.f32.mrb[0].mxu0
    %v327 = vadd.f32 %v178, %v326
    %328 = vmatprep.mubr.bf16.mxu0 0
    %329 = vmatmul.mubr.bf16.gmra.mrb[0].mxu0 %v231
    %v330 = vpop.f32.mrb[0].mxu0
    %v331 = vadd.f32 %v174, %v330
    %v332 = vpop.f32.mrb[0].mxu0
    %v333 = vadd.f32 %v178, %v332
    %v334 = vpop.f32.mrb[0].mxu0
    %v335 = vadd.f32 %v174, %v334
    %v336 = vpop.f32.mrb[0].mxu0
    %v337 = vadd.f32 %v178, %v336
    %338 = vmatprep.mubr.bf16.mxu0 0
    %339 = vmatmul.mubr.bf16.gmra.mrb[0].mxu0 %v234
    %v340 = vpop.f32.mrb[0].mxu0
    %v341 = vadd.f32 %v174, %v340
    %v342 = vpop.f32.mrb[0].mxu0
    %v343 = vadd.f32 %v178, %v342
    %v344 = vpop.f32.mrb[0].mxu0
    %v345 = vadd.f32 %v174, %v344
    %v346 = vpop.f32.mrb[0].mxu0
    %v347 = vadd.f32 %v178, %v346
    %348 = vdwg.mxu0
    %349 = vmatprep.subr.bf16.mxu0 %v206
    %350 = vmatpush1.bf16.msra.mxu0 %v205
    %351 = vmatprep.subr.bf16.mxu0 0
    %352 = vmatpush1.bf16.msra.mxu0 0
    %353 = vmatprep.subr.bf16.mxu0 0
    %354 = vmatpush1.bf16.msra.mxu0 0
    %355 = vmatprep.subr.bf16.mxu0 0
    %356 = vmatpush1.bf16.msra.mxu0 0
    %357 = vmatprep.subr.bf16.mxu0 0
    %358 = vmatpush1.bf16.msra.mxu0 0
    %359 = vmatprep.subr.bf16.mxu0 0
    %360 = vmatpush1.bf16.msra.mxu0 0
    %361 = vmatprep.subr.bf16.mxu0 0
    %362 = vmatpush1.bf16.msra.mxu0 0
    %363 = vmatprep.subr.bf16.mxu0 0
    %364 = vmatpush1.bf16.msra.mxu0 0
    %365 = vmatprep.subr.bf16.mxu0 0
    %366 = vmatpush1.bf16.msra.mxu0 0
    %367 = vmatprep.subr.bf16.mxu0 0
    %368 = vmatpush1.bf16.msra.mxu0 0
    %369 = vmatprep.subr.bf16.mxu0 0
    %370 = vmatpush1.bf16.msra.mxu0 0
    %371 = vmatprep.subr.bf16.mxu0 0
    %372 = vmatpush1.bf16.msra.mxu0 0
    %373 = vmatprep.subr.bf16.mxu0 0
    %374 = vmatpush1.bf16.msra.mxu0 0
    %375 = vmatprep.subr.bf16.mxu0 0
    %376 = vmatpush1.bf16.msra.mxu0 0
    %377 = vmatprep.subr.bf16.mxu0 0
    %378 = vmatpush1.bf16.msra.mxu0 0
    %379 = vmatprep.subr.bf16.mxu0 0
    %380 = vmatpush1.bf16.msra.mxu0 0
    %381 = vmatprep.mubr.bf16.mxu0 0
    %382 = vmatmul.mubr.bf16.gmra.mrb[0].mxu0 %v213
    %v383 = vpop.f32.mrb[0].mxu0
    %v384 = vadd.f32 %v182, %v383
    %v385 = vpop.f32.mrb[0].mxu0
    %v386 = vadd.f32 %v186, %v385
    %v387 = vpop.f32.mrb[0].mxu0
    %v388 = vadd.f32 %v182, %v387
    %v389 = vpop.f32.mrb[0].mxu0
    %v390 = vadd.f32 %v186, %v389
    %391 = vmatprep.mubr.bf16.mxu0 0
    %392 = vmatmul.mubr.bf16.gmra.mrb[0].mxu0 %v216
    %v393 = vpop.f32.mrb[0].mxu0
    %v394 = vadd.f32 %v182, %v393
    %v395 = vpop.f32.mrb[0].mxu0
    %v396 = vadd.f32 %v186, %v395
    %v397 = vpop.f32.mrb[0].mxu0
    %v398 = vadd.f32 %v182, %v397
    %v399 = vpop.f32.mrb[0].mxu0
    %v400 = vadd.f32 %v186, %v399
    %401 = vmatprep.mubr.bf16.mxu0 0
    %402 = vmatmul.mubr.bf16.gmra.mrb[0].mxu0 %v219
    %v403 = vpop.f32.mrb[0].mxu0
    %v404 = vadd.f32 %v182, %v403
    %v405 = vpop.f32.mrb[0].mxu0
    %v406 = vadd.f32 %v186, %v405
    %v407 = vpop.f32.mrb[0].mxu0
    %v408 = vadd.f32 %v182, %v407
    %v409 = vpop.f32.mrb[0].mxu0
    %v410 = vadd.f32 %v186, %v409
    %411 = vmatprep.mubr.bf16.mxu0 0
    %412 = vmatmul.mubr.bf16.gmra.mrb[0].mxu0 %v222
    %v413 = vpop.f32.mrb[0].mxu0
    %v414 = vadd.f32 %v182, %v413
    %v415 = vpop.f32.mrb[0].mxu0
    %v416 = vadd.f32 %v186, %v415
    %v417 = vpop.f32.mrb[0].mxu0
    %v418 = vadd.f32 %v182, %v417
    %v419 = vpop.f32.mrb[0].mxu0
    %v420 = vadd.f32 %v186, %v419
    %421 = vmatprep.mubr.bf16.mxu0 0
    %422 = vmatmul.mubr.bf16.gmra.mrb[0].mxu0 %v225
    %v423 = vpop.f32.mrb[0].mxu0
    %v424 = vadd.f32 %v182, %v423
    %v425 = vpop.f32.mrb[0].mxu0
    %v426 = vadd.f32 %v186, %v425
    %v427 = vpop.f32.mrb[0].mxu0
    %v428 = vadd.f32 %v182, %v427
    %v429 = vpop.f32.mrb[0].mxu0
    %v430 = vadd.f32 %v186, %v429
    %431 = vmatprep.mubr.bf16.mxu0 0
    %432 = vmatmul.mubr.bf16.gmra.mrb[0].mxu0 %v228
    %v433 = vpop.f32.mrb[0].mxu0
    %v434 = vadd.f32 %v182, %v433
    %v435 = vpop.f32.mrb[0].mxu0
    %v436 = vadd.f32 %v186, %v435
    %v437 = vpop.f32.mrb[0].mxu0
    %v438 = vadd.f32 %v182, %v437
    %v439 = vpop.f32.mrb[0].mxu0
    %v440 = vadd.f32 %v186, %v439
    %441 = vmatprep.mubr.bf16.mxu0 0
    %442 = vmatmul.mubr.bf16.gmra.mrb[0].mxu0 %v231
    %v443 = vpop.f32.mrb[0].mxu0
    %v444 = vadd.f32 %v182, %v443
    %v445 = vpop.f32.mrb[0].mxu0
    %v446 = vadd.f32 %v186, %v445
    %v447 = vpop.f32.mrb[0].mxu0
    %v448 = vadd.f32 %v182, %v447
    %v449 = vpop.f32.mrb[0].mxu0
    %v450 = vadd.f32 %v186, %v449
    %451 = vmatprep.mubr.bf16.mxu0 0
    %452 = vmatmul.mubr.bf16.gmra.mrb[0].mxu0 %v234
    %v453 = vpop.f32.mrb[0].mxu0
    %v454 = vadd.f32 %v182, %v453
    %v455 = vpop.f32.mrb[0].mxu0
    %v456 = vadd.f32 %v186, %v455
    %v457 = vpop.f32.mrb[0].mxu0
    %v458 = vadd.f32 %v182, %v457
    %v459 = vpop.f32.mrb[0].mxu0
    %v460 = vadd.f32 %v186, %v459
    %461 = vdwg.mxu0
    %v462 = vld [vmem:[#allocation7] sm:$0xff]
    %v463 = vld [vmem:[#allocation7 + $0x8] sm:$0xff]
    %v464 = vld [vmem:[#allocation7 + $0x10] sm:$0xff]
    %v465 = vld [vmem:[#allocation7 + $0x18] sm:$0xff]
    %v466 = vld [vmem:[#allocation7 + $0x20] sm:$0xff]
    %v467 = vld [vmem:[#allocation7 + $0x28] sm:$0xff]
    %v468 = vld [vmem:[#allocation7 + $0x30] sm:$0xff]
    %v469 = vld [vmem:[#allocation7 + $0x38] sm:$0xff]
    %v470 = vld [vmem:[#allocation7 + $0x40] sm:$0xff]
    %v471 = vld [vmem:[#allocation7 + $0x48] sm:$0xff]
    %v472 = vld [vmem:[#allocation7 + $0x50] sm:$0xff]
    %v473 = vld [vmem:[#allocation7 + $0x58] sm:$0xff]
    %v474 = vld [vmem:[#allocation7 + $0x60] sm:$0xff]
    %v475 = vld [vmem:[#allocation7 + $0x68] sm:$0xff]
    %v476 = vld [vmem:[#allocation7 + $0x70] sm:$0xff]
    %v477 = vld [vmem:[#allocation7 + $0x78] sm:$0xff]
    %v478 = vld [vmem:[#allocation7 + $0x80] sm:$0xff]
    %v479 = vld [vmem:[#allocation7 + $0x88] sm:$0xff]
    %v480 = vld [vmem:[#allocation7 + $0x90] sm:$0xff]
    %v481 = vld [vmem:[#allocation7 + $0x98] sm:$0xff]
    %v482 = vld [vmem:[#allocation7 + $0xa0] sm:$0xff]
    %v483 = vld [vmem:[#allocation7 + $0xa8] sm:$0xff]
    %v484 = vld [vmem:[#allocation7 + $0xb0] sm:$0xff]
    %v485 = vld [vmem:[#allocation7 + $0xb8] sm:$0xff]
    %v486 = vld [vmem:[#allocation7 + $0xc0] sm:$0xff]
    %v487 = vld [vmem:[#allocation7 + $0xc8] sm:$0xff]
    %v488 = vld [vmem:[#allocation7 + $0xd0] sm:$0xff]
    %v489 = vld [vmem:[#allocation7 + $0xd8] sm:$0xff]
    %v490 = vld [vmem:[#allocation7 + $0xe0] sm:$0xff]
    %v491 = vld [vmem:[#allocation7 + $0xe8] sm:$0xff]
    %v492 = vld [vmem:[#allocation7 + $0xf0] sm:$0xff]
    %v493 = vld [vmem:[#allocation7 + $0xf8] sm:$0xff]
    %v526 = vunpack.c.l.b16 %v462
    %v527 = vunpack.c.h.b16 %v462
    %v528 = vunpack.c.l.b16 %v463
    %v529 = vunpack.c.h.b16 %v463
    %v530 = vunpack.c.l.b16 %v464
    %v531 = vunpack.c.h.b16 %v464
    %v532 = vunpack.c.l.b16 %v465
    %v533 = vunpack.c.h.b16 %v465
    %v534 = vunpack.c.l.b16 %v466
    %v535 = vunpack.c.h.b16 %v466
    %v536 = vunpack.c.l.b16 %v467
    %v537 = vunpack.c.h.b16 %v467
    %v538 = vunpack.c.l.b16 %v468
    %v539 = vunpack.c.h.b16 %v468
    %v540 = vunpack.c.l.b16 %v469
    %v541 = vunpack.c.h.b16 %v469
    %v542 = vunpack.c.l.b16 %v470
    %v543 = vunpack.c.h.b16 %v470
    %v544 = vunpack.c.l.b16 %v471
    %v545 = vunpack.c.h.b16 %v471
    %v546 = vunpack.c.l.b16 %v472
    %v547 = vunpack.c.h.b16 %v472
    %v548 = vunpack.c.l.b16 %v473
    %v549 = vunpack.c.h.b16 %v473
    %v550 = vunpack.c.l.b16 %v474
    %v551 = vunpack.c.h.b16 %v474
    %v552 = vunpack.c.l.b16 %v475
    %v553 = vunpack.c.h.b16 %v475
    %v554 = vunpack.c.l.b16 %v476
    %v555 = vunpack.c.h.b16 %v476
    %v556 = vunpack.c.l.b16 %v477
    %v557 = vunpack.c.h.b16 %v477
    %v558 = vunpack.c.l.b16 %v478
    %v559 = vunpack.c.h.b16 %v478
    %v560 = vunpack.c.l.b16 %v479
    %v561 = vunpack.c.h.b16 %v479
    %v562 = vunpack.c.l.b16 %v480
    %v563 = vunpack.c.h.b16 %v480
    %v564 = vunpack.c.l.b16 %v481
    %v565 = vunpack.c.h.b16 %v481
    %v566 = vunpack.c.l.b16 %v482
    %v567 = vunpack.c.h.b16 %v482
    %v568 = vunpack.c.l.b16 %v483
    %v569 = vunpack.c.h.b16 %v483
    %v570 = vunpack.c.l.b16 %v484
    %v571 = vunpack.c.h.b16 %v484
    %v572 = vunpack.c.l.b16 %v485
    %v573 = vunpack.c.h.b16 %v485
    %v574 = vunpack.c.l.b16 %v486
    %v575 = vunpack.c.h.b16 %v486
    %v576 = vunpack.c.l.b16 %v487
    %v577 = vunpack.c.h.b16 %v487
    %v578 = vunpack.c.l.b16 %v488
    %v579 = vunpack.c.h.b16 %v488
    %v580 = vunpack.c.l.b16 %v489
    %v581 = vunpack.c.h.b16 %v489
    %v582 = vunpack.c.l.b16 %v490
    %v583 = vunpack.c.h.b16 %v490
    %v584 = vunpack.c.l.b16 %v491
    %v585 = vunpack.c.h.b16 %v491
    %v586 = vunpack.c.l.b16 %v492
    %v587 = vunpack.c.h.b16 %v492
    %v588 = vunpack.c.l.b16 %v493
    %v589 = vunpack.c.h.b16 %v493
    %v590 = vpack.c.b16 %v530, %v526
    %v591 = vpack.c.b16 %v531, %v527
    %v592 = vpack.c.b16 %v532, %v528
    %v593 = vpack.c.b16 %v533, %v529
    %v594 = vpack.c.b16 %v538, %v534
    %v595 = vpack.c.b16 %v539, %v535
    %v596 = vpack.c.b16 %v540, %v536
    %v597 = vpack.c.b16 %v541, %v537
    %v598 = vpack.c.b16 %v546, %v542
    %v599 = vpack.c.b16 %v547, %v543
    %v600 = vpack.c.b16 %v548, %v544
    %v601 = vpack.c.b16 %v549, %v545
    %v602 = vpack.c.b16 %v554, %v550
    %v603 = vpack.c.b16 %v555, %v551
    %v604 = vpack.c.b16 %v556, %v552
    %v605 = vpack.c.b16 %v557, %v553
    %v606 = vpack.c.b16 %v562, %v558
    %v607 = vpack.c.b16 %v563, %v559
    %v608 = vpack.c.b16 %v564, %v560
    %v609 = vpack.c.b16 %v565, %v561
    %v610 = vpack.c.b16 %v570, %v566
    %v611 = vpack.c.b16 %v571, %v567
    %v612 = vpack.c.b16 %v572, %v568
    %v613 = vpack.c.b16 %v573, %v569
    %v614 = vpack.c.b16 %v578, %v574
    %v615 = vpack.c.b16 %v579, %v575
    %v616 = vpack.c.b16 %v580, %v576
    %v617 = vpack.c.b16 %v581, %v577
    %v618 = vpack.c.b16 %v586, %v582
    %v619 = vpack.c.b16 %v587, %v583
    %v620 = vpack.c.b16 %v588, %v584
    %v621 = vpack.c.b16 %v589, %v585
    %654 = vmatprep.subr.bf16.mxu0 %v591
    %655 = vmatpush1.bf16.msra.mxu0 %v590
    %656 = vmatprep.subr.bf16.mxu0 %v595
    %657 = vmatpush1.bf16.msra.mxu0 %v594
    %658 = vmatprep.subr.bf16.mxu0 %v599
    %659 = vmatpush1.bf16.msra.mxu0 %v598
    %660 = vmatprep.subr.bf16.mxu0 %v603
    %661 = vmatpush1.bf16.msra.mxu0 %v602
    %662 = vmatprep.subr.bf16.mxu0 %v607
    %663 = vmatpush1.bf16.msra.mxu0 %v606
    %664 = vmatprep.subr.bf16.mxu0 %v611
    %665 = vmatpush1.bf16.msra.mxu0 %v610
    %666 = vmatprep.subr.bf16.mxu0 %v615
    %667 = vmatpush1.bf16.msra.mxu0 %v614
    %668 = vmatprep.subr.bf16.mxu0 %v619
    %669 = vmatpush1.bf16.msra.mxu0 %v618
    %670 = vmatprep.subr.bf16.mxu0 0
    %671 = vmatpush1.bf16.msra.mxu0 0
    %672 = vmatprep.subr.bf16.mxu0 0
    %673 = vmatpush1.bf16.msra.mxu0 0
    %674 = vmatprep.subr.bf16.mxu0 0
    %675 = vmatpush1.bf16.msra.mxu0 0
    %676 = vmatprep.subr.bf16.mxu0 0
    %677 = vmatpush1.bf16.msra.mxu0 0
    %678 = vmatprep.subr.bf16.mxu0 0
    %679 = vmatpush1.bf16.msra.mxu0 0
    %680 = vmatprep.subr.bf16.mxu0 0
    %681 = vmatpush1.bf16.msra.mxu0 0
    %682 = vmatprep.subr.bf16.mxu0 0
    %683 = vmatpush1.bf16.msra.mxu0 0
    %684 = vmatprep.subr.bf16.mxu0 0
    %685 = vmatpush1.bf16.msra.mxu0 0
    %686 = vmatprep.mubr.bf16.mxu0 0
    %687 = vmatmul.mubr.bf16.gmra.mrb[0].mxu0 0
    %v688 = vpop.f32.mrb[0].mxu0
    %v689 = vadd.f32 0.0, %v688
    %v690 = vpop.f32.mrb[0].mxu0
    %v691 = vadd.f32 0.0, %v690
    %v692 = vpop.f32.mrb[0].mxu0
    %v693 = vadd.f32 0.0, %v692
    %v694 = vpop.f32.mrb[0].mxu0
    %v695 = vadd.f32 0.0, %v694
    %696 = vdwg.mxu0
    %697 = vmatprep.subr.bf16.mxu0 %v593
    %698 = vmatpush1.bf16.msra.mxu0 %v592
    %699 = vmatprep.subr.bf16.mxu0 %v597
    %700 = vmatpush1.bf16.msra.mxu0 %v596
    %701 = vmatprep.subr.bf16.mxu0 %v601
    %702 = vmatpush1.bf16.msra.mxu0 %v600
    %703 = vmatprep.subr.bf16.mxu0 %v605
    %704 = vmatpush1.bf16.msra.mxu0 %v604
    %705 = vmatprep.subr.bf16.mxu0 %v609
    %706 = vmatpush1.bf16.msra.mxu0 %v608
    %707 = vmatprep.subr.bf16.mxu0 %v613
    %708 = vmatpush1.bf16.msra.mxu0 %v612
    %709 = vmatprep.subr.bf16.mxu0 %v617
    %710 = vmatpush1.bf16.msra.mxu0 %v616
    %711 = vmatprep.subr.bf16.mxu0 %v621
    %712 = vmatpush1.bf16.msra.mxu0 %v620
    %713 = vmatprep.subr.bf16.mxu0 0
    %714 = vmatpush1.bf16.msra.mxu0 0
    %715 = vmatprep.subr.bf16.mxu0 0
    %716 = vmatpush1.bf16.msra.mxu0 0
    %717 = vmatprep.subr.bf16.mxu0 0
    %718 = vmatpush1.bf16.msra.mxu0 0
    %719 = vmatprep.subr.bf16.mxu0 0
    %720 = vmatpush1.bf16.msra.mxu0 0
    %721 = vmatprep.subr.bf16.mxu0 0
    %722 = vmatpush1.bf16.msra.mxu0 0
    %723 = vmatprep.subr.bf16.mxu0 0
    %724 = vmatpush1.bf16.msra.mxu0 0
    %725 = vmatprep.subr.bf16.mxu0 0
    %726 = vmatpush1.bf16.msra.mxu0 0
    %727 = vmatprep.subr.bf16.mxu0 0
    %728 = vmatpush1.bf16.msra.mxu0 0
    %729 = vmatprep.mubr.bf16.mxu0 0
    %730 = vmatmul.mubr.bf16.gmra.mrb[0].mxu0 0
    %v731 = vpop.f32.mrb[0].mxu0
    %v732 = vadd.f32 0.0, %v731
    %v733 = vpop.f32.mrb[0].mxu0
    %v734 = vadd.f32 0.0, %v733
    %v735 = vpop.f32.mrb[0].mxu0
    %v736 = vadd.f32 0.0, %v735
    %v737 = vpop.f32.mrb[0].mxu0
    %v738 = vadd.f32 0.0, %v737
    %739 = vdwg.mxu0
    %v740 = vadd.f32 %v271, %v689
    %v741 = vadd.f32 %v273, %v691
    %v742 = vadd.f32 %v384, %v732
    %v743 = vadd.f32 %v386, %v734
    %v744 = vadd.f32 %v275, %v693
    %v745 = vadd.f32 %v277, %v695
    %v746 = vadd.f32 %v388, %v736
    %v747 = vadd.f32 %v390, %v738
    %v748 = vmul.f32 %v740, 0.5
    %v749 = vmul.f32 %v744, 0.5
    %v750 = vtanh.pop %v748
    %v751 = vtanh.pop %v749
    %v752 = vadd.f32 %v750, 1.0
    %v753 = vadd.f32 %v751, 1.0
    %v754 = vmul.f32 %v752, 0.5
    %v755 = vmul.f32 %v753, 0.5
    %v756 = vmul.f32 %v741, 0.5
    %v757 = vmul.f32 %v745, 0.5
    %v758 = vtanh.pop %v756
    %v759 = vtanh.pop %v757
    %v760 = vadd.f32 %v758, 1.0
    %v761 = vadd.f32 %v759, 1.0
    %v762 = vmul.f32 %v760, 0.5
    %v763 = vmul.f32 %v761, 0.5
    %v764 = vtanh.pop %v742
    %v765 = vtanh.pop %v746
    %v766 = vmul.f32 %v743, 0.5
    %v767 = vmul.f32 %v747, 0.5
    %v768 = vtanh.pop %v766
    %v769 = vtanh.pop %v767
    %v770 = vadd.f32 %v768, 1.0
    %v771 = vadd.f32 %v769, 1.0
    %v772 = vmul.f32 %v770, 0.5
    %v773 = vmul.f32 %v771, 0.5
    %v774 = vmul.f32 %v762, 0.0
    %v775 = vmul.f32 %v763, 0.0
    %v776 = vmul.f32 %v754, %v764
    %v777 = vmul.f32 %v755, %v765
    %v778 = vadd.f32 %v774, %v776
    %v779 = vadd.f32 %v775, %v777
    %v780 = vtanh.pop %v778
    %v781 = vtanh.pop %v779
    %v782 = vmul.f32 %v772, %v780
    %v783 = vmul.f32 %v773, %v781
    %v784 = vpack.c.bf16 %v783, %v782
    %v785 = vld [vmem:[#allocation8] sm:$0xff]
    %v786 = vld [vmem:[#allocation8 + $0x8] sm:$0xff]
    %v787 = vld [vmem:[#allocation8 + $0x10] sm:$0xff]
    %v788 = vld [vmem:[#allocation8 + $0x18] sm:$0xff]
    %v789 = vld [vmem:[#allocation8 + $0x20] sm:$0xff]
    %v790 = vld [vmem:[#allocation8 + $0x28] sm:$0xff]
    %v791 = vld [vmem:[#allocation8 + $0x30] sm:$0xff]
    %v792 = vld [vmem:[#allocation8 + $0x38] sm:$0xff]
    %v793 = vld [vmem:[#allocation8 + $0x40] sm:$0xff]
    %v794 = vld [vmem:[#allocation8 + $0x48] sm:$0xff]
    %v795 = vld [vmem:[#allocation8 + $0x50] sm:$0xff]
    %v796 = vld [vmem:[#allocation8 + $0x58] sm:$0xff]
    %v797 = vld [vmem:[#allocation8 + $0x60] sm:$0xff]
    %v798 = vld [vmem:[#allocation8 + $0x68] sm:$0xff]
    %v799 = vld [vmem:[#allocation8 + $0x70] sm:$0xff]
    %v800 = vld [vmem:[#allocation8 + $0x78] sm:$0xff]
    %v801 = vld [vmem:[#allocation8 + $0x80] sm:$0xff]
    %v802 = vld [vmem:[#allocation8 + $0x88] sm:$0xff]
    %v803 = vld [vmem:[#allocation8 + $0x90] sm:$0xff]
    %v804 = vld [vmem:[#allocation8 + $0x98] sm:$0xff]
    %v805 = vld [vmem:[#allocation8 + $0xa0] sm:$0xff]
    %v806 = vld [vmem:[#allocation8 + $0xa8] sm:$0xff]
    %v807 = vld [vmem:[#allocation8 + $0xb0] sm:$0xff]
    %v808 = vld [vmem:[#allocation8 + $0xb8] sm:$0xff]
    %v809 = vld [vmem:[#allocation8 + $0xc0] sm:$0xff]
    %v810 = vld [vmem:[#allocation8 + $0xc8] sm:$0xff]
    %v811 = vld [vmem:[#allocation8 + $0xd0] sm:$0xff]
    %v812 = vld [vmem:[#allocation8 + $0xd8] sm:$0xff]
    %v813 = vld [vmem:[#allocation8 + $0xe0] sm:$0xff]
    %v814 = vld [vmem:[#allocation8 + $0xe8] sm:$0xff]
    %v815 = vld [vmem:[#allocation8 + $0xf0] sm:$0xff]
    %v816 = vld [vmem:[#allocation8 + $0xf8] sm:$0xff]
    %v817 = vld [vmem:[%s6] sm:$0xf]
    %v819 = vlaneseq
    %v820 = vshrl.u32 %v819, 7
    %v821 = vsub.s32 0, %v820
    %v822 = vrot.slane %v817, %v821
    %v823 = vlaneseq
    %v824 = vshrl.u32 %v823, 7
    %v825 = vsub.s32 1, %v824
    %v826 = vrot.slane %v817, %v825
    %v827 = vlaneseq
    %v828 = vshrl.u32 %v827, 7
    %v829 = vsub.s32 2, %v828
    %v830 = vrot.slane %v817, %v829
    %v831 = vlaneseq
    %v832 = vshrl.u32 %v831, 7
    %v833 = vsub.s32 3, %v832
    %v834 = vrot.slane %v817, %v833
    %v871 = vunpack.c.l.b16 %v785
    %v872 = vunpack.c.h.b16 %v785
    %v873 = vunpack.c.l.b16 %v786
    %v874 = vunpack.c.h.b16 %v786
    %v875 = vunpack.c.l.b16 %v787
    %v876 = vunpack.c.h.b16 %v787
    %v877 = vunpack.c.l.b16 %v788
    %v878 = vunpack.c.h.b16 %v788
    %v879 = vunpack.c.l.b16 %v789
    %v880 = vunpack.c.h.b16 %v789
    %v881 = vunpack.c.l.b16 %v790
    %v882 = vunpack.c.h.b16 %v790
    %v883 = vunpack.c.l.b16 %v791
    %v884 = vunpack.c.h.b16 %v791
    %v885 = vunpack.c.l.b16 %v792
    %v886 = vunpack.c.h.b16 %v792
    %v887 = vunpack.c.l.b16 %v793
    %v888 = vunpack.c.h.b16 %v793
    %v889 = vunpack.c.l.b16 %v794
    %v890 = vunpack.c.h.b16 %v794
    %v891 = vunpack.c.l.b16 %v795
    %v892 = vunpack.c.h.b16 %v795
    %v893 = vunpack.c.l.b16 %v796
    %v894 = vunpack.c.h.b16 %v796
    %v895 = vunpack.c.l.b16 %v797
    %v896 = vunpack.c.h.b16 %v797
    %v897 = vunpack.c.l.b16 %v798
    %v898 = vunpack.c.h.b16 %v798
    %v899 = vunpack.c.l.b16 %v799
    %v900 = vunpack.c.h.b16 %v799
    %v901 = vunpack.c.l.b16 %v800
    %v902 = vunpack.c.h.b16 %v800
    %v903 = vunpack.c.l.b16 %v801
    %v904 = vunpack.c.h.b16 %v801
    %v905 = vunpack.c.l.b16 %v802
    %v906 = vunpack.c.h.b16 %v802
    %v907 = vunpack.c.l.b16 %v803
    %v908 = vunpack.c.h.b16 %v803
    %v909 = vunpack.c.l.b16 %v804
    %v910 = vunpack.c.h.b16 %v804
    %v911 = vunpack.c.l.b16 %v805
    %v912 = vunpack.c.h.b16 %v805
    %v913 = vunpack.c.l.b16 %v806
    %v914 = vunpack.c.h.b16 %v806
    %v915 = vunpack.c.l.b16 %v807
    %v916 = vunpack.c.h.b16 %v807
    %v917 = vunpack.c.l.b16 %v808
    %v918 = vunpack.c.h.b16 %v808
    %v919 = vunpack.c.l.b16 %v809
    %v920 = vunpack.c.h.b16 %v809
    %v921 = vunpack.c.l.b16 %v810
    %v922 = vunpack.c.h.b16 %v810
    %v923 = vunpack.c.l.b16 %v811
    %v924 = vunpack.c.h.b16 %v811
    %v925 = vunpack.c.l.b16 %v812
    %v926 = vunpack.c.h.b16 %v812
    %v927 = vunpack.c.l.b16 %v813
    %v928 = vunpack.c.h.b16 %v813
    %v929 = vunpack.c.l.b16 %v814
    %v930 = vunpack.c.h.b16 %v814
    %v931 = vunpack.c.l.b16 %v815
    %v932 = vunpack.c.h.b16 %v815
    %v933 = vunpack.c.l.b16 %v816
    %v934 = vunpack.c.h.b16 %v816
    %v935 = vpack.c.b16 %v875, %v871
    %v936 = vpack.c.b16 %v876, %v872
    %v937 = vpack.c.b16 %v877, %v873
    %v938 = vpack.c.b16 %v878, %v874
    %v939 = vpack.c.b16 %v883, %v879
    %v940 = vpack.c.b16 %v884, %v880
    %v941 = vpack.c.b16 %v885, %v881
    %v942 = vpack.c.b16 %v886, %v882
    %v943 = vpack.c.b16 %v891, %v887
    %v944 = vpack.c.b16 %v892, %v888
    %v945 = vpack.c.b16 %v893, %v889
    %v946 = vpack.c.b16 %v894, %v890
    %v947 = vpack.c.b16 %v899, %v895
    %v948 = vpack.c.b16 %v900, %v896
    %v949 = vpack.c.b16 %v901, %v897
    %v950 = vpack.c.b16 %v902, %v898
    %v951 = vpack.c.b16 %v907, %v903
    %v952 = vpack.c.b16 %v908, %v904
    %v953 = vpack.c.b16 %v909, %v905
    %v954 = vpack.c.b16 %v910, %v906
    %v955 = vpack.c.b16 %v915, %v911
    %v956 = vpack.c.b16 %v916, %v912
    %v957 = vpack.c.b16 %v917, %v913
    %v958 = vpack.c.b16 %v918, %v914
    %v959 = vpack.c.b16 %v923, %v919
    %v960 = vpack.c.b16 %v924, %v920
    %v961 = vpack.c.b16 %v925, %v921
    %v962 = vpack.c.b16 %v926, %v922
    %v963 = vpack.c.b16 %v931, %v927
    %v964 = vpack.c.b16 %v932, %v928
    %v965 = vpack.c.b16 %v933, %v929
    %v966 = vpack.c.b16 %v934, %v930
    %999 = vmatprep.subr.bf16.mxu0 %v936
    %1000 = vmatpush1.bf16.msra.mxu0 %v935
    %1001 = vmatprep.subr.bf16.mxu0 %v940
    %1002 = vmatpush1.bf16.msra.mxu0 %v939
    %1003 = vmatprep.subr.bf16.mxu0 %v944
    %1004 = vmatpush1.bf16.msra.mxu0 %v943
    %1005 = vmatprep.subr.bf16.mxu0 %v948
    %1006 = vmatpush1.bf16.msra.mxu0 %v947
    %1007 = vmatprep.subr.bf16.mxu0 %v952
    %1008 = vmatpush1.bf16.msra.mxu0 %v951
    %1009 = vmatprep.subr.bf16.mxu0 %v956
    %1010 = vmatpush1.bf16.msra.mxu0 %v955
    %1011 = vmatprep.subr.bf16.mxu0 %v960
    %1012 = vmatpush1.bf16.msra.mxu0 %v959
    %1013 = vmatprep.subr.bf16.mxu0 %v964
    %1014 = vmatpush1.bf16.msra.mxu0 %v963
    %1015 = vmatprep.subr.bf16.mxu0 0
    %1016 = vmatpush1.bf16.msra.mxu0 0
    %1017 = vmatprep.subr.bf16.mxu0 0
    %1018 = vmatpush1.bf16.msra.mxu0 0
    %1019 = vmatprep.subr.bf16.mxu0 0
    %1020 = vmatpush1.bf16.msra.mxu0 0
    %1021 = vmatprep.subr.bf16.mxu0 0
    %1022 = vmatpush1.bf16.msra.mxu0 0
    %1023 = vmatprep.subr.bf16.mxu0 0
    %1024 = vmatpush1.bf16.msra.mxu0 0
    %1025 = vmatprep.subr.bf16.mxu0 0
    %1026 = vmatpush1.bf16.msra.mxu0 0
    %1027 = vmatprep.subr.bf16.mxu0 0
    %1028 = vmatpush1.bf16.msra.mxu0 0
    %1029 = vmatprep.subr.bf16.mxu0 0
    %1030 = vmatpush1.bf16.msra.mxu0 0
    %1031 = vmatprep.mubr.bf16.mxu0 0
    %1032 = vmatmul.mubr.bf16.gmra.mrb[0].mxu0 %v784
    %v1033 = vpop.f32.mrb[0].mxu0
    %v1034 = vadd.f32 %v822, %v1033
    %v1035 = vpop.f32.mrb[0].mxu0
    %v1036 = vadd.f32 %v826, %v1035
    %v1037 = vpop.f32.mrb[0].mxu0
    %v1038 = vadd.f32 %v822, %v1037
    %v1039 = vpop.f32.mrb[0].mxu0
    %v1040 = vadd.f32 %v826, %v1039
    %1041 = vdwg.mxu0
    %1042 = vmatprep.subr.bf16.mxu0 %v938
    %1043 = vmatpush1.bf16.msra.mxu0 %v937
    %1044 = vmatprep.subr.bf16.mxu0 %v942
    %1045 = vmatpush1.bf16.msra.mxu0 %v941
    %1046 = vmatprep.subr.bf16.mxu0 %v946
    %1047 = vmatpush1.bf16.msra.mxu0 %v945
    %1048 = vmatprep.subr.bf16.mxu0 %v950
    %1049 = vmatpush1.bf16.msra.mxu0 %v949
    %1050 = vmatprep.subr.bf16.mxu0 %v954
    %1051 = vmatpush1.bf16.msra.mxu0 %v953
    %1052 = vmatprep.subr.bf16.mxu0 %v958
    %1053 = vmatpush1.bf16.msra.mxu0 %v957
    %1054 = vmatprep.subr.bf16.mxu0 %v962
    %1055 = vmatpush1.bf16.msra.mxu0 %v961
    %1056 = vmatprep.subr.bf16.mxu0 %v966
    %1057 = vmatpush1.bf16.msra.mxu0 %v965
    %1058 = vmatprep.subr.bf16.mxu0 0
    %1059 = vmatpush1.bf16.msra.mxu0 0
    %1060 = vmatprep.subr.bf16.mxu0 0
    %1061 = vmatpush1.bf16.msra.mxu0 0
    %1062 = vmatprep.subr.bf16.mxu0 0
    %1063 = vmatpush1.bf16.msra.mxu0 0
    %1064 = vmatprep.subr.bf16.mxu0 0
    %1065 = vmatpush1.bf16.msra.mxu0 0
    %1066 = vmatprep.subr.bf16.mxu0 0
    %1067 = vmatpush1.bf16.msra.mxu0 0
    %1068 = vmatprep.subr.bf16.mxu0 0
    %1069 = vmatpush1.bf16.msra.mxu0 0
    %1070 = vmatprep.subr.bf16.mxu0 0
    %1071 = vmatpush1.bf16.msra.mxu0 0
    %1072 = vmatprep.subr.bf16.mxu0 0
    %1073 = vmatpush1.bf16.msra.mxu0 0
    %1074 = vmatprep.mubr.bf16.mxu0 0
    %1075 = vmatmul.mubr.bf16.gmra.mrb[0].mxu0 %v784
    %v1076 = vpop.f32.mrb[0].mxu0
    %v1077 = vadd.f32 %v830, %v1076
    %v1078 = vpop.f32.mrb[0].mxu0
    %v1079 = vadd.f32 %v834, %v1078
    %v1080 = vpop.f32.mrb[0].mxu0
    %v1081 = vadd.f32 %v830, %v1080
    %v1082 = vpop.f32.mrb[0].mxu0
    %v1083 = vadd.f32 %v834, %v1082
    %1084 = vdwg.mxu0
    %1085 = vmatprep.subr.bf16.mxu0 %v591
    %1086 = vmatpush1.bf16.msra.mxu0 %v590
    %1087 = vmatprep.subr.bf16.mxu0 %v595
    %1088 = vmatpush1.bf16.msra.mxu0 %v594
    %1089 = vmatprep.subr.bf16.mxu0 %v599
    %1090 = vmatpush1.bf16.msra.mxu0 %v598
    %1091 = vmatprep.subr.bf16.mxu0 %v603
    %1092 = vmatpush1.bf16.msra.mxu0 %v602
    %1093 = vmatprep.subr.bf16.mxu0 %v607
    %1094 = vmatpush1.bf16.msra.mxu0 %v606
    %1095 = vmatprep.subr.bf16.mxu0 %v611
    %1096 = vmatpush1.bf16.msra.mxu0 %v610
    %1097 = vmatprep.subr.bf16.mxu0 %v615
    %1098 = vmatpush1.bf16.msra.mxu0 %v614
    %1099 = vmatprep.subr.bf16.mxu0 %v619
    %1100 = vmatpush1.bf16.msra.mxu0 %v618
    %1101 = vmatprep.subr.bf16.mxu0 0
    %1102 = vmatpush1.bf16.msra.mxu0 0
    %1103 = vmatprep.subr.bf16.mxu0 0
    %1104 = vmatpush1.bf16.msra.mxu0 0
    %1105 = vmatprep.subr.bf16.mxu0 0
    %1106 = vmatpush1.bf16.msra.mxu0 0
    %1107 = vmatprep.subr.bf16.mxu0 0
    %1108 = vmatpush1.bf16.msra.mxu0 0
    %1109 = vmatprep.subr.bf16.mxu0 0
    %1110 = vmatpush1.bf16.msra.mxu0 0
    %1111 = vmatprep.subr.bf16.mxu0 0
    %1112 = vmatpush1.bf16.msra.mxu0 0
    %1113 = vmatprep.subr.bf16.mxu0 0
    %1114 = vmatpush1.bf16.msra.mxu0 0
    %1115 = vmatprep.subr.bf16.mxu0 0
    %1116 = vmatpush1.bf16.msra.mxu0 0
    %1117 = vmatprep.mubr.bf16.mxu0 0
    %1118 = vmatmul.mubr.bf16.gmra.mrb[0].mxu0 %v784
    %v1119 = vpop.f32.mrb[0].mxu0
    %v1120 = vadd.f32 0.0, %v1119
    %v1121 = vpop.f32.mrb[0].mxu0
    %v1122 = vadd.f32 0.0, %v1121
    %v1123 = vpop.f32.mrb[0].mxu0
    %v1124 = vadd.f32 0.0, %v1123
    %v1125 = vpop.f32.mrb[0].mxu0
    %v1126 = vadd.f32 0.0, %v1125
    %1127 = vdwg.mxu0
    %1128 = vmatprep.subr.bf16.mxu0 %v593
    %1129 = vmatpush1.bf16.msra.mxu0 %v592
    %1130 = vmatprep.subr.bf16.mxu0 %v597
    %1131 = vmatpush1.bf16.msra.mxu0 %v596
    %1132 = vmatprep.subr.bf16.mxu0 %v601
    %1133 = vmatpush1.bf16.msra.mxu0 %v600
    %1134 = vmatprep.subr.bf16.mxu0 %v605
    %1135 = vmatpush1.bf16.msra.mxu0 %v604
    %1136 = vmatprep.subr.bf16.mxu0 %v609
    %1137 = vmatpush1.bf16.msra.mxu0 %v608
    %1138 = vmatprep.subr.bf16.mxu0 %v613
    %1139 = vmatpush1.bf16.msra.mxu0 %v612
    %1140 = vmatprep.subr.bf16.mxu0 %v617
    %1141 = vmatpush1.bf16.msra.mxu0 %v616
    %1142 = vmatprep.subr.bf16.mxu0 %v621
    %1143 = vmatpush1.bf16.msra.mxu0 %v620
    %1144 = vmatprep.subr.bf16.mxu0 0
    %1145 = vmatpush1.bf16.msra.mxu0 0
    %1146 = vmatprep.subr.bf16.mxu0 0
    %1147 = vmatpush1.bf16.msra.mxu0 0
    %1148 = vmatprep.subr.bf16.mxu0 0
    %1149 = vmatpush1.bf16.msra.mxu0 0
    %1150 = vmatprep.subr.bf16.mxu0 0
    %1151 = vmatpush1.bf16.msra.mxu0 0
    %1152 = vmatprep.subr.bf16.mxu0 0
    %1153 = vmatpush1.bf16.msra.mxu0 0
    %1154 = vmatprep.subr.bf16.mxu0 0
    %1155 = vmatpush1.bf16.msra.mxu0 0
    %1156 = vmatprep.subr.bf16.mxu0 0
    %1157 = vmatpush1.bf16.msra.mxu0 0
    %1158 = vmatprep.subr.bf16.mxu0 0
    %1159 = vmatpush1.bf16.msra.mxu0 0
    %1160 = vmatprep.mubr.bf16.mxu0 0
    %1161 = vmatmul.mubr.bf16.gmra.mrb[0].mxu0 %v784
    %v1162 = vpop.f32.mrb[0].mxu0
    %v1163 = vadd.f32 0.0, %v1162
    %v1164 = vpop.f32.mrb[0].mxu0
    %v1165 = vadd.f32 0.0, %v1164
    %v1166 = vpop.f32.mrb[0].mxu0
    %v1167 = vadd.f32 0.0, %v1166
    %v1168 = vpop.f32.mrb[0].mxu0
    %v1169 = vadd.f32 0.0, %v1168
    %1170 = vdwg.mxu0
    %v1171 = vadd.f32 %v281, %v1120
    %v1172 = vadd.f32 %v283, %v1122
    %v1173 = vadd.f32 %v394, %v1163
    %v1174 = vadd.f32 %v396, %v1165
    %v1175 = vadd.f32 %v285, %v1124
    %v1176 = vadd.f32 %v287, %v1126
    %v1177 = vadd.f32 %v398, %v1167
    %v1178 = vadd.f32 %v400, %v1169
    %v1179 = vmul.f32 %v1171, 0.5
    %v1180 = vmul.f32 %v1175, 0.5
    %v1181 = vtanh.pop %v1179
    %v1182 = vtanh.pop %v1180
    %v1183 = vadd.f32 %v1181, 1.0
    %v1184 = vadd.f32 %v1182, 1.0
    %v1185 = vmul.f32 %v1183, 0.5
    %v1186 = vmul.f32 %v1184, 0.5
    %v1187 = vmul.f32 %v1172, 0.5
    %v1188 = vmul.f32 %v1176, 0.5
    %v1189 = vtanh.pop %v1187
    %v1190 = vtanh.pop %v1188
    %v1191 = vadd.f32 %v1189, 1.0
    %v1192 = vadd.f32 %v1190, 1.0
    %v1193 = vmul.f32 %v1191, 0.5
    %v1194 = vmul.f32 %v1192, 0.5
    %v1195 = vtanh.pop %v1173
    %v1196 = vtanh.pop %v1177
    %v1197 = vmul.f32 %v1174, 0.5
    %v1198 = vmul.f32 %v1178, 0.5
    %v1199 = vtanh.pop %v1197
    %v1200 = vtanh.pop %v1198
    %v1201 = vadd.f32 %v1199, 1.0
    %v1202 = vadd.f32 %v1200, 1.0
    %v1203 = vmul.f32 %v1201, 0.5
    %v1204 = vmul.f32 %v1202, 0.5
    %v1205 = vmul.f32 %v1193, %v778
    %v1206 = vmul.f32 %v1194, %v779
    %v1207 = vmul.f32 %v1185, %v1195
    %v1208 = vmul.f32 %v1186, %v1196
    %v1209 = vadd.f32 %v1205, %v1207
    %v1210 = vadd.f32 %v1206, %v1208
    %v1211 = vtanh.pop %v1209
    %v1212 = vtanh.pop %v1210
    %v1213 = vmul.f32 %v1203, %v1211
    %v1214 = vmul.f32 %v1204, %v1212
    %v1215 = vld [vmem:[#allocation10] sm:$0xff]
    %v1216 = vld [vmem:[#allocation10 + $0x8] sm:$0xff]
    %v1217 = vld [vmem:[#allocation10 + $0x10] sm:$0xff]
    %v1218 = vld [vmem:[#allocation10 + $0x18] sm:$0xff]
    %v1219 = vld [vmem:[#allocation10 + $0x20] sm:$0xff]
    %v1220 = vld [vmem:[#allocation10 + $0x28] sm:$0xff]
    %v1221 = vld [vmem:[#allocation10 + $0x30] sm:$0xff]
    %v1222 = vld [vmem:[#allocation10 + $0x38] sm:$0xff]
    %v1223 = vld [vmem:[#allocation10 + $0x40] sm:$0xff]
    %v1224 = vld [vmem:[#allocation10 + $0x48] sm:$0xff]
    %v1225 = vld [vmem:[#allocation10 + $0x50] sm:$0xff]
    %v1226 = vld [vmem:[#allocation10 + $0x58] sm:$0xff]
    %v1227 = vld [vmem:[#allocation10 + $0x60] sm:$0xff]
    %v1228 = vld [vmem:[#allocation10 + $0x68] sm:$0xff]
    %v1229 = vld [vmem:[#allocation10 + $0x70] sm:$0xff]
    %v1230 = vld [vmem:[#allocation10 + $0x78] sm:$0xff]
    %v1231 = vld [vmem:[#allocation10 + $0x80] sm:$0xff]
    %v1232 = vld [vmem:[#allocation10 + $0x88] sm:$0xff]
    %v1233 = vld [vmem:[#allocation10 + $0x90] sm:$0xff]
    %v1234 = vld [vmem:[#allocation10 + $0x98] sm:$0xff]
    %v1235 = vld [vmem:[#allocation10 + $0xa0] sm:$0xff]
    %v1236 = vld [vmem:[#allocation10 + $0xa8] sm:$0xff]
    %v1237 = vld [vmem:[#allocation10 + $0xb0] sm:$0xff]
    %v1238 = vld [vmem:[#allocation10 + $0xb8] sm:$0xff]
    %v1239 = vld [vmem:[#allocation10 + $0xc0] sm:$0xff]
    %v1240 = vld [vmem:[#allocation10 + $0xc8] sm:$0xff]
    %v1241 = vld [vmem:[#allocation10 + $0xd0] sm:$0xff]
    %v1242 = vld [vmem:[#allocation10 + $0xd8] sm:$0xff]
    %v1243 = vld [vmem:[#allocation10 + $0xe0] sm:$0xff]
    %v1244 = vld [vmem:[#allocation10 + $0xe8] sm:$0xff]
    %v1245 = vld [vmem:[#allocation10 + $0xf0] sm:$0xff]
    %v1246 = vld [vmem:[#allocation10 + $0xf8] sm:$0xff]
    %v1279 = vunpack.c.l.b16 %v1215
    %v1280 = vunpack.c.h.b16 %v1215
    %v1281 = vunpack.c.l.b16 %v1216
    %v1282 = vunpack.c.h.b16 %v1216
    %v1283 = vunpack.c.l.b16 %v1217
    %v1284 = vunpack.c.h.b16 %v1217
    %v1285 = vunpack.c.l.b16 %v1218
    %v1286 = vunpack.c.h.b16 %v1218
    %v1287 = vunpack.c.l.b16 %v1219
    %v1288 = vunpack.c.h.b16 %v1219
    %v1289 = vunpack.c.l.b16 %v1220
    %v1290 = vunpack.c.h.b16 %v1220
    %v1291 = vunpack.c.l.b16 %v1221
    %v1292 = vunpack.c.h.b16 %v1221
    %v1293 = vunpack.c.l.b16 %v1222
    %v1294 = vunpack.c.h.b16 %v1222
    %v1295 = vunpack.c.l.b16 %v1223
    %v1296 = vunpack.c.h.b16 %v1223
    %v1297 = vunpack.c.l.b16 %v1224
    %v1298 = vunpack.c.h.b16 %v1224
    %v1299 = vunpack.c.l.b16 %v1225
    %v1300 = vunpack.c.h.b16 %v1225
    %v1301 = vunpack.c.l.b16 %v1226
    %v1302 = vunpack.c.h.b16 %v1226
    %v1303 = vunpack.c.l.b16 %v1227
    %v1304 = vunpack.c.h.b16 %v1227
    %v1305 = vunpack.c.l.b16 %v1228
    %v1306 = vunpack.c.h.b16 %v1228
    %v1307 = vunpack.c.l.b16 %v1229
    %v1308 = vunpack.c.h.b16 %v1229
    %v1309 = vunpack.c.l.b16 %v1230
    %v1310 = vunpack.c.h.b16 %v1230
    %v1311 = vunpack.c.l.b16 %v1231
    %v1312 = vunpack.c.h.b16 %v1231
    %v1313 = vunpack.c.l.b16 %v1232
    %v1314 = vunpack.c.h.b16 %v1232
    %v1315 = vunpack.c.l.b16 %v1233
    %v1316 = vunpack.c.h.b16 %v1233
    %v1317 = vunpack.c.l.b16 %v1234
    %v1318 = vunpack.c.h.b16 %v1234
    %v1319 = vunpack.c.l.b16 %v1235
    %v1320 = vunpack.c.h.b16 %v1235
    %v1321 = vunpack.c.l.b16 %v1236
    %v1322 = vunpack.c.h.b16 %v1236
    %v1323 = vunpack.c.l.b16 %v1237
    %v1324 = vunpack.c.h.b16 %v1237
    %v1325 = vunpack.c.l.b16 %v1238
    %v1326 = vunpack.c.h.b16 %v1238
    %v1327 = vunpack.c.l.b16 %v1239
    %v1328 = vunpack.c.h.b16 %v1239
    %v1329 = vunpack.c.l.b16 %v1240
    %v1330 = vunpack.c.h.b16 %v1240
    %v1331 = vunpack.c.l.b16 %v1241
    %v1332 = vunpack.c.h.b16 %v1241
    %v1333 = vunpack.c.l.b16 %v1242
    %v1334 = vunpack.c.h.b16 %v1242
    %v1335 = vunpack.c.l.b16 %v1243
    %v1336 = vunpack.c.h.b16 %v1243
    %v1337 = vunpack.c.l.b16 %v1244
    %v1338 = vunpack.c.h.b16 %v1244
    %v1339 = vunpack.c.l.b16 %v1245
    %v1340 = vunpack.c.h.b16 %v1245
    %v1341 = vunpack.c.l.b16 %v1246
    %v1342 = vunpack.c.h.b16 %v1246
    %v1343 = vpack.c.b16 %v1283, %v1279
    %v1344 = vpack.c.b16 %v1284, %v1280
    %v1345 = vpack.c.b16 %v1285, %v1281
    %v1346 = vpack.c.b16 %v1286, %v1282
    %v1347 = vpack.c.b16 %v1291, %v1287
    %v1348 = vpack.c.b16 %v1292, %v1288
    %v1349 = vpack.c.b16 %v1293, %v1289
    %v1350 = vpack.c.b16 %v1294, %v1290
    %v1351 = vpack.c.b16 %v1299, %v1295
    %v1352 = vpack.c.b16 %v1300, %v1296
    %v1353 = vpack.c.b16 %v1301, %v1297
    %v1354 = vpack.c.b16 %v1302, %v1298
    %v1355 = vpack.c.b16 %v1307, %v1303
    %v1356 = vpack.c.b16 %v1308, %v1304
    %v1357 = vpack.c.b16 %v1309, %v1305
    %v1358 = vpack.c.b16 %v1310, %v1306
    %v1359 = vpack.c.b16 %v1315, %v1311
    %v1360 = vpack.c.b16 %v1316, %v1312
    %v1361 = vpack.c.b16 %v1317, %v1313
    %v1362 = vpack.c.b16 %v1318, %v1314
    %v1363 = vpack.c.b16 %v1323, %v1319
    %v1364 = vpack.c.b16 %v1324, %v1320
    %v1365 = vpack.c.b16 %v1325, %v1321
    %v1366 = vpack.c.b16 %v1326, %v1322
    %v1367 = vpack.c.b16 %v1331, %v1327
    %v1368 = vpack.c.b16 %v1332, %v1328
    %v1369 = vpack.c.b16 %v1333, %v1329
    %v1370 = vpack.c.b16 %v1334, %v1330
    %v1371 = vpack.c.b16 %v1339, %v1335
    %v1372 = vpack.c.b16 %v1340, %v1336
    %v1373 = vpack.c.b16 %v1341, %v1337
    %v1374 = vpack.c.b16 %v1342, %v1338
    %1407 = vmatprep.subr.bf16.mxu0 %v1344
    %1408 = vmatpush1.bf16.msra.mxu0 %v1343
    %1409 = vmatprep.subr.bf16.mxu0 %v1348
    %1410 = vmatpush1.bf16.msra.mxu0 %v1347
    %1411 = vmatprep.subr.bf16.mxu0 %v1352
    %1412 = vmatpush1.bf16.msra.mxu0 %v1351
    %1413 = vmatprep.subr.bf16.mxu0 %v1356
    %1414 = vmatpush1.bf16.msra.mxu0 %v1355
    %1415 = vmatprep.subr.bf16.mxu0 %v1360
    %1416 = vmatpush1.bf16.msra.mxu0 %v1359
    %1417 = vmatprep.subr.bf16.mxu0 %v1364
    %1418 = vmatpush1.bf16.msra.mxu0 %v1363
    %1419 = vmatprep.subr.bf16.mxu0 %v1368
    %1420 = vmatpush1.bf16.msra.mxu0 %v1367
    %1421 = vmatprep.subr.bf16.mxu0 %v1372
    %1422 = vmatpush1.bf16.msra.mxu0 %v1371
    %1423 = vmatprep.subr.bf16.mxu0 0
    %1424 = vmatpush1.bf16.msra.mxu0 0
    %1425 = vmatprep.subr.bf16.mxu0 0
    %1426 = vmatpush1.bf16.msra.mxu0 0
    %1427 = vmatprep.subr.bf16.mxu0 0
    %1428 = vmatpush1.bf16.msra.mxu0 0
    %1429 = vmatprep.subr.bf16.mxu0 0
    %1430 = vmatpush1.bf16.msra.mxu0 0
    %1431 = vmatprep.subr.bf16.mxu0 0
    %1432 = vmatpush1.bf16.msra.mxu0 0
    %1433 = vmatprep.subr.bf16.mxu0 0
    %1434 = vmatpush1.bf16.msra.mxu0 0
    %1435 = vmatprep.subr.bf16.mxu0 0
    %1436 = vmatpush1.bf16.msra.mxu0 0
    %1437 = vmatprep.subr.bf16.mxu0 0
    %1438 = vmatpush1.bf16.msra.mxu0 0
    %1439 = vmatprep.mubr.bf16.mxu0 0
    %1440 = vmatmul.mubr.bf16.gmra.mrb[0].mxu0 0
    %v1441 = vpop.f32.mrb[0].mxu0
    %v1442 = vadd.f32 0.0, %v1441
    %v1443 = vpop.f32.mrb[0].mxu0
    %v1444 = vadd.f32 0.0, %v1443
    %v1445 = vpop.f32.mrb[0].mxu0
    %v1446 = vadd.f32 0.0, %v1445
    %v1447 = vpop.f32.mrb[0].mxu0
    %v1448 = vadd.f32 0.0, %v1447
    %1449 = vdwg.mxu0
    %1450 = vmatprep.subr.bf16.mxu0 %v1346
    %1451 = vmatpush1.bf16.msra.mxu0 %v1345
    %1452 = vmatprep.subr.bf16.mxu0 %v1350
    %1453 = vmatpush1.bf16.msra.mxu0 %v1349
    %1454 = vmatprep.subr.bf16.mxu0 %v1354
    %1455 = vmatpush1.bf16.msra.mxu0 %v1353
    %1456 = vmatprep.subr.bf16.mxu0 %v1358
    %1457 = vmatpush1.bf16.msra.mxu0 %v1357
    %1458 = vmatprep.subr.bf16.mxu0 %v1362
    %1459 = vmatpush1.bf16.msra.mxu0 %v1361
    %1460 = vmatprep.subr.bf16.mxu0 %v1366
    %1461 = vmatpush1.bf16.msra.mxu0 %v1365
    %1462 = vmatprep.subr.bf16.mxu0 %v1370
    %1463 = vmatpush1.bf16.msra.mxu0 %v1369
    %1464 = vmatprep.subr.bf16.mxu0 %v1374
    %1465 = vmatpush1.bf16.msra.mxu0 %v1373
    %1466 = vmatprep.subr.bf16.mxu0 0
    %1467 = vmatpush1.bf16.msra.mxu0 0
    %1468 = vmatprep.subr.bf16.mxu0 0
    %1469 = vmatpush1.bf16.msra.mxu0 0
    %1470 = vmatprep.subr.bf16.mxu0 0
    %1471 = vmatpush1.bf16.msra.mxu0 0
    %1472 = vmatprep.subr.bf16.mxu0 0
    %1473 = vmatpush1.bf16.msra.mxu0 0
    %1474 = vmatprep.subr.bf16.mxu0 0
    %1475 = vmatpush1.bf16.msra.mxu0 0
    %1476 = vmatprep.subr.bf16.mxu0 0
    %1477 = vmatpush1.bf16.msra.mxu0 0
    %1478 = vmatprep.subr.bf16.mxu0 0
    %1479 = vmatpush1.bf16.msra.mxu0 0
    %1480 = vmatprep.subr.bf16.mxu0 0
    %1481 = vmatpush1.bf16.msra.mxu0 0
    %1482 = vmatprep.mubr.bf16.mxu0 0
    %1483 = vmatmul.mubr.bf16.gmra.mrb[0].mxu0 0
    %v1484 = vpop.f32.mrb[0].mxu0
    %v1485 = vadd.f32 0.0, %v1484
    %v1486 = vpop.f32.mrb[0].mxu0
    %v1487 = vadd.f32 0.0, %v1486
    %v1488 = vpop.f32.mrb[0].mxu0
    %v1489 = vadd.f32 0.0, %v1488
    %v1490 = vpop.f32.mrb[0].mxu0
    %v1491 = vadd.f32 0.0, %v1490
    %1492 = vdwg.mxu0
    %v1493 = vadd.f32 %v1034, %v1442
    %v1494 = vadd.f32 %v1036, %v1444
    %v1495 = vadd.f32 %v1077, %v1485
    %v1496 = vadd.f32 %v1079, %v1487
    %v1497 = vadd.f32 %v1038, %v1446
    %v1498 = vadd.f32 %v1040, %v1448
    %v1499 = vadd.f32 %v1081, %v1489
    %v1500 = vadd.f32 %v1083, %v1491
    %v1501 = vmul.f32 %v1493, 0.5
    %v1502 = vmul.f32 %v1497, 0.5
    %v1503 = vtanh.pop %v1501
    %v1504 = vtanh.pop %v1502
    %v1505 = vadd.f32 %v1503, 1.0
    %v1506 = vadd.f32 %v1504, 1.0
    %v1507 = vmul.f32 %v1505, 0.5
    %v1508 = vmul.f32 %v1506, 0.5
    %v1509 = vmul.f32 %v1494, 0.5
    %v1510 = vmul.f32 %v1498, 0.5
    %v1511 = vtanh.pop %v1509
    %v1512 = vtanh.pop %v1510
    %v1513 = vadd.f32 %v1511, 1.0
    %v1514 = vadd.f32 %v1512, 1.0
    %v1515 = vmul.f32 %v1513, 0.5
    %v1516 = vmul.f32 %v1514, 0.5
    %v1517 = vtanh.pop %v1495
    %v1518 = vtanh.pop %v1499
    %v1519 = vmul.f32 %v1496, 0.5
    %v1520 = vmul.f32 %v1500, 0.5
    %v1521 = vtanh.pop %v1519
    %v1522 = vtanh.pop %v1520
    %v1523 = vadd.f32 %v1521, 1.0
    %v1524 = vadd.f32 %v1522, 1.0
    %v1525 = vmul.f32 %v1523, 0.5
    %v1526 = vmul.f32 %v1524, 0.5
    %v1527 = vmul.f32 %v1515, 0.0
    %v1528 = vmul.f32 %v1516, 0.0
    %v1529 = vmul.f32 %v1507, %v1517
    %v1530 = vmul.f32 %v1508, %v1518
    %v1531 = vadd.f32 %v1527, %v1529
    %v1532 = vadd.f32 %v1528, %v1530
    %v1533 = vtanh.pop %v1531
    %v1534 = vtanh.pop %v1532
    %v1535 = vmul.f32 %v1525, %v1533
    %v1536 = vmul.f32 %v1526, %v1534
    %v1537 = vpack.c.bf16 %v1214, %v1213
    %1538 = vmatprep.subr.bf16.mxu0 %v936
    %1539 = vmatpush1.bf16.msra.mxu0 %v935
    %1540 = vmatprep.subr.bf16.mxu0 %v940
    %1541 = vmatpush1.bf16.msra.mxu0 %v939
    %1542 = vmatprep.subr.bf16.mxu0 %v944
    %1543 = vmatpush1.bf16.msra.mxu0 %v943
    %1544 = vmatprep.subr.bf16.mxu0 %v948
    %1545 = vmatpush1.bf16.msra.mxu0 %v947
    %1546 = vmatprep.subr.bf16.mxu0 %v952
    %1547 = vmatpush1.bf16.msra.mxu0 %v951
    %1548 = vmatprep.subr.bf16.mxu0 %v956
    %1549 = vmatpush1.bf16.msra.mxu0 %v955
    %1550 = vmatprep.subr.bf16.mxu0 %v960
    %1551 = vmatpush1.bf16.msra.mxu0 %v959
    %1552 = vmatprep.subr.bf16.mxu0 %v964
    %1553 = vmatpush1.bf16.msra.mxu0 %v963
    %1554 = vmatprep.subr.bf16.mxu0 0
    %1555 = vmatpush1.bf16.msra.mxu0 0
    %1556 = vmatprep.subr.bf16.mxu0 0
    %1557 = vmatpush1.bf16.msra.mxu0 0
    %1558 = vmatprep.subr.bf16.mxu0 0
    %1559 = vmatpush1.bf16.msra.mxu0 0
    %1560 = vmatprep.subr.bf16.mxu0 0
    %1561 = vmatpush1.bf16.msra.mxu0 0
    %1562 = vmatprep.subr.bf16.mxu0 0
    %1563 = vmatpush1.bf16.msra.mxu0 0
    %1564 = vmatprep.subr.bf16.mxu0 0
    %1565 = vmatpush1.bf16.msra.mxu0 0
    %1566 = vmatprep.subr.bf16.mxu0 0
    %1567 = vmatpush1.bf16.msra.mxu0 0
    %1568 = vmatprep.subr.bf16.mxu0 0
    %1569 = vmatpush1.bf16.msra.mxu0 0
    %1570 = vmatprep.mubr.bf16.mxu0 0
    %1571 = vmatmul.mubr.bf16.gmra.mrb[0].mxu0 %v1537
    %v1572 = vpop.f32.mrb[0].mxu0
    %v1573 = vadd.f32 %v822, %v1572
    %v1574 = vpop.f32.mrb[0].mxu0
    %v1575 = vadd.f32 %v826, %v1574
    %v1576 = vpop.f32.mrb[0].mxu0
    %v1577 = vadd.f32 %v822, %v1576
    %v1578 = vpop.f32.mrb[0].mxu0
    %v1579 = vadd.f32 %v826, %v1578
    %1580 = vdwg.mxu0
    %1581 = vmatprep.subr.bf16.mxu0 %v938
    %1582 = vmatpush1.bf16.msra.mxu0 %v937
    %1583 = vmatprep.subr.bf16.mxu0 %v942
    %1584 = vmatpush1.bf16.msra.mxu0 %v941
    %1585 = vmatprep.subr.bf16.mxu0 %v946
    %1586 = vmatpush1.bf16.msra.mxu0 %v945
    %1587 = vmatprep.subr.bf16.mxu0 %v950
    %1588 = vmatpush1.bf16.msra.mxu0 %v949
    %1589 = vmatprep.subr.bf16.mxu0 %v954
    %1590 = vmatpush1.bf16.msra.mxu0 %v953
    %1591 = vmatprep.subr.bf16.mxu0 %v958
    %1592 = vmatpush1.bf16.msra.mxu0 %v957
    %1593 = vmatprep.subr.bf16.mxu0 %v962
    %1594 = vmatpush1.bf16.msra.mxu0 %v961
    %1595 = vmatprep.subr.bf16.mxu0 %v966
    %1596 = vmatpush1.bf16.msra.mxu0 %v965
    %1597 = vmatprep.subr.bf16.mxu0 0
    %1598 = vmatpush1.bf16.msra.mxu0 0
    %1599 = vmatprep.subr.bf16.mxu0 0
    %1600 = vmatpush1.bf16.msra.mxu0 0
    %1601 = vmatprep.subr.bf16.mxu0 0
    %1602 = vmatpush1.bf16.msra.mxu0 0
    %1603 = vmatprep.subr.bf16.mxu0 0
    %1604 = vmatpush1.bf16.msra.mxu0 0
    %1605 = vmatprep.subr.bf16.mxu0 0
    %1606 = vmatpush1.bf16.msra.mxu0 0
    %1607 = vmatprep.subr.bf16.mxu0 0
    %1608 = vmatpush1.bf16.msra.mxu0 0
    %1609 = vmatprep.subr.bf16.mxu0 0
    %1610 = vmatpush1.bf16.msra.mxu0 0
    %1611 = vmatprep.subr.bf16.mxu0 0
    %1612 = vmatpush1.bf16.msra.mxu0 0
    %1613 = vmatprep.mubr.bf16.mxu0 0
    %1614 = vmatmul.mubr.bf16.gmra.mrb[0].mxu0 %v1537
    %v1615 = vpop.f32.mrb[0].mxu0
    %v1616 = vadd.f32 %v830, %v1615
    %v1617 = vpop.f32.mrb[0].mxu0
    %v1618 = vadd.f32 %v834, %v1617
    %v1619 = vpop.f32.mrb[0].mxu0
    %v1620 = vadd.f32 %v830, %v1619
    %v1621 = vpop.f32.mrb[0].mxu0
    %v1622 = vadd.f32 %v834, %v1621
    %1623 = vdwg.mxu0
    %1624 = vmatprep.subr.bf16.mxu0 %v591
    %1625 = vmatpush1.bf16.msra.mxu0 %v590
    %1626 = vmatprep.subr.bf16.mxu0 %v595
    %1627 = vmatpush1.bf16.msra.mxu0 %v594
    %1628 = vmatprep.subr.bf16.mxu0 %v599
    %1629 = vmatpush1.bf16.msra.mxu0 %v598
    %1630 = vmatprep.subr.bf16.mxu0 %v603
    %1631 = vmatpush1.bf16.msra.mxu0 %v602
    %1632 = vmatprep.subr.bf16.mxu0 %v607
    %1633 = vmatpush1.bf16.msra.mxu0 %v606
    %1634 = vmatprep.subr.bf16.mxu0 %v611
    %1635 = vmatpush1.bf16.msra.mxu0 %v610
    %1636 = vmatprep.subr.bf16.mxu0 %v615
    %1637 = vmatpush1.bf16.msra.mxu0 %v614
    %1638 = vmatprep.subr.bf16.mxu0 %v619
    %1639 = vmatpush1.bf16.msra.mxu0 %v618
    %1640 = vmatprep.subr.bf16.mxu0 0
    %1641 = vmatpush1.bf16.msra.mxu0 0
    %1642 = vmatprep.subr.bf16.mxu0 0
    %1643 = vmatpush1.bf16.msra.mxu0 0
    %1644 = vmatprep.subr.bf16.mxu0 0
    %1645 = vmatpush1.bf16.msra.mxu0 0
    %1646 = vmatprep.subr.bf16.mxu0 0
    %1647 = vmatpush1.bf16.msra.mxu0 0
    %1648 = vmatprep.subr.bf16.mxu0 0
    %1649 = vmatpush1.bf16.msra.mxu0 0
    %1650 = vmatprep.subr.bf16.mxu0 0
    %1651 = vmatpush1.bf16.msra.mxu0 0
    %1652 = vmatprep.subr.bf16.mxu0 0
    %1653 = vmatpush1.bf16.msra.mxu0 0
    %1654 = vmatprep.subr.bf16.mxu0 0
    %1655 = vmatpush1.bf16.msra.mxu0 0
    %1656 = vmatprep.mubr.bf16.mxu0 0
    %1657 = vmatmul.mubr.bf16.gmra.mrb[0].mxu0 %v1537
    %v1658 = vpop.f32.mrb[0].mxu0
    %v1659 = vadd.f32 0.0, %v1658
    %v1660 = vpop.f32.mrb[0].mxu0
    %v1661 = vadd.f32 0.0, %v1660
    %v1662 = vpop.f32.mrb[0].mxu0
    %v1663 = vadd.f32 0.0, %v1662
    %v1664 = vpop.f32.mrb[0].mxu0
    %v1665 = vadd.f32 0.0, %v1664
    %1666 = vdwg.mxu0
    %1667 = vmatprep.subr.bf16.mxu0 %v593
    %1668 = vmatpush1.bf16.msra.mxu0 %v592
    %1669 = vmatprep.subr.bf16.mxu0 %v597
    %1670 = vmatpush1.bf16.msra.mxu0 %v596
    %1671 = vmatprep.subr.bf16.mxu0 %v601
    %1672 = vmatpush1.bf16.msra.mxu0 %v600
    %1673 = vmatprep.subr.bf16.mxu0 %v605
    %1674 = vmatpush1.bf16.msra.mxu0 %v604
    %1675 = vmatprep.subr.bf16.mxu0 %v609
    %1676 = vmatpush1.bf16.msra.mxu0 %v608
    %1677 = vmatprep.subr.bf16.mxu0 %v613
    %1678 = vmatpush1.bf16.msra.mxu0 %v612
    %1679 = vmatprep.subr.bf16.mxu0 %v617
    %1680 = vmatpush1.bf16.msra.mxu0 %v616
    %1681 = vmatprep.subr.bf16.mxu0 %v621
    %1682 = vmatpush1.bf16.msra.mxu0 %v620
    %1683 = vmatprep.subr.bf16.mxu0 0
    %1684 = vmatpush1.bf16.msra.mxu0 0
    %1685 = vmatprep.subr.bf16.mxu0 0
    %1686 = vmatpush1.bf16.msra.mxu0 0
    %1687 = vmatprep.subr.bf16.mxu0 0
    %1688 = vmatpush1.bf16.msra.mxu0 0
    %1689 = vmatprep.subr.bf16.mxu0 0
    %1690 = vmatpush1.bf16.msra.mxu0 0
    %1691 = vmatprep.subr.bf16.mxu0 0
    %1692 = vmatpush1.bf16.msra.mxu0 0
    %1693 = vmatprep.subr.bf16.mxu0 0
    %1694 = vmatpush1.bf16.msra.mxu0 0
    %1695 = vmatprep.subr.bf16.mxu0 0
    %1696 = vmatpush1.bf16.msra.mxu0 0
    %1697 = vmatprep.subr.bf16.mxu0 0
    %1698 = vmatpush1.bf16.msra.mxu0 0
    %1699 = vmatprep.mubr.bf16.mxu0 0
    %1700 = vmatmul.mubr.bf16.gmra.mrb[0].mxu0 %v1537
    %v1701 = vpop.f32.mrb[0].mxu0
    %v1702 = vadd.f32 0.0, %v1701
    %v1703 = vpop.f32.mrb[0].mxu0
    %v1704 = vadd.f32 0.0, %v1703
    %v1705 = vpop.f32.mrb[0].mxu0
    %v1706 = vadd.f32 0.0, %v1705
    %v1707 = vpop.f32.mrb[0].mxu0
    %v1708 = vadd.f32 0.0, %v1707
    %1709 = vdwg.mxu0
    %v1710 = vadd.f32 %v291, %v1659
    %v1711 = vadd.f32 %v293, %v1661
    %v1712 = vadd.f32 %v404, %v1702
    %v1713 = vadd.f32 %v406, %v1704
    %v1714 = vadd.f32 %v295, %v1663
    %v1715 = vadd.f32 %v297, %v1665
    %v1716 = vadd.f32 %v408, %v1706
    %v1717 = vadd.f32 %v410, %v1708
    %v1718 = vmul.f32 %v1710, 0.5
    %v1719 = vmul.f32 %v1714, 0.5
    %v1720 = vtanh.pop %v1718
    %v1721 = vtanh.pop %v1719
    %v1722 = vadd.f32 %v1720, 1.0
    %v1723 = vadd.f32 %v1721, 1.0
    %v1724 = vmul.f32 %v1722, 0.5
    %v1725 = vmul.f32 %v1723, 0.5
    %v1726 = vmul.f32 %v1711, 0.5
    %v1727 = vmul.f32 %v1715, 0.5
    %v1728 = vtanh.pop %v1726
    %v1729 = vtanh.pop %v1727
    %v1730 = vadd.f32 %v1728, 1.0
    %v1731 = vadd.f32 %v1729, 1.0
    %v1732 = vmul.f32 %v1730, 0.5
    %v1733 = vmul.f32 %v1731, 0.5
    %v1734 = vtanh.pop %v1712
    %v1735 = vtanh.pop %v1716
    %v1736 = vmul.f32 %v1713, 0.5
    %v1737 = vmul.f32 %v1717, 0.5
    %v1738 = vtanh.pop %v1736
    %v1739 = vtanh.pop %v1737
    %v1740 = vadd.f32 %v1738, 1.0
    %v1741 = vadd.f32 %v1739, 1.0
    %v1742 = vmul.f32 %v1740, 0.5
    %v1743 = vmul.f32 %v1741, 0.5
    %v1744 = vmul.f32 %v1732, %v1209
    %v1745 = vmul.f32 %v1733, %v1210
    %v1746 = vmul.f32 %v1724, %v1734
    %v1747 = vmul.f32 %v1725, %v1735
    %v1748 = vadd.f32 %v1744, %v1746
    %v1749 = vadd.f32 %v1745, %v1747
    %v1750 = vtanh.pop %v1748
    %v1751 = vtanh.pop %v1749
    %v1752 = vmul.f32 %v1742, %v1750
    %v1753 = vmul.f32 %v1743, %v1751
    %v1754 = vpack.c.bf16 %v1536, %v1535
    %1755 = vmatprep.subr.bf16.mxu0 %v1344
    %1756 = vmatpush1.bf16.msra.mxu0 %v1343
    %1757 = vmatprep.subr.bf16.mxu0 %v1348
    %1758 = vmatpush1.bf16.msra.mxu0 %v1347
    %1759 = vmatprep.subr.bf16.mxu0 %v1352
    %1760 = vmatpush1.bf16.msra.mxu0 %v1351
    %1761 = vmatprep.subr.bf16.mxu0 %v1356
    %1762 = vmatpush1.bf16.msra.mxu0 %v1355
    %1763 = vmatprep.subr.bf16.mxu0 %v1360
    %1764 = vmatpush1.bf16.msra.mxu0 %v1359
    %1765 = vmatprep.subr.bf16.mxu0 %v1364
    %1766 = vmatpush1.bf16.msra.mxu0 %v1363
    %1767 = vmatprep.subr.bf16.mxu0 %v1368
    %1768 = vmatpush1.bf16.msra.mxu0 %v1367
    %1769 = vmatprep.subr.bf16.mxu0 %v1372
    %1770 = vmatpush1.bf16.msra.mxu0 %v1371
    %1771 = vmatprep.subr.bf16.mxu0 0
    %1772 = vmatpush1.bf16.msra.mxu0 0
    %1773 = vmatprep.subr.bf16.mxu0 0
    %1774 = vmatpush1.bf16.msra.mxu0 0
    %1775 = vmatprep.subr.bf16.mxu0 0
    %1776 = vmatpush1.bf16.msra.mxu0 0
    %1777 = vmatprep.subr.bf16.mxu0 0
    %1778 = vmatpush1.bf16.msra.mxu0 0
    %1779 = vmatprep.subr.bf16.mxu0 0
    %1780 = vmatpush1.bf16.msra.mxu0 0
    %1781 = vmatprep.subr.bf16.mxu0 0
    %1782 = vmatpush1.bf16.msra.mxu0 0
    %1783 = vmatprep.subr.bf16.mxu0 0
    %1784 = vmatpush1.bf16.msra.mxu0 0
    %1785 = vmatprep.subr.bf16.mxu0 0
    %1786 = vmatpush1.bf16.msra.mxu0 0
    %1787 = vmatprep.mubr.bf16.mxu0 0
    %1788 = vmatmul.mubr.bf16.gmra.mrb[0].mxu0 %v1754
    %v1789 = vpop.f32.mrb[0].mxu0
    %v1790 = vadd.f32 0.0, %v1789
    %v1791 = vpop.f32.mrb[0].mxu0
    %v1792 = vadd.f32 0.0, %v1791
    %v1793 = vpop.f32.mrb[0].mxu0
    %v1794 = vadd.f32 0.0, %v1793
    %v1795 = vpop.f32.mrb[0].mxu0
    %v1796 = vadd.f32 0.0, %v1795
    %1797 = vdwg.mxu0
    %1798 = vmatprep.subr.bf16.mxu0 %v1346
    %1799 = vmatpush1.bf16.msra.mxu0 %v1345
    %1800 = vmatprep.subr.bf16.mxu0 %v1350
    %1801 = vmatpush1.bf16.msra.mxu0 %v1349
    %1802 = vmatprep.subr.bf16.mxu0 %v1354
    %1803 = vmatpush1.bf16.msra.mxu0 %v1353
    %1804 = vmatprep.subr.bf16.mxu0 %v1358
    %1805 = vmatpush1.bf16.msra.mxu0 %v1357
    %1806 = vmatprep.subr.bf16.mxu0 %v1362
    %1807 = vmatpush1.bf16.msra.mxu0 %v1361
    %1808 = vmatprep.subr.bf16.mxu0 %v1366
    %1809 = vmatpush1.bf16.msra.mxu0 %v1365
    %1810 = vmatprep.subr.bf16.mxu0 %v1370
    %1811 = vmatpush1.bf16.msra.mxu0 %v1369
    %1812 = vmatprep.subr.bf16.mxu0 %v1374
    %1813 = vmatpush1.bf16.msra.mxu0 %v1373
    %1814 = vmatprep.subr.bf16.mxu0 0
    %1815 = vmatpush1.bf16.msra.mxu0 0
    %1816 = vmatprep.subr.bf16.mxu0 0
    %1817 = vmatpush1.bf16.msra.mxu0 0
    %1818 = vmatprep.subr.bf16.mxu0 0
    %1819 = vmatpush1.bf16.msra.mxu0 0
    %1820 = vmatprep.subr.bf16.mxu0 0
    %1821 = vmatpush1.bf16.msra.mxu0 0
    %1822 = vmatprep.subr.bf16.mxu0 0
    %1823 = vmatpush1.bf16.msra.mxu0 0
    %1824 = vmatprep.subr.bf16.mxu0 0
    %1825 = vmatpush1.bf16.msra.mxu0 0
    %1826 = vmatprep.subr.bf16.mxu0 0
    %1827 = vmatpush1.bf16.msra.mxu0 0
    %1828 = vmatprep.subr.bf16.mxu0 0
    %1829 = vmatpush1.bf16.msra.mxu0 0
    %1830 = vmatprep.mubr.bf16.mxu0 0
    %1831 = vmatmul.mubr.bf16.gmra.mrb[0].mxu0 %v1754
    %v1832 = vpop.f32.mrb[0].mxu0
    %v1833 = vadd.f32 0.0, %v1832
    %v1834 = vpop.f32.mrb[0].mxu0
    %v1835 = vadd.f32 0.0, %v1834
    %v1836 = vpop.f32.mrb[0].mxu0
    %v1837 = vadd.f32 0.0, %v1836
    %v1838 = vpop.f32.mrb[0].mxu0
    %v1839 = vadd.f32 0.0, %v1838
    %1840 = vdwg.mxu0
    %v1841 = vadd.f32 %v1573, %v1790
    %v1842 = vadd.f32 %v1575, %v1792
    %v1843 = vadd.f32 %v1616, %v1833
    %v1844 = vadd.f32 %v1618, %v1835
    %v1845 = vadd.f32 %v1577, %v1794
    %v1846 = vadd.f32 %v1579, %v1796
    %v1847 = vadd.f32 %v1620, %v1837
    %v1848 = vadd.f32 %v1622, %v1839
    %v1849 = vmul.f32 %v1841, 0.5
    %v1850 = vmul.f32 %v1845, 0.5
    %v1851 = vtanh.pop %v1849
    %v1852 = vtanh.pop %v1850
    %v1853 = vadd.f32 %v1851, 1.0
    %v1854 = vadd.f32 %v1852, 1.0
    %v1855 = vmul.f32 %v1853, 0.5
    %v1856 = vmul.f32 %v1854, 0.5
    %v1857 = vmul.f32 %v1842, 0.5
    %v1858 = vmul.f32 %v1846, 0.5
    %v1859 = vtanh.pop %v1857
    %v1860 = vtanh.pop %v1858
    %v1861 = vadd.f32 %v1859, 1.0
    %v1862 = vadd.f32 %v1860, 1.0
    %v1863 = vmul.f32 %v1861, 0.5
    %v1864 = vmul.f32 %v1862, 0.5
    %v1865 = vtanh.pop %v1843
    %v1866 = vtanh.pop %v1847
    %v1867 = vmul.f32 %v1844, 0.5
    %v1868 = vmul.f32 %v1848, 0.5
    %v1869 = vtanh.pop %v1867
    %v1870 = vtanh.pop %v1868
    %v1871 = vadd.f32 %v1869, 1.0
    %v1872 = vadd.f32 %v1870, 1.0
    %v1873 = vmul.f32 %v1871, 0.5
    %v1874 = vmul.f32 %v1872, 0.5
    %v1875 = vmul.f32 %v1863, %v1531
    %v1876 = vmul.f32 %v1864, %v1532
    %v1877 = vmul.f32 %v1855, %v1865
    %v1878 = vmul.f32 %v1856, %v1866
    %v1879 = vadd.f32 %v1875, %v1877
    %v1880 = vadd.f32 %v1876, %v1878
    %v1881 = vtanh.pop %v1879
    %v1882 = vtanh.pop %v1880
    %v1883 = vmul.f32 %v1873, %v1881
    %v1884 = vmul.f32 %v1874, %v1882
    %v1885 = vpack.c.bf16 %v1753, %v1752
    %1886 = vmatprep.subr.bf16.mxu0 %v936
    %1887 = vmatpush1.bf16.msra.mxu0 %v935
    %1888 = vmatprep.subr.bf16.mxu0 %v940
    %1889 = vmatpush1.bf16.msra.mxu0 %v939
    %1890 = vmatprep.subr.bf16.mxu0 %v944
    %1891 = vmatpush1.bf16.msra.mxu0 %v943
    %1892 = vmatprep.subr.bf16.mxu0 %v948
    %1893 = vmatpush1.bf16.msra.mxu0 %v947
    %1894 = vmatprep.subr.bf16.mxu0 %v952
    %1895 = vmatpush1.bf16.msra.mxu0 %v951
    %1896 = vmatprep.subr.bf16.mxu0 %v956
    %1897 = vmatpush1.bf16.msra.mxu0 %v955
    %1898 = vmatprep.subr.bf16.mxu0 %v960
    %1899 = vmatpush1.bf16.msra.mxu0 %v959
    %1900 = vmatprep.subr.bf16.mxu0 %v964
    %1901 = vmatpush1.bf16.msra.mxu0 %v963
    %1902 = vmatprep.subr.bf16.mxu0 0
    %1903 = vmatpush1.bf16.msra.mxu0 0
    %1904 = vmatprep.subr.bf16.mxu0 0
    %1905 = vmatpush1.bf16.msra.mxu0 0
    %1906 = vmatprep.subr.bf16.mxu0 0
    %1907 = vmatpush1.bf16.msra.mxu0 0
    %1908 = vmatprep.subr.bf16.mxu0 0
    %1909 = vmatpush1.bf16.msra.mxu0 0
    %1910 = vmatprep.subr.bf16.mxu0 0
    %1911 = vmatpush1.bf16.msra.mxu0 0
    %1912 = vmatprep.subr.bf16.mxu0 0
    %1913 = vmatpush1.bf16.msra.mxu0 0
    %1914 = vmatprep.subr.bf16.mxu0 0
    %1915 = vmatpush1.bf16.msra.mxu0 0
    %1916 = vmatprep.subr.bf16.mxu0 0
    %1917 = vmatpush1.bf16.msra.mxu0 0
    %1918 = vmatprep.mubr.bf16.mxu0 0
    %1919 = vmatmul.mubr.bf16.gmra.mrb[0].mxu0 %v1885
    %v1920 = vpop.f32.mrb[0].mxu0
    %v1921 = vadd.f32 %v822, %v1920
    %v1922 = vpop.f32.mrb[0].mxu0
    %v1923 = vadd.f32 %v826, %v1922
    %v1924 = vpop.f32.mrb[0].mxu0
    %v1925 = vadd.f32 %v822, %v1924
    %v1926 = vpop.f32.mrb[0].mxu0
    %v1927 = vadd.f32 %v826, %v1926
    %1928 = vdwg.mxu0
    %1929 = vmatprep.subr.bf16.mxu0 %v938
    %1930 = vmatpush1.bf16.msra.mxu0 %v937
    %1931 = vmatprep.subr.bf16.mxu0 %v942
    %1932 = vmatpush1.bf16.msra.mxu0 %v941
    %1933 = vmatprep.subr.bf16.mxu0 %v946
    %1934 = vmatpush1.bf16.msra.mxu0 %v945
    %1935 = vmatprep.subr.bf16.mxu0 %v950
    %1936 = vmatpush1.bf16.msra.mxu0 %v949
    %1937 = vmatprep.subr.bf16.mxu0 %v954
    %1938 = vmatpush1.bf16.msra.mxu0 %v953
    %1939 = vmatprep.subr.bf16.mxu0 %v958
    %1940 = vmatpush1.bf16.msra.mxu0 %v957
    %1941 = vmatprep.subr.bf16.mxu0 %v962
    %1942 = vmatpush1.bf16.msra.mxu0 %v961
    %1943 = vmatprep.subr.bf16.mxu0 %v966
    %1944 = vmatpush1.bf16.msra.mxu0 %v965
    %1945 = vmatprep.subr.bf16.mxu0 0
    %1946 = vmatpush1.bf16.msra.mxu0 0
    %1947 = vmatprep.subr.bf16.mxu0 0
    %1948 = vmatpush1.bf16.msra.mxu0 0
    %1949 = vmatprep.subr.bf16.mxu0 0
    %1950 = vmatpush1.bf16.msra.mxu0 0
    %1951 = vmatprep.subr.bf16.mxu0 0
    %1952 = vmatpush1.bf16.msra.mxu0 0
    %1953 = vmatprep.subr.bf16.mxu0 0
    %1954 = vmatpush1.bf16.msra.mxu0 0
    %1955 = vmatprep.subr.bf16.mxu0 0
    %1956 = vmatpush1.bf16.msra.mxu0 0
    %1957 = vmatprep.subr.bf16.mxu0 0
    %1958 = vmatpush1.bf16.msra.mxu0 0
    %1959 = vmatprep.subr.bf16.mxu0 0
    %1960 = vmatpush1.bf16.msra.mxu0 0
    %1961 = vmatprep.mubr.bf16.mxu0 0
    %1962 = vmatmul.mubr.bf16.gmra.mrb[0].mxu0 %v1885
    %v1963 = vpop.f32.mrb[0].mxu0
    %v1964 = vadd.f32 %v830, %v1963
    %v1965 = vpop.f32.mrb[0].mxu0
    %v1966 = vadd.f32 %v834, %v1965
    %v1967 = vpop.f32.mrb[0].mxu0
    %v1968 = vadd.f32 %v830, %v1967
    %v1969 = vpop.f32.mrb[0].mxu0
    %v1970 = vadd.f32 %v834, %v1969
    %1971 = vdwg.mxu0
    %1972 = vmatprep.subr.bf16.mxu0 %v591
    %1973 = vmatpush1.bf16.msra.mxu0 %v590
    %1974 = vmatprep.subr.bf16.mxu0 %v595
    %1975 = vmatpush1.bf16.msra.mxu0 %v594
    %1976 = vmatprep.subr.bf16.mxu0 %v599
    %1977 = vmatpush1.bf16.msra.mxu0 %v598
    %1978 = vmatprep.subr.bf16.mxu0 %v603
    %1979 = vmatpush1.bf16.msra.mxu0 %v602
    %1980 = vmatprep.subr.bf16.mxu0 %v607
    %1981 = vmatpush1.bf16.msra.mxu0 %v606
    %1982 = vmatprep.subr.bf16.mxu0 %v611
    %1983 = vmatpush1.bf16.msra.mxu0 %v610
    %1984 = vmatprep.subr.bf16.mxu0 %v615
    %1985 = vmatpush1.bf16.msra.mxu0 %v614
    %1986 = vmatprep.subr.bf16.mxu0 %v619
    %1987 = vmatpush1.bf16.msra.mxu0 %v618
    %1988 = vmatprep.subr.bf16.mxu0 0
    %1989 = vmatpush1.bf16.msra.mxu0 0
    %1990 = vmatprep.subr.bf16.mxu0 0
    %1991 = vmatpush1.bf16.msra.mxu0 0
    %1992 = vmatprep.subr.bf16.mxu0 0
    %1993 = vmatpush1.bf16.msra.mxu0 0
    %1994 = vmatprep.subr.bf16.mxu0 0
    %1995 = vmatpush1.bf16.msra.mxu0 0
    %1996 = vmatprep.subr.bf16.mxu0 0
    %1997 = vmatpush1.bf16.msra.mxu0 0
    %1998 = vmatprep.subr.bf16.mxu0 0
    %1999 = vmatpush1.bf16.msra.mxu0 0
    %2000 = vmatprep.subr.bf16.mxu0 0
    %2001 = vmatpush1.bf16.msra.mxu0 0
    %2002 = vmatprep.subr.bf16.mxu0 0
    %2003 = vmatpush1.bf16.msra.mxu0 0
    %2004 = vmatprep.mubr.bf16.mxu0 0
    %2005 = vmatmul.mubr.bf16.gmra.mrb[0].mxu0 %v1885
    %v2006 = vpop.f32.mrb[0].mxu0
    %v2007 = vadd.f32 0.0, %v2006
    %v2008 = vpop.f32.mrb[0].mxu0
    %v2009 = vadd.f32 0.0, %v2008
    %v2010 = vpop.f32.mrb[0].mxu0
    %v2011 = vadd.f32 0.0, %v2010
    %v2012 = vpop.f32.mrb[0].mxu0
    %v2013 = vadd.f32 0.0, %v2012
    %2014 = vdwg.mxu0
    %2015 = vmatprep.subr.bf16.mxu0 %v593
    %2016 = vmatpush1.bf16.msra.mxu0 %v592
    %2017 = vmatprep.subr.bf16.mxu0 %v597
    %2018 = vmatpush1.bf16.msra.mxu0 %v596
    %2019 = vmatprep.subr.bf16.mxu0 %v601
    %2020 = vmatpush1.bf16.msra.mxu0 %v600
    %2021 = vmatprep.subr.bf16.mxu0 %v605
    %2022 = vmatpush1.bf16.msra.mxu0 %v604
    %2023 = vmatprep.subr.bf16.mxu0 %v609
    %2024 = vmatpush1.bf16.msra.mxu0 %v608
    %2025 = vmatprep.subr.bf16.mxu0 %v613
    %2026 = vmatpush1.bf16.msra.mxu0 %v612
    %2027 = vmatprep.subr.bf16.mxu0 %v617
    %2028 = vmatpush1.bf16.msra.mxu0 %v616
    %2029 = vmatprep.subr.bf16.mxu0 %v621
    %2030 = vmatpush1.bf16.msra.mxu0 %v620
    %2031 = vmatprep.subr.bf16.mxu0 0
    %2032 = vmatpush1.bf16.msra.mxu0 0
    %2033 = vmatprep.subr.bf16.mxu0 0
    %2034 = vmatpush1.bf16.msra.mxu0 0
    %2035 = vmatprep.subr.bf16.mxu0 0
    %2036 = vmatpush1.bf16.msra.mxu0 0
    %2037 = vmatprep.subr.bf16.mxu0 0
    %2038 = vmatpush1.bf16.msra.mxu0 0
    %2039 = vmatprep.subr.bf16.mxu0 0
    %2040 = vmatpush1.bf16.msra.mxu0 0
    %2041 = vmatprep.subr.bf16.mxu0 0
    %2042 = vmatpush1.bf16.msra.mxu0 0
    %2043 = vmatprep.subr.bf16.mxu0 0
    %2044 = vmatpush1.bf16.msra.mxu0 0
    %2045 = vmatprep.subr.bf16.mxu0 0
    %2046 = vmatpush1.bf16.msra.mxu0 0
    %2047 = vmatprep.mubr.bf16.mxu0 0
    %2048 = vmatmul.mubr.bf16.gmra.mrb[0].mxu0 %v1885
    %v2049 = vpop.f32.mrb[0].mxu0
    %v2050 = vadd.f32 0.0, %v2049
    %v2051 = vpop.f32.mrb[0].mxu0
    %v2052 = vadd.f32 0.0, %v2051
    %v2053 = vpop.f32.mrb[0].mxu0
    %v2054 = vadd.f32 0.0, %v2053
    %v2055 = vpop.f32.mrb[0].mxu0
    %v2056 = vadd.f32 0.0, %v2055
    %2057 = vdwg.mxu0
    %v2058 = vadd.f32 %v301, %v2007
    %v2059 = vadd.f32 %v303, %v2009
    %v2060 = vadd.f32 %v414, %v2050
    %v2061 = vadd.f32 %v416, %v2052
    %v2062 = vadd.f32 %v305, %v2011
    %v2063 = vadd.f32 %v307, %v2013
    %v2064 = vadd.f32 %v418, %v2054
    %v2065 = vadd.f32 %v420, %v2056
    %v2066 = vmul.f32 %v2058, 0.5
    %v2067 = vmul.f32 %v2062, 0.5
    %v2068 = vtanh.pop %v2066
    %v2069 = vtanh.pop %v2067
    %v2070 = vadd.f32 %v2068, 1.0
    %v2071 = vadd.f32 %v2069, 1.0
    %v2072 = vmul.f32 %v2070, 0.5
    %v2073 = vmul.f32 %v2071, 0.5
    %v2074 = vmul.f32 %v2059, 0.5
    %v2075 = vmul.f32 %v2063, 0.5
    %v2076 = vtanh.pop %v2074
    %v2077 = vtanh.pop %v2075
    %v2078 = vadd.f32 %v2076, 1.0
    %v2079 = vadd.f32 %v2077, 1.0
    %v2080 = vmul.f32 %v2078, 0.5
    %v2081 = vmul.f32 %v2079, 0.5
    %v2082 = vtanh.pop %v2060
    %v2083 = vtanh.pop %v2064
    %v2084 = vmul.f32 %v2061, 0.5
    %v2085 = vmul.f32 %v2065, 0.5
    %v2086 = vtanh.pop %v2084
    %v2087 = vtanh.pop %v2085
    %v2088 = vadd.f32 %v2086, 1.0
    %v2089 = vadd.f32 %v2087, 1.0
    %v2090 = vmul.f32 %v2088, 0.5
    %v2091 = vmul.f32 %v2089, 0.5
    %v2092 = vmul.f32 %v2080, %v1748
    %v2093 = vmul.f32 %v2081, %v1749
    %v2094 = vmul.f32 %v2072, %v2082
    %v2095 = vmul.f32 %v2073, %v2083
    %v2096 = vadd.f32 %v2092, %v2094
    %v2097 = vadd.f32 %v2093, %v2095
    %v2098 = vtanh.pop %v2096
    %v2099 = vtanh.pop %v2097
    %v2100 = vmul.f32 %v2090, %v2098
    %v2101 = vmul.f32 %v2091, %v2099
    %v2102 = vpack.c.bf16 %v1884, %v1883
    %2103 = vmatprep.subr.bf16.mxu0 %v1344
    %2104 = vmatpush1.bf16.msra.mxu0 %v1343
    %2105 = vmatprep.subr.bf16.mxu0 %v1348
    %2106 = vmatpush1.bf16.msra.mxu0 %v1347
    %2107 = vmatprep.subr.bf16.mxu0 %v1352
    %2108 = vmatpush1.bf16.msra.mxu0 %v1351
    %2109 = vmatprep.subr.bf16.mxu0 %v1356
    %2110 = vmatpush1.bf16.msra.mxu0 %v1355
    %2111 = vmatprep.subr.bf16.mxu0 %v1360
    %2112 = vmatpush1.bf16.msra.mxu0 %v1359
    %2113 = vmatprep.subr.bf16.mxu0 %v1364
    %2114 = vmatpush1.bf16.msra.mxu0 %v1363
    %2115 = vmatprep.subr.bf16.mxu0 %v1368
    %2116 = vmatpush1.bf16.msra.mxu0 %v1367
    %2117 = vmatprep.subr.bf16.mxu0 %v1372
    %2118 = vmatpush1.bf16.msra.mxu0 %v1371
    %2119 = vmatprep.subr.bf16.mxu0 0
    %2120 = vmatpush1.bf16.msra.mxu0 0
    %2121 = vmatprep.subr.bf16.mxu0 0
    %2122 = vmatpush1.bf16.msra.mxu0 0
    %2123 = vmatprep.subr.bf16.mxu0 0
    %2124 = vmatpush1.bf16.msra.mxu0 0
    %2125 = vmatprep.subr.bf16.mxu0 0
    %2126 = vmatpush1.bf16.msra.mxu0 0
    %2127 = vmatprep.subr.bf16.mxu0 0
    %2128 = vmatpush1.bf16.msra.mxu0 0
    %2129 = vmatprep.subr.bf16.mxu0 0
    %2130 = vmatpush1.bf16.msra.mxu0 0
    %2131 = vmatprep.subr.bf16.mxu0 0
    %2132 = vmatpush1.bf16.msra.mxu0 0
    %2133 = vmatprep.subr.bf16.mxu0 0
    %2134 = vmatpush1.bf16.msra.mxu0 0
    %2135 = vmatprep.mubr.bf16.mxu0 0
    %2136 = vmatmul.mubr.bf16.gmra.mrb[0].mxu0 %v2102
    %v2137 = vpop.f32.mrb[0].mxu0
    %v2138 = vadd.f32 0.0, %v2137
    %v2139 = vpop.f32.mrb[0].mxu0
    %v2140 = vadd.f32 0.0, %v2139
    %v2141 = vpop.f32.mrb[0].mxu0
    %v2142 = vadd.f32 0.0, %v2141
    %v2143 = vpop.f32.mrb[0].mxu0
    %v2144 = vadd.f32 0.0, %v2143
    %2145 = vdwg.mxu0
    %2146 = vmatprep.subr.bf16.mxu0 %v1346
    %2147 = vmatpush1.bf16.msra.mxu0 %v1345
    %2148 = vmatprep.subr.bf16.mxu0 %v1350
    %2149 = vmatpush1.bf16.msra.mxu0 %v1349
    %2150 = vmatprep.subr.bf16.mxu0 %v1354
    %2151 = vmatpush1.bf16.msra.mxu0 %v1353
    %2152 = vmatprep.subr.bf16.mxu0 %v1358
    %2153 = vmatpush1.bf16.msra.mxu0 %v1357
    %2154 = vmatprep.subr.bf16.mxu0 %v1362
    %2155 = vmatpush1.bf16.msra.mxu0 %v1361
    %2156 = vmatprep.subr.bf16.mxu0 %v1366
    %2157 = vmatpush1.bf16.msra.mxu0 %v1365
    %2158 = vmatprep.subr.bf16.mxu0 %v1370
    %2159 = vmatpush1.bf16.msra.mxu0 %v1369
    %2160 = vmatprep.subr.bf16.mxu0 %v1374
    %2161 = vmatpush1.bf16.msra.mxu0 %v1373
    %2162 = vmatprep.subr.bf16.mxu0 0
    %2163 = vmatpush1.bf16.msra.mxu0 0
    %2164 = vmatprep.subr.bf16.mxu0 0
    %2165 = vmatpush1.bf16.msra.mxu0 0
    %2166 = vmatprep.subr.bf16.mxu0 0
    %2167 = vmatpush1.bf16.msra.mxu0 0
    %2168 = vmatprep.subr.bf16.mxu0 0
    %2169 = vmatpush1.bf16.msra.mxu0 0
    %2170 = vmatprep.subr.bf16.mxu0 0
    %2171 = vmatpush1.bf16.msra.mxu0 0
    %2172 = vmatprep.subr.bf16.mxu0 0
    %2173 = vmatpush1.bf16.msra.mxu0 0
    %2174 = vmatprep.subr.bf16.mxu0 0
    %2175 = vmatpush1.bf16.msra.mxu0 0
    %2176 = vmatprep.subr.bf16.mxu0 0
    %2177 = vmatpush1.bf16.msra.mxu0 0
    %2178 = vmatprep.mubr.bf16.mxu0 0
    %2179 = vmatmul.mubr.bf16.gmra.mrb[0].mxu0 %v2102
    %v2180 = vpop.f32.mrb[0].mxu0
    %v2181 = vadd.f32 0.0, %v2180
    %v2182 = vpop.f32.mrb[0].mxu0
    %v2183 = vadd.f32 0.0, %v2182
    %v2184 = vpop.f32.mrb[0].mxu0
    %v2185 = vadd.f32 0.0, %v2184
    %v2186 = vpop.f32.mrb[0].mxu0
    %v2187 = vadd.f32 0.0, %v2186
    %2188 = vdwg.mxu0
    %v2189 = vadd.f32 %v1921, %v2138
    %v2190 = vadd.f32 %v1923, %v2140
    %v2191 = vadd.f32 %v1964, %v2181
    %v2192 = vadd.f32 %v1966, %v2183
    %v2193 = vadd.f32 %v1925, %v2142
    %v2194 = vadd.f32 %v1927, %v2144
    %v2195 = vadd.f32 %v1968, %v2185
    %v2196 = vadd.f32 %v1970, %v2187
    %v2197 = vmul.f32 %v2189, 0.5
    %v2198 = vmul.f32 %v2193, 0.5
    %v2199 = vtanh.pop %v2197
    %v2200 = vtanh.pop %v2198
    %v2201 = vadd.f32 %v2199, 1.0
    %v2202 = vadd.f32 %v2200, 1.0
    %v2203 = vmul.f32 %v2201, 0.5
    %v2204 = vmul.f32 %v2202, 0.5
    %v2205 = vmul.f32 %v2190, 0.5
    %v2206 = vmul.f32 %v2194, 0.5
    %v2207 = vtanh.pop %v2205
    %v2208 = vtanh.pop %v2206
    %v2209 = vadd.f32 %v2207, 1.0
    %v2210 = vadd.f32 %v2208, 1.0
    %v2211 = vmul.f32 %v2209, 0.5
    %v2212 = vmul.f32 %v2210, 0.5
    %v2213 = vtanh.pop %v2191
    %v2214 = vtanh.pop %v2195
    %v2215 = vmul.f32 %v2192, 0.5
    %v2216 = vmul.f32 %v2196, 0.5
    %v2217 = vtanh.pop %v2215
    %v2218 = vtanh.pop %v2216
    %v2219 = vadd.f32 %v2217, 1.0
    %v2220 = vadd.f32 %v2218, 1.0
    %v2221 = vmul.f32 %v2219, 0.5
    %v2222 = vmul.f32 %v2220, 0.5
    %v2223 = vmul.f32 %v2211, %v1879
    %v2224 = vmul.f32 %v2212, %v1880
    %v2225 = vmul.f32 %v2203, %v2213
    %v2226 = vmul.f32 %v2204, %v2214
    %v2227 = vadd.f32 %v2223, %v2225
    %v2228 = vadd.f32 %v2224, %v2226
    %v2229 = vtanh.pop %v2227
    %v2230 = vtanh.pop %v2228
    %v2231 = vmul.f32 %v2221, %v2229
    %v2232 = vmul.f32 %v2222, %v2230
    %v2233 = vpack.c.bf16 %v2101, %v2100
    %2234 = vmatprep.subr.bf16.mxu0 %v936
    %2235 = vmatpush1.bf16.msra.mxu0 %v935
    %2236 = vmatprep.subr.bf16.mxu0 %v940
    %2237 = vmatpush1.bf16.msra.mxu0 %v939
    %2238 = vmatprep.subr.bf16.mxu0 %v944
    %2239 = vmatpush1.bf16.msra.mxu0 %v943
    %2240 = vmatprep.subr.bf16.mxu0 %v948
    %2241 = vmatpush1.bf16.msra.mxu0 %v947
    %2242 = vmatprep.subr.bf16.mxu0 %v952
    %2243 = vmatpush1.bf16.msra.mxu0 %v951
    %2244 = vmatprep.subr.bf16.mxu0 %v956
    %2245 = vmatpush1.bf16.msra.mxu0 %v955
    %2246 = vmatprep.subr.bf16.mxu0 %v960
    %2247 = vmatpush1.bf16.msra.mxu0 %v959
    %2248 = vmatprep.subr.bf16.mxu0 %v964
    %2249 = vmatpush1.bf16.msra.mxu0 %v963
    %2250 = vmatprep.subr.bf16.mxu0 0
    %2251 = vmatpush1.bf16.msra.mxu0 0
    %2252 = vmatprep.subr.bf16.mxu0 0
    %2253 = vmatpush1.bf16.msra.mxu0 0
    %2254 = vmatprep.subr.bf16.mxu0 0
    %2255 = vmatpush1.bf16.msra.mxu0 0
    %2256 = vmatprep.subr.bf16.mxu0 0
    %2257 = vmatpush1.bf16.msra.mxu0 0
    %2258 = vmatprep.subr.bf16.mxu0 0
    %2259 = vmatpush1.bf16.msra.mxu0 0
    %2260 = vmatprep.subr.bf16.mxu0 0
    %2261 = vmatpush1.bf16.msra.mxu0 0
    %2262 = vmatprep.subr.bf16.mxu0 0
    %2263 = vmatpush1.bf16.msra.mxu0 0
    %2264 = vmatprep.subr.bf16.mxu0 0
    %2265 = vmatpush1.bf16.msra.mxu0 0
    %2266 = vmatprep.mubr.bf16.mxu0 0
    %2267 = vmatmul.mubr.bf16.gmra.mrb[0].mxu0 %v2233
    %v2268 = vpop.f32.mrb[0].mxu0
    %v2269 = vadd.f32 %v822, %v2268
    %v2270 = vpop.f32.mrb[0].mxu0
    %v2271 = vadd.f32 %v826, %v2270
    %v2272 = vpop.f32.mrb[0].mxu0
    %v2273 = vadd.f32 %v822, %v2272
    %v2274 = vpop.f32.mrb[0].mxu0
    %v2275 = vadd.f32 %v826, %v2274
    %2276 = vdwg.mxu0
    %2277 = vmatprep.subr.bf16.mxu0 %v938
    %2278 = vmatpush1.bf16.msra.mxu0 %v937
    %2279 = vmatprep.subr.bf16.mxu0 %v942
    %2280 = vmatpush1.bf16.msra.mxu0 %v941
    %2281 = vmatprep.subr.bf16.mxu0 %v946
    %2282 = vmatpush1.bf16.msra.mxu0 %v945
    %2283 = vmatprep.subr.bf16.mxu0 %v950
    %2284 = vmatpush1.bf16.msra.mxu0 %v949
    %2285 = vmatprep.subr.bf16.mxu0 %v954
    %2286 = vmatpush1.bf16.msra.mxu0 %v953
    %2287 = vmatprep.subr.bf16.mxu0 %v958
    %2288 = vmatpush1.bf16.msra.mxu0 %v957
    %2289 = vmatprep.subr.bf16.mxu0 %v962
    %2290 = vmatpush1.bf16.msra.mxu0 %v961
    %2291 = vmatprep.subr.bf16.mxu0 %v966
    %2292 = vmatpush1.bf16.msra.mxu0 %v965
    %2293 = vmatprep.subr.bf16.mxu0 0
    %2294 = vmatpush1.bf16.msra.mxu0 0
    %2295 = vmatprep.subr.bf16.mxu0 0
    %2296 = vmatpush1.bf16.msra.mxu0 0
    %2297 = vmatprep.subr.bf16.mxu0 0
    %2298 = vmatpush1.bf16.msra.mxu0 0
    %2299 = vmatprep.subr.bf16.mxu0 0
    %2300 = vmatpush1.bf16.msra.mxu0 0
    %2301 = vmatprep.subr.bf16.mxu0 0
    %2302 = vmatpush1.bf16.msra.mxu0 0
    %2303 = vmatprep.subr.bf16.mxu0 0
    %2304 = vmatpush1.bf16.msra.mxu0 0
    %2305 = vmatprep.subr.bf16.mxu0 0
    %2306 = vmatpush1.bf16.msra.mxu0 0
    %2307 = vmatprep.subr.bf16.mxu0 0
    %2308 = vmatpush1.bf16.msra.mxu0 0
    %2309 = vmatprep.mubr.bf16.mxu0 0
    %2310 = vmatmul.mubr.bf16.gmra.mrb[0].mxu0 %v2233
    %v2311 = vpop.f32.mrb[0].mxu0
    %v2312 = vadd.f32 %v830, %v2311
    %v2313 = vpop.f32.mrb[0].mxu0
    %v2314 = vadd.f32 %v834, %v2313
    %v2315 = vpop.f32.mrb[0].mxu0
    %v2316 = vadd.f32 %v830, %v2315
    %v2317 = vpop.f32.mrb[0].mxu0
    %v2318 = vadd.f32 %v834, %v2317
    %2319 = vdwg.mxu0
    %2320 = vmatprep.subr.bf16.mxu0 %v591
    %2321 = vmatpush1.bf16.msra.mxu0 %v590
    %2322 = vmatprep.subr.bf16.mxu0 %v595
    %2323 = vmatpush1.bf16.msra.mxu0 %v594
    %2324 = vmatprep.subr.bf16.mxu0 %v599
    %2325 = vmatpush1.bf16.msra.mxu0 %v598
    %2326 = vmatprep.subr.bf16.mxu0 %v603
    %2327 = vmatpush1.bf16.msra.mxu0 %v602
    %2328 = vmatprep.subr.bf16.mxu0 %v607
    %2329 = vmatpush1.bf16.msra.mxu0 %v606
    %2330 = vmatprep.subr.bf16.mxu0 %v611
    %2331 = vmatpush1.bf16.msra.mxu0 %v610
    %2332 = vmatprep.subr.bf16.mxu0 %v615
    %2333 = vmatpush1.bf16.msra.mxu0 %v614
    %2334 = vmatprep.subr.bf16.mxu0 %v619
    %2335 = vmatpush1.bf16.msra.mxu0 %v618
    %2336 = vmatprep.subr.bf16.mxu0 0
    %2337 = vmatpush1.bf16.msra.mxu0 0
    %2338 = vmatprep.subr.bf16.mxu0 0
    %2339 = vmatpush1.bf16.msra.mxu0 0
    %2340 = vmatprep.subr.bf16.mxu0 0
    %2341 = vmatpush1.bf16.msra.mxu0 0
    %2342 = vmatprep.subr.bf16.mxu0 0
    %2343 = vmatpush1.bf16.msra.mxu0 0
    %2344 = vmatprep.subr.bf16.mxu0 0
    %2345 = vmatpush1.bf16.msra.mxu0 0
    %2346 = vmatprep.subr.bf16.mxu0 0
    %2347 = vmatpush1.bf16.msra.mxu0 0
    %2348 = vmatprep.subr.bf16.mxu0 0
    %2349 = vmatpush1.bf16.msra.mxu0 0
    %2350 = vmatprep.subr.bf16.mxu0 0
    %2351 = vmatpush1.bf16.msra.mxu0 0
    %2352 = vmatprep.mubr.bf16.mxu0 0
    %2353 = vmatmul.mubr.bf16.gmra.mrb[0].mxu0 %v2233
    %v2354 = vpop.f32.mrb[0].mxu0
    %v2355 = vadd.f32 0.0, %v2354
    %v2356 = vpop.f32.mrb[0].mxu0
    %v2357 = vadd.f32 0.0, %v2356
    %v2358 = vpop.f32.mrb[0].mxu0
    %v2359 = vadd.f32 0.0, %v2358
    %v2360 = vpop.f32.mrb[0].mxu0
    %v2361 = vadd.f32 0.0, %v2360
    %2362 = vdwg.mxu0
    %2363 = vmatprep.subr.bf16.mxu0 %v593
    %2364 = vmatpush1.bf16.msra.mxu0 %v592
    %2365 = vmatprep.subr.bf16.mxu0 %v597
    %2366 = vmatpush1.bf16.msra.mxu0 %v596
    %2367 = vmatprep.subr.bf16.mxu0 %v601
    %2368 = vmatpush1.bf16.msra.mxu0 %v600
    %2369 = vmatprep.subr.bf16.mxu0 %v605
    %2370 = vmatpush1.bf16.msra.mxu0 %v604
    %2371 = vmatprep.subr.bf16.mxu0 %v609
    %2372 = vmatpush1.bf16.msra.mxu0 %v608
    %2373 = vmatprep.subr.bf16.mxu0 %v613
    %2374 = vmatpush1.bf16.msra.mxu0 %v612
    %2375 = vmatprep.subr.bf16.mxu0 %v617
    %2376 = vmatpush1.bf16.msra.mxu0 %v616
    %2377 = vmatprep.subr.bf16.mxu0 %v621
    %2378 = vmatpush1.bf16.msra.mxu0 %v620
    %2379 = vmatprep.subr.bf16.mxu0 0
    %2380 = vmatpush1.bf16.msra.mxu0 0
    %2381 = vmatprep.subr.bf16.mxu0 0
    %2382 = vmatpush1.bf16.msra.mxu0 0
    %2383 = vmatprep.subr.bf16.mxu0 0
    %2384 = vmatpush1.bf16.msra.mxu0 0
    %2385 = vmatprep.subr.bf16.mxu0 0
    %2386 = vmatpush1.bf16.msra.mxu0 0
    %2387 = vmatprep.subr.bf16.mxu0 0
    %2388 = vmatpush1.bf16.msra.mxu0 0
    %2389 = vmatprep.subr.bf16.mxu0 0
    %2390 = vmatpush1.bf16.msra.mxu0 0
    %2391 = vmatprep.subr.bf16.mxu0 0
    %2392 = vmatpush1.bf16.msra.mxu0 0
    %2393 = vmatprep.subr.bf16.mxu0 0
    %2394 = vmatpush1.bf16.msra.mxu0 0
    %2395 = vmatprep.mubr.bf16.mxu0 0
    %2396 = vmatmul.mubr.bf16.gmra.mrb[0].mxu0 %v2233
    %v2397 = vpop.f32.mrb[0].mxu0
    %v2398 = vadd.f32 0.0, %v2397
    %v2399 = vpop.f32.mrb[0].mxu0
    %v2400 = vadd.f32 0.0, %v2399
    %v2401 = vpop.f32.mrb[0].mxu0
    %v2402 = vadd.f32 0.0, %v2401
    %v2403 = vpop.f32.mrb[0].mxu0
    %v2404 = vadd.f32 0.0, %v2403
    %2405 = vdwg.mxu0
    %v2406 = vadd.f32 %v311, %v2355
    %v2407 = vadd.f32 %v313, %v2357
    %v2408 = vadd.f32 %v424, %v2398
    %v2409 = vadd.f32 %v426, %v2400
    %v2410 = vadd.f32 %v315, %v2359
    %v2411 = vadd.f32 %v317, %v2361
    %v2412 = vadd.f32 %v428, %v2402
    %v2413 = vadd.f32 %v430, %v2404
    %v2414 = vmul.f32 %v2406, 0.5
    %v2415 = vmul.f32 %v2410, 0.5
    %v2416 = vtanh.pop %v2414
    %v2417 = vtanh.pop %v2415
    %v2418 = vadd.f32 %v2416, 1.0
    %v2419 = vadd.f32 %v2417, 1.0
    %v2420 = vmul.f32 %v2418, 0.5
    %v2421 = vmul.f32 %v2419, 0.5
    %v2422 = vmul.f32 %v2407, 0.5
    %v2423 = vmul.f32 %v2411, 0.5
    %v2424 = vtanh.pop %v2422
    %v2425 = vtanh.pop %v2423
    %v2426 = vadd.f32 %v2424, 1.0
    %v2427 = vadd.f32 %v2425, 1.0
    %v2428 = vmul.f32 %v2426, 0.5
    %v2429 = vmul.f32 %v2427, 0.5
    %v2430 = vtanh.pop %v2408
    %v2431 = vtanh.pop %v2412
    %v2432 = vmul.f32 %v2409, 0.5
    %v2433 = vmul.f32 %v2413, 0.5
    %v2434 = vtanh.pop %v2432
    %v2435 = vtanh.pop %v2433
    %v2436 = vadd.f32 %v2434, 1.0
    %v2437 = vadd.f32 %v2435, 1.0
    %v2438 = vmul.f32 %v2436, 0.5
    %v2439 = vmul.f32 %v2437, 0.5
    %v2440 = vmul.f32 %v2428, %v2096
    %v2441 = vmul.f32 %v2429, %v2097
    %v2442 = vmul.f32 %v2420, %v2430
    %v2443 = vmul.f32 %v2421, %v2431
    %v2444 = vadd.f32 %v2440, %v2442
    %v2445 = vadd.f32 %v2441, %v2443
    %v2446 = vtanh.pop %v2444
    %v2447 = vtanh.pop %v2445
    %v2448 = vmul.f32 %v2438, %v2446
    %v2449 = vmul.f32 %v2439, %v2447
    %v2450 = vpack.c.bf16 %v2232, %v2231
    %2451 = vmatprep.subr.bf16.mxu0 %v1344
    %2452 = vmatpush1.bf16.msra.mxu0 %v1343
    %2453 = vmatprep.subr.bf16.mxu0 %v1348
    %2454 = vmatpush1.bf16.msra.mxu0 %v1347
    %2455 = vmatprep.subr.bf16.mxu0 %v1352
    %2456 = vmatpush1.bf16.msra.mxu0 %v1351
    %2457 = vmatprep.subr.bf16.mxu0 %v1356
    %2458 = vmatpush1.bf16.msra.mxu0 %v1355
    %2459 = vmatprep.subr.bf16.mxu0 %v1360
    %2460 = vmatpush1.bf16.msra.mxu0 %v1359
    %2461 = vmatprep.subr.bf16.mxu0 %v1364
    %2462 = vmatpush1.bf16.msra.mxu0 %v1363
    %2463 = vmatprep.subr.bf16.mxu0 %v1368
    %2464 = vmatpush1.bf16.msra.mxu0 %v1367
    %2465 = vmatprep.subr.bf16.mxu0 %v1372
    %2466 = vmatpush1.bf16.msra.mxu0 %v1371
    %2467 = vmatprep.subr.bf16.mxu0 0
    %2468 = vmatpush1.bf16.msra.mxu0 0
    %2469 = vmatprep.subr.bf16.mxu0 0
    %2470 = vmatpush1.bf16.msra.mxu0 0
    %2471 = vmatprep.subr.bf16.mxu0 0
    %2472 = vmatpush1.bf16.msra.mxu0 0
    %2473 = vmatprep.subr.bf16.mxu0 0
    %2474 = vmatpush1.bf16.msra.mxu0 0
    %2475 = vmatprep.subr.bf16.mxu0 0
    %2476 = vmatpush1.bf16.msra.mxu0 0
    %2477 = vmatprep.subr.bf16.mxu0 0
    %2478 = vmatpush1.bf16.msra.mxu0 0
    %2479 = vmatprep.subr.bf16.mxu0 0
    %2480 = vmatpush1.bf16.msra.mxu0 0
    %2481 = vmatprep.subr.bf16.mxu0 0
    %2482 = vmatpush1.bf16.msra.mxu0 0
    %2483 = vmatprep.mubr.bf16.mxu0 0
    %2484 = vmatmul.mubr.bf16.gmra.mrb[0].mxu0 %v2450
    %v2485 = vpop.f32.mrb[0].mxu0
    %v2486 = vadd.f32 0.0, %v2485
    %v2487 = vpop.f32.mrb[0].mxu0
    %v2488 = vadd.f32 0.0, %v2487
    %v2489 = vpop.f32.mrb[0].mxu0
    %v2490 = vadd.f32 0.0, %v2489
    %v2491 = vpop.f32.mrb[0].mxu0
    %v2492 = vadd.f32 0.0, %v2491
    %2493 = vdwg.mxu0
    %2494 = vmatprep.subr.bf16.mxu0 %v1346
    %2495 = vmatpush1.bf16.msra.mxu0 %v1345
    %2496 = vmatprep.subr.bf16.mxu0 %v1350
    %2497 = vmatpush1.bf16.msra.mxu0 %v1349
    %2498 = vmatprep.subr.bf16.mxu0 %v1354
    %2499 = vmatpush1.bf16.msra.mxu0 %v1353
    %2500 = vmatprep.subr.bf16.mxu0 %v1358
    %2501 = vmatpush1.bf16.msra.mxu0 %v1357
    %2502 = vmatprep.subr.bf16.mxu0 %v1362
    %2503 = vmatpush1.bf16.msra.mxu0 %v1361
    %2504 = vmatprep.subr.bf16.mxu0 %v1366
    %2505 = vmatpush1.bf16.msra.mxu0 %v1365
    %2506 = vmatprep.subr.bf16.mxu0 %v1370
    %2507 = vmatpush1.bf16.msra.mxu0 %v1369
    %2508 = vmatprep.subr.bf16.mxu0 %v1374
    %2509 = vmatpush1.bf16.msra.mxu0 %v1373
    %2510 = vmatprep.subr.bf16.mxu0 0
    %2511 = vmatpush1.bf16.msra.mxu0 0
    %2512 = vmatprep.subr.bf16.mxu0 0
    %2513 = vmatpush1.bf16.msra.mxu0 0
    %2514 = vmatprep.subr.bf16.mxu0 0
    %2515 = vmatpush1.bf16.msra.mxu0 0
    %2516 = vmatprep.subr.bf16.mxu0 0
    %2517 = vmatpush1.bf16.msra.mxu0 0
    %2518 = vmatprep.subr.bf16.mxu0 0
    %2519 = vmatpush1.bf16.msra.mxu0 0
    %2520 = vmatprep.subr.bf16.mxu0 0
    %2521 = vmatpush1.bf16.msra.mxu0 0
    %2522 = vmatprep.subr.bf16.mxu0 0
    %2523 = vmatpush1.bf16.msra.mxu0 0
    %2524 = vmatprep.subr.bf16.mxu0 0
    %2525 = vmatpush1.bf16.msra.mxu0 0
    %2526 = vmatprep.mubr.bf16.mxu0 0
    %2527 = vmatmul.mubr.bf16.gmra.mrb[0].mxu0 %v2450
    %v2528 = vpop.f32.mrb[0].mxu0
    %v2529 = vadd.f32 0.0, %v2528
    %v2530 = vpop.f32.mrb[0].mxu0
    %v2531 = vadd.f32 0.0, %v2530
    %v2532 = vpop.f32.mrb[0].mxu0
    %v2533 = vadd.f32 0.0, %v2532
    %v2534 = vpop.f32.mrb[0].mxu0
    %v2535 = vadd.f32 0.0, %v2534
    %2536 = vdwg.mxu0
    %v2537 = vadd.f32 %v2269, %v2486
    %v2538 = vadd.f32 %v2271, %v2488
    %v2539 = vadd.f32 %v2312, %v2529
    %v2540 = vadd.f32 %v2314, %v2531
    %v2541 = vadd.f32 %v2273, %v2490
    %v2542 = vadd.f32 %v2275, %v2492
    %v2543 = vadd.f32 %v2316, %v2533
    %v2544 = vadd.f32 %v2318, %v2535
    %v2545 = vmul.f32 %v2537, 0.5
    %v2546 = vmul.f32 %v2541, 0.5
    %v2547 = vtanh.pop %v2545
    %v2548 = vtanh.pop %v2546
    %v2549 = vadd.f32 %v2547, 1.0
    %v2550 = vadd.f32 %v2548, 1.0
    %v2551 = vmul.f32 %v2549, 0.5
    %v2552 = vmul.f32 %v2550, 0.5
    %v2553 = vmul.f32 %v2538, 0.5
    %v2554 = vmul.f32 %v2542, 0.5
    %v2555 = vtanh.pop %v2553
    %v2556 = vtanh.pop %v2554
    %v2557 = vadd.f32 %v2555, 1.0
    %v2558 = vadd.f32 %v2556, 1.0
    %v2559 = vmul.f32 %v2557, 0.5
    %v2560 = vmul.f32 %v2558, 0.5
    %v2561 = vtanh.pop %v2539
    %v2562 = vtanh.pop %v2543
    %v2563 = vmul.f32 %v2540, 0.5
    %v2564 = vmul.f32 %v2544, 0.5
    %v2565 = vtanh.pop %v2563
    %v2566 = vtanh.pop %v2564
    %v2567 = vadd.f32 %v2565, 1.0
    %v2568 = vadd.f32 %v2566, 1.0
    %v2569 = vmul.f32 %v2567, 0.5
    %v2570 = vmul.f32 %v2568, 0.5
    %v2571 = vmul.f32 %v2559, %v2227
    %v2572 = vmul.f32 %v2560, %v2228
    %v2573 = vmul.f32 %v2551, %v2561
    %v2574 = vmul.f32 %v2552, %v2562
    %v2575 = vadd.f32 %v2571, %v2573
    %v2576 = vadd.f32 %v2572, %v2574
    %v2577 = vtanh.pop %v2575
    %v2578 = vtanh.pop %v2576
    %v2579 = vmul.f32 %v2569, %v2577
    %v2580 = vmul.f32 %v2570, %v2578
    %v2581 = vpack.c.bf16 %v2449, %v2448
    %2582 = vmatprep.subr.bf16.mxu0 %v936
    %2583 = vmatpush1.bf16.msra.mxu0 %v935
    %2584 = vmatprep.subr.bf16.mxu0 %v940
    %2585 = vmatpush1.bf16.msra.mxu0 %v939
    %2586 = vmatprep.subr.bf16.mxu0 %v944
    %2587 = vmatpush1.bf16.msra.mxu0 %v943
    %2588 = vmatprep.subr.bf16.mxu0 %v948
    %2589 = vmatpush1.bf16.msra.mxu0 %v947
    %2590 = vmatprep.subr.bf16.mxu0 %v952
    %2591 = vmatpush1.bf16.msra.mxu0 %v951
    %2592 = vmatprep.subr.bf16.mxu0 %v956
    %2593 = vmatpush1.bf16.msra.mxu0 %v955
    %2594 = vmatprep.subr.bf16.mxu0 %v960
    %2595 = vmatpush1.bf16.msra.mxu0 %v959
    %2596 = vmatprep.subr.bf16.mxu0 %v964
    %2597 = vmatpush1.bf16.msra.mxu0 %v963
    %2598 = vmatprep.subr.bf16.mxu0 0
    %2599 = vmatpush1.bf16.msra.mxu0 0
    %2600 = vmatprep.subr.bf16.mxu0 0
    %2601 = vmatpush1.bf16.msra.mxu0 0
    %2602 = vmatprep.subr.bf16.mxu0 0
    %2603 = vmatpush1.bf16.msra.mxu0 0
    %2604 = vmatprep.subr.bf16.mxu0 0
    %2605 = vmatpush1.bf16.msra.mxu0 0
    %2606 = vmatprep.subr.bf16.mxu0 0
    %2607 = vmatpush1.bf16.msra.mxu0 0
    %2608 = vmatprep.subr.bf16.mxu0 0
    %2609 = vmatpush1.bf16.msra.mxu0 0
    %2610 = vmatprep.subr.bf16.mxu0 0
    %2611 = vmatpush1.bf16.msra.mxu0 0
    %2612 = vmatprep.subr.bf16.mxu0 0
    %2613 = vmatpush1.bf16.msra.mxu0 0
    %2614 = vmatprep.mubr.bf16.mxu0 0
    %2615 = vmatmul.mubr.bf16.gmra.mrb[0].mxu0 %v2581
    %v2616 = vpop.f32.mrb[0].mxu0
    %v2617 = vadd.f32 %v822, %v2616
    %v2618 = vpop.f32.mrb[0].mxu0
    %v2619 = vadd.f32 %v826, %v2618
    %v2620 = vpop.f32.mrb[0].mxu0
    %v2621 = vadd.f32 %v822, %v2620
    %v2622 = vpop.f32.mrb[0].mxu0
    %v2623 = vadd.f32 %v826, %v2622
    %2624 = vdwg.mxu0
    %2625 = vmatprep.subr.bf16.mxu0 %v938
    %2626 = vmatpush1.bf16.msra.mxu0 %v937
    %2627 = vmatprep.subr.bf16.mxu0 %v942
    %2628 = vmatpush1.bf16.msra.mxu0 %v941
    %2629 = vmatprep.subr.bf16.mxu0 %v946
    %2630 = vmatpush1.bf16.msra.mxu0 %v945
    %2631 = vmatprep.subr.bf16.mxu0 %v950
    %2632 = vmatpush1.bf16.msra.mxu0 %v949
    %2633 = vmatprep.subr.bf16.mxu0 %v954
    %2634 = vmatpush1.bf16.msra.mxu0 %v953
    %2635 = vmatprep.subr.bf16.mxu0 %v958
    %2636 = vmatpush1.bf16.msra.mxu0 %v957
    %2637 = vmatprep.subr.bf16.mxu0 %v962
    %2638 = vmatpush1.bf16.msra.mxu0 %v961
    %2639 = vmatprep.subr.bf16.mxu0 %v966
    %2640 = vmatpush1.bf16.msra.mxu0 %v965
    %2641 = vmatprep.subr.bf16.mxu0 0
    %2642 = vmatpush1.bf16.msra.mxu0 0
    %2643 = vmatprep.subr.bf16.mxu0 0
    %2644 = vmatpush1.bf16.msra.mxu0 0
    %2645 = vmatprep.subr.bf16.mxu0 0
    %2646 = vmatpush1.bf16.msra.mxu0 0
    %2647 = vmatprep.subr.bf16.mxu0 0
    %2648 = vmatpush1.bf16.msra.mxu0 0
    %2649 = vmatprep.subr.bf16.mxu0 0
    %2650 = vmatpush1.bf16.msra.mxu0 0
    %2651 = vmatprep.subr.bf16.mxu0 0
    %2652 = vmatpush1.bf16.msra.mxu0 0
    %2653 = vmatprep.subr.bf16.mxu0 0
    %2654 = vmatpush1.bf16.msra.mxu0 0
    %2655 = vmatprep.subr.bf16.mxu0 0
    %2656 = vmatpush1.bf16.msra.mxu0 0
    %2657 = vmatprep.mubr.bf16.mxu0 0
    %2658 = vmatmul.mubr.bf16.gmra.mrb[0].mxu0 %v2581
    %v2659 = vpop.f32.mrb[0].mxu0
    %v2660 = vadd.f32 %v830, %v2659
    %v2661 = vpop.f32.mrb[0].mxu0
    %v2662 = vadd.f32 %v834, %v2661
    %v2663 = vpop.f32.mrb[0].mxu0
    %v2664 = vadd.f32 %v830, %v2663
    %v2665 = vpop.f32.mrb[0].mxu0
    %v2666 = vadd.f32 %v834, %v2665
    %2667 = vdwg.mxu0
    %2668 = vmatprep.subr.bf16.mxu0 %v591
    %2669 = vmatpush1.bf16.msra.mxu0 %v590
    %2670 = vmatprep.subr.bf16.mxu0 %v595
    %2671 = vmatpush1.bf16.msra.mxu0 %v594
    %2672 = vmatprep.subr.bf16.mxu0 %v599
    %2673 = vmatpush1.bf16.msra.mxu0 %v598
    %2674 = vmatprep.subr.bf16.mxu0 %v603
    %2675 = vmatpush1.bf16.msra.mxu0 %v602
    %2676 = vmatprep.subr.bf16.mxu0 %v607
    %2677 = vmatpush1.bf16.msra.mxu0 %v606
    %2678 = vmatprep.subr.bf16.mxu0 %v611
    %2679 = vmatpush1.bf16.msra.mxu0 %v610
    %2680 = vmatprep.subr.bf16.mxu0 %v615
    %2681 = vmatpush1.bf16.msra.mxu0 %v614
    %2682 = vmatprep.subr.bf16.mxu0 %v619
    %2683 = vmatpush1.bf16.msra.mxu0 %v618
    %2684 = vmatprep.subr.bf16.mxu0 0
    %2685 = vmatpush1.bf16.msra.mxu0 0
    %2686 = vmatprep.subr.bf16.mxu0 0
    %2687 = vmatpush1.bf16.msra.mxu0 0
    %2688 = vmatprep.subr.bf16.mxu0 0
    %2689 = vmatpush1.bf16.msra.mxu0 0
    %2690 = vmatprep.subr.bf16.mxu0 0
    %2691 = vmatpush1.bf16.msra.mxu0 0
    %2692 = vmatprep.subr.bf16.mxu0 0
    %2693 = vmatpush1.bf16.msra.mxu0 0
    %2694 = vmatprep.subr.bf16.mxu0 0
    %2695 = vmatpush1.bf16.msra.mxu0 0
    %2696 = vmatprep.subr.bf16.mxu0 0
    %2697 = vmatpush1.bf16.msra.mxu0 0
    %2698 = vmatprep.subr.bf16.mxu0 0
    %2699 = vmatpush1.bf16.msra.mxu0 0
    %2700 = vmatprep.mubr.bf16.mxu0 0
    %2701 = vmatmul.mubr.bf16.gmra.mrb[0].mxu0 %v2581
    %v2702 = vpop.f32.mrb[0].mxu0
    %v2703 = vadd.f32 0.0, %v2702
    %v2704 = vpop.f32.mrb[0].mxu0
    %v2705 = vadd.f32 0.0, %v2704
    %v2706 = vpop.f32.mrb[0].mxu0
    %v2707 = vadd.f32 0.0, %v2706
    %v2708 = vpop.f32.mrb[0].mxu0
    %v2709 = vadd.f32 0.0, %v2708
    %2710 = vdwg.mxu0
    %2711 = vmatprep.subr.bf16.mxu0 %v593
    %2712 = vmatpush1.bf16.msra.mxu0 %v592
    %2713 = vmatprep.subr.bf16.mxu0 %v597
    %2714 = vmatpush1.bf16.msra.mxu0 %v596
    %2715 = vmatprep.subr.bf16.mxu0 %v601
    %2716 = vmatpush1.bf16.msra.mxu0 %v600
    %2717 = vmatprep.subr.bf16.mxu0 %v605
    %2718 = vmatpush1.bf16.msra.mxu0 %v604
    %2719 = vmatprep.subr.bf16.mxu0 %v609
    %2720 = vmatpush1.bf16.msra.mxu0 %v608
    %2721 = vmatprep.subr.bf16.mxu0 %v613
    %2722 = vmatpush1.bf16.msra.mxu0 %v612
    %2723 = vmatprep.subr.bf16.mxu0 %v617
    %2724 = vmatpush1.bf16.msra.mxu0 %v616
    %2725 = vmatprep.subr.bf16.mxu0 %v621
    %2726 = vmatpush1.bf16.msra.mxu0 %v620
    %2727 = vmatprep.subr.bf16.mxu0 0
    %2728 = vmatpush1.bf16.msra.mxu0 0
    %2729 = vmatprep.subr.bf16.mxu0 0
    %2730 = vmatpush1.bf16.msra.mxu0 0
    %2731 = vmatprep.subr.bf16.mxu0 0
    %2732 = vmatpush1.bf16.msra.mxu0 0
    %2733 = vmatprep.subr.bf16.mxu0 0
    %2734 = vmatpush1.bf16.msra.mxu0 0
    %2735 = vmatprep.subr.bf16.mxu0 0
    %2736 = vmatpush1.bf16.msra.mxu0 0
    %2737 = vmatprep.subr.bf16.mxu0 0
    %2738 = vmatpush1.bf16.msra.mxu0 0
    %2739 = vmatprep.subr.bf16.mxu0 0
    %2740 = vmatpush1.bf16.msra.mxu0 0
    %2741 = vmatprep.subr.bf16.mxu0 0
    %2742 = vmatpush1.bf16.msra.mxu0 0
    %2743 = vmatprep.mubr.bf16.mxu0 0
    %2744 = vmatmul.mubr.bf16.gmra.mrb[0].mxu0 %v2581
    %v2745 = vpop.f32.mrb[0].mxu0
    %v2746 = vadd.f32 0.0, %v2745
    %v2747 = vpop.f32.mrb[0].mxu0
    %v2748 = vadd.f32 0.0, %v2747
    %v2749 = vpop.f32.mrb[0].mxu0
    %v2750 = vadd.f32 0.0, %v2749
    %v2751 = vpop.f32.mrb[0].mxu0
    %v2752 = vadd.f32 0.0, %v2751
    %2753 = vdwg.mxu0
    %v2754 = vadd.f32 %v321, %v2703
    %v2755 = vadd.f32 %v323, %v2705
    %v2756 = vadd.f32 %v434, %v2746
    %v2757 = vadd.f32 %v436, %v2748
    %v2758 = vadd.f32 %v325, %v2707
    %v2759 = vadd.f32 %v327, %v2709
    %v2760 = vadd.f32 %v438, %v2750
    %v2761 = vadd.f32 %v440, %v2752
    %v2762 = vmul.f32 %v2754, 0.5
    %v2763 = vmul.f32 %v2758, 0.5
    %v2764 = vtanh.pop %v2762
    %v2765 = vtanh.pop %v2763
    %v2766 = vadd.f32 %v2764, 1.0
    %v2767 = vadd.f32 %v2765, 1.0
    %v2768 = vmul.f32 %v2766, 0.5
    %v2769 = vmul.f32 %v2767, 0.5
    %v2770 = vmul.f32 %v2755, 0.5
    %v2771 = vmul.f32 %v2759, 0.5
    %v2772 = vtanh.pop %v2770
    %v2773 = vtanh.pop %v2771
    %v2774 = vadd.f32 %v2772, 1.0
    %v2775 = vadd.f32 %v2773, 1.0
    %v2776 = vmul.f32 %v2774, 0.5
    %v2777 = vmul.f32 %v2775, 0.5
    %v2778 = vtanh.pop %v2756
    %v2779 = vtanh.pop %v2760
    %v2780 = vmul.f32 %v2757, 0.5
    %v2781 = vmul.f32 %v2761, 0.5
    %v2782 = vtanh.pop %v2780
    %v2783 = vtanh.pop %v2781
    %v2784 = vadd.f32 %v2782, 1.0
    %v2785 = vadd.f32 %v2783, 1.0
    %v2786 = vmul.f32 %v2784, 0.5
    %v2787 = vmul.f32 %v2785, 0.5
    %v2788 = vmul.f32 %v2776, %v2444
    %v2789 = vmul.f32 %v2777, %v2445
    %v2790 = vmul.f32 %v2768, %v2778
    %v2791 = vmul.f32 %v2769, %v2779
    %v2792 = vadd.f32 %v2788, %v2790
    %v2793 = vadd.f32 %v2789, %v2791
    %v2794 = vtanh.pop %v2792
    %v2795 = vtanh.pop %v2793
    %v2796 = vmul.f32 %v2786, %v2794
    %v2797 = vmul.f32 %v2787, %v2795
    %v2798 = vpack.c.bf16 %v2580, %v2579
    %2799 = vmatprep.subr.bf16.mxu0 %v1344
    %2800 = vmatpush1.bf16.msra.mxu0 %v1343
    %2801 = vmatprep.subr.bf16.mxu0 %v1348
    %2802 = vmatpush1.bf16.msra.mxu0 %v1347
    %2803 = vmatprep.subr.bf16.mxu0 %v1352
    %2804 = vmatpush1.bf16.msra.mxu0 %v1351
    %2805 = vmatprep.subr.bf16.mxu0 %v1356
    %2806 = vmatpush1.bf16.msra.mxu0 %v1355
    %2807 = vmatprep.subr.bf16.mxu0 %v1360
    %2808 = vmatpush1.bf16.msra.mxu0 %v1359
    %2809 = vmatprep.subr.bf16.mxu0 %v1364
    %2810 = vmatpush1.bf16.msra.mxu0 %v1363
    %2811 = vmatprep.subr.bf16.mxu0 %v1368
    %2812 = vmatpush1.bf16.msra.mxu0 %v1367
    %2813 = vmatprep.subr.bf16.mxu0 %v1372
    %2814 = vmatpush1.bf16.msra.mxu0 %v1371
    %2815 = vmatprep.subr.bf16.mxu0 0
    %2816 = vmatpush1.bf16.msra.mxu0 0
    %2817 = vmatprep.subr.bf16.mxu0 0
    %2818 = vmatpush1.bf16.msra.mxu0 0
    %2819 = vmatprep.subr.bf16.mxu0 0
    %2820 = vmatpush1.bf16.msra.mxu0 0
    %2821 = vmatprep.subr.bf16.mxu0 0
    %2822 = vmatpush1.bf16.msra.mxu0 0
    %2823 = vmatprep.subr.bf16.mxu0 0
    %2824 = vmatpush1.bf16.msra.mxu0 0
    %2825 = vmatprep.subr.bf16.mxu0 0
    %2826 = vmatpush1.bf16.msra.mxu0 0
    %2827 = vmatprep.subr.bf16.mxu0 0
    %2828 = vmatpush1.bf16.msra.mxu0 0
    %2829 = vmatprep.subr.bf16.mxu0 0
    %2830 = vmatpush1.bf16.msra.mxu0 0
    %2831 = vmatprep.mubr.bf16.mxu0 0
    %2832 = vmatmul.mubr.bf16.gmra.mrb[0].mxu0 %v2798
    %v2833 = vpop.f32.mrb[0].mxu0
    %v2834 = vadd.f32 0.0, %v2833
    %v2835 = vpop.f32.mrb[0].mxu0
    %v2836 = vadd.f32 0.0, %v2835
    %v2837 = vpop.f32.mrb[0].mxu0
    %v2838 = vadd.f32 0.0, %v2837
    %v2839 = vpop.f32.mrb[0].mxu0
    %v2840 = vadd.f32 0.0, %v2839
    %2841 = vdwg.mxu0
    %2842 = vmatprep.subr.bf16.mxu0 %v1346
    %2843 = vmatpush1.bf16.msra.mxu0 %v1345
    %2844 = vmatprep.subr.bf16.mxu0 %v1350
    %2845 = vmatpush1.bf16.msra.mxu0 %v1349
    %2846 = vmatprep.subr.bf16.mxu0 %v1354
    %2847 = vmatpush1.bf16.msra.mxu0 %v1353
    %2848 = vmatprep.subr.bf16.mxu0 %v1358
    %2849 = vmatpush1.bf16.msra.mxu0 %v1357
    %2850 = vmatprep.subr.bf16.mxu0 %v1362
    %2851 = vmatpush1.bf16.msra.mxu0 %v1361
    %2852 = vmatprep.subr.bf16.mxu0 %v1366
    %2853 = vmatpush1.bf16.msra.mxu0 %v1365
    %2854 = vmatprep.subr.bf16.mxu0 %v1370
    %2855 = vmatpush1.bf16.msra.mxu0 %v1369
    %2856 = vmatprep.subr.bf16.mxu0 %v1374
    %2857 = vmatpush1.bf16.msra.mxu0 %v1373
    %2858 = vmatprep.subr.bf16.mxu0 0
    %2859 = vmatpush1.bf16.msra.mxu0 0
    %2860 = vmatprep.subr.bf16.mxu0 0
    %2861 = vmatpush1.bf16.msra.mxu0 0
    %2862 = vmatprep.subr.bf16.mxu0 0
    %2863 = vmatpush1.bf16.msra.mxu0 0
    %2864 = vmatprep.subr.bf16.mxu0 0
    %2865 = vmatpush1.bf16.msra.mxu0 0
    %2866 = vmatprep.subr.bf16.mxu0 0
    %2867 = vmatpush1.bf16.msra.mxu0 0
    %2868 = vmatprep.subr.bf16.mxu0 0
    %2869 = vmatpush1.bf16.msra.mxu0 0
    %2870 = vmatprep.subr.bf16.mxu0 0
    %2871 = vmatpush1.bf16.msra.mxu0 0
    %2872 = vmatprep.subr.bf16.mxu0 0
    %2873 = vmatpush1.bf16.msra.mxu0 0
    %2874 = vmatprep.mubr.bf16.mxu0 0
    %2875 = vmatmul.mubr.bf16.gmra.mrb[0].mxu0 %v2798
    %v2876 = vpop.f32.mrb[0].mxu0
    %v2877 = vadd.f32 0.0, %v2876
    %v2878 = vpop.f32.mrb[0].mxu0
    %v2879 = vadd.f32 0.0, %v2878
    %v2880 = vpop.f32.mrb[0].mxu0
    %v2881 = vadd.f32 0.0, %v2880
    %v2882 = vpop.f32.mrb[0].mxu0
    %v2883 = vadd.f32 0.0, %v2882
    %2884 = vdwg.mxu0
    %v2885 = vadd.f32 %v2617, %v2834
    %v2886 = vadd.f32 %v2619, %v2836
    %v2887 = vadd.f32 %v2660, %v2877
    %v2888 = vadd.f32 %v2662, %v2879
    %v2889 = vadd.f32 %v2621, %v2838
    %v2890 = vadd.f32 %v2623, %v2840
    %v2891 = vadd.f32 %v2664, %v2881
    %v2892 = vadd.f32 %v2666, %v2883
    %v2893 = vmul.f32 %v2885, 0.5
    %v2894 = vmul.f32 %v2889, 0.5
    %v2895 = vtanh.pop %v2893
    %v2896 = vtanh.pop %v2894
    %v2897 = vadd.f32 %v2895, 1.0
    %v2898 = vadd.f32 %v2896, 1.0
    %v2899 = vmul.f32 %v2897, 0.5
    %v2900 = vmul.f32 %v2898, 0.5
    %v2901 = vmul.f32 %v2886, 0.5
    %v2902 = vmul.f32 %v2890, 0.5
    %v2903 = vtanh.pop %v2901
    %v2904 = vtanh.pop %v2902
    %v2905 = vadd.f32 %v2903, 1.0
    %v2906 = vadd.f32 %v2904, 1.0
    %v2907 = vmul.f32 %v2905, 0.5
    %v2908 = vmul.f32 %v2906, 0.5
    %v2909 = vtanh.pop %v2887
    %v2910 = vtanh.pop %v2891
    %v2911 = vmul.f32 %v2888, 0.5
    %v2912 = vmul.f32 %v2892, 0.5
    %v2913 = vtanh.pop %v2911
    %v2914 = vtanh.pop %v2912
    %v2915 = vadd.f32 %v2913, 1.0
    %v2916 = vadd.f32 %v2914, 1.0
    %v2917 = vmul.f32 %v2915, 0.5
    %v2918 = vmul.f32 %v2916, 0.5
    %v2919 = vmul.f32 %v2907, %v2575
    %v2920 = vmul.f32 %v2908, %v2576
    %v2921 = vmul.f32 %v2899, %v2909
    %v2922 = vmul.f32 %v2900, %v2910
    %v2923 = vadd.f32 %v2919, %v2921
    %v2924 = vadd.f32 %v2920, %v2922
    %v2925 = vtanh.pop %v2923
    %v2926 = vtanh.pop %v2924
    %v2927 = vmul.f32 %v2917, %v2925
    %v2928 = vmul.f32 %v2918, %v2926
    %v2929 = vpack.c.bf16 %v2797, %v2796
    %2930 = vmatprep.subr.bf16.mxu0 %v936
    %2931 = vmatpush1.bf16.msra.mxu0 %v935
    %2932 = vmatprep.subr.bf16.mxu0 %v940
    %2933 = vmatpush1.bf16.msra.mxu0 %v939
    %2934 = vmatprep.subr.bf16.mxu0 %v944
    %2935 = vmatpush1.bf16.msra.mxu0 %v943
    %2936 = vmatprep.subr.bf16.mxu0 %v948
    %2937 = vmatpush1.bf16.msra.mxu0 %v947
    %2938 = vmatprep.subr.bf16.mxu0 %v952
    %2939 = vmatpush1.bf16.msra.mxu0 %v951
    %2940 = vmatprep.subr.bf16.mxu0 %v956
    %2941 = vmatpush1.bf16.msra.mxu0 %v955
    %2942 = vmatprep.subr.bf16.mxu0 %v960
    %2943 = vmatpush1.bf16.msra.mxu0 %v959
    %2944 = vmatprep.subr.bf16.mxu0 %v964
    %2945 = vmatpush1.bf16.msra.mxu0 %v963
    %2946 = vmatprep.subr.bf16.mxu0 0
    %2947 = vmatpush1.bf16.msra.mxu0 0
    %2948 = vmatprep.subr.bf16.mxu0 0
    %2949 = vmatpush1.bf16.msra.mxu0 0
    %2950 = vmatprep.subr.bf16.mxu0 0
    %2951 = vmatpush1.bf16.msra.mxu0 0
    %2952 = vmatprep.subr.bf16.mxu0 0
    %2953 = vmatpush1.bf16.msra.mxu0 0
    %2954 = vmatprep.subr.bf16.mxu0 0
    %2955 = vmatpush1.bf16.msra.mxu0 0
    %2956 = vmatprep.subr.bf16.mxu0 0
    %2957 = vmatpush1.bf16.msra.mxu0 0
    %2958 = vmatprep.subr.bf16.mxu0 0
    %2959 = vmatpush1.bf16.msra.mxu0 0
    %2960 = vmatprep.subr.bf16.mxu0 0
    %2961 = vmatpush1.bf16.msra.mxu0 0
    %2962 = vmatprep.mubr.bf16.mxu0 0
    %2963 = vmatmul.mubr.bf16.gmra.mrb[0].mxu0 %v2929
    %v2964 = vpop.f32.mrb[0].mxu0
    %v2965 = vadd.f32 %v822, %v2964
    %v2966 = vpop.f32.mrb[0].mxu0
    %v2967 = vadd.f32 %v826, %v2966
    %v2968 = vpop.f32.mrb[0].mxu0
    %v2969 = vadd.f32 %v822, %v2968
    %v2970 = vpop.f32.mrb[0].mxu0
    %v2971 = vadd.f32 %v826, %v2970
    %2972 = vdwg.mxu0
    %2973 = vmatprep.subr.bf16.mxu0 %v938
    %2974 = vmatpush1.bf16.msra.mxu0 %v937
    %2975 = vmatprep.subr.bf16.mxu0 %v942
    %2976 = vmatpush1.bf16.msra.mxu0 %v941
    %2977 = vmatprep.subr.bf16.mxu0 %v946
    %2978 = vmatpush1.bf16.msra.mxu0 %v945
    %2979 = vmatprep.subr.bf16.mxu0 %v950
    %2980 = vmatpush1.bf16.msra.mxu0 %v949
    %2981 = vmatprep.subr.bf16.mxu0 %v954
    %2982 = vmatpush1.bf16.msra.mxu0 %v953
    %2983 = vmatprep.subr.bf16.mxu0 %v958
    %2984 = vmatpush1.bf16.msra.mxu0 %v957
    %2985 = vmatprep.subr.bf16.mxu0 %v962
    %2986 = vmatpush1.bf16.msra.mxu0 %v961
    %2987 = vmatprep.subr.bf16.mxu0 %v966
    %2988 = vmatpush1.bf16.msra.mxu0 %v965
    %2989 = vmatprep.subr.bf16.mxu0 0
    %2990 = vmatpush1.bf16.msra.mxu0 0
    %2991 = vmatprep.subr.bf16.mxu0 0
    %2992 = vmatpush1.bf16.msra.mxu0 0
    %2993 = vmatprep.subr.bf16.mxu0 0
    %2994 = vmatpush1.bf16.msra.mxu0 0
    %2995 = vmatprep.subr.bf16.mxu0 0
    %2996 = vmatpush1.bf16.msra.mxu0 0
    %2997 = vmatprep.subr.bf16.mxu0 0
    %2998 = vmatpush1.bf16.msra.mxu0 0
    %2999 = vmatprep.subr.bf16.mxu0 0
    %3000 = vmatpush1.bf16.msra.mxu0 0
    %3001 = vmatprep.subr.bf16.mxu0 0
    %3002 = vmatpush1.bf16.msra.mxu0 0
    %3003 = vmatprep.subr.bf16.mxu0 0
    %3004 = vmatpush1.bf16.msra.mxu0 0
    %3005 = vmatprep.mubr.bf16.mxu0 0
    %3006 = vmatmul.mubr.bf16.gmra.mrb[0].mxu0 %v2929
    %v3007 = vpop.f32.mrb[0].mxu0
    %v3008 = vadd.f32 %v830, %v3007
    %v3009 = vpop.f32.mrb[0].mxu0
    %v3010 = vadd.f32 %v834, %v3009
    %v3011 = vpop.f32.mrb[0].mxu0
    %v3012 = vadd.f32 %v830, %v3011
    %v3013 = vpop.f32.mrb[0].mxu0
    %v3014 = vadd.f32 %v834, %v3013
    %3015 = vdwg.mxu0
    %3016 = vmatprep.subr.bf16.mxu0 %v591
    %3017 = vmatpush1.bf16.msra.mxu0 %v590
    %3018 = vmatprep.subr.bf16.mxu0 %v595
    %3019 = vmatpush1.bf16.msra.mxu0 %v594
    %3020 = vmatprep.subr.bf16.mxu0 %v599
    %3021 = vmatpush1.bf16.msra.mxu0 %v598
    %3022 = vmatprep.subr.bf16.mxu0 %v603
    %3023 = vmatpush1.bf16.msra.mxu0 %v602
    %3024 = vmatprep.subr.bf16.mxu0 %v607
    %3025 = vmatpush1.bf16.msra.mxu0 %v606
    %3026 = vmatprep.subr.bf16.mxu0 %v611
    %3027 = vmatpush1.bf16.msra.mxu0 %v610
    %3028 = vmatprep.subr.bf16.mxu0 %v615
    %3029 = vmatpush1.bf16.msra.mxu0 %v614
    %3030 = vmatprep.subr.bf16.mxu0 %v619
    %3031 = vmatpush1.bf16.msra.mxu0 %v618
    %3032 = vmatprep.subr.bf16.mxu0 0
    %3033 = vmatpush1.bf16.msra.mxu0 0
    %3034 = vmatprep.subr.bf16.mxu0 0
    %3035 = vmatpush1.bf16.msra.mxu0 0
    %3036 = vmatprep.subr.bf16.mxu0 0
    %3037 = vmatpush1.bf16.msra.mxu0 0
    %3038 = vmatprep.subr.bf16.mxu0 0
    %3039 = vmatpush1.bf16.msra.mxu0 0
    %3040 = vmatprep.subr.bf16.mxu0 0
    %3041 = vmatpush1.bf16.msra.mxu0 0
    %3042 = vmatprep.subr.bf16.mxu0 0
    %3043 = vmatpush1.bf16.msra.mxu0 0
    %3044 = vmatprep.subr.bf16.mxu0 0
    %3045 = vmatpush1.bf16.msra.mxu0 0
    %3046 = vmatprep.subr.bf16.mxu0 0
    %3047 = vmatpush1.bf16.msra.mxu0 0
    %3048 = vmatprep.mubr.bf16.mxu0 0
    %3049 = vmatmul.mubr.bf16.gmra.mrb[0].mxu0 %v2929
    %v3050 = vpop.f32.mrb[0].mxu0
    %v3051 = vadd.f32 0.0, %v3050
    %v3052 = vpop.f32.mrb[0].mxu0
    %v3053 = vadd.f32 0.0, %v3052
    %v3054 = vpop.f32.mrb[0].mxu0
    %v3055 = vadd.f32 0.0, %v3054
    %v3056 = vpop.f32.mrb[0].mxu0
    %v3057 = vadd.f32 0.0, %v3056
    %3058 = vdwg.mxu0
    %3059 = vmatprep.subr.bf16.mxu0 %v593
    %3060 = vmatpush1.bf16.msra.mxu0 %v592
    %3061 = vmatprep.subr.bf16.mxu0 %v597
    %3062 = vmatpush1.bf16.msra.mxu0 %v596
    %3063 = vmatprep.subr.bf16.mxu0 %v601
    %3064 = vmatpush1.bf16.msra.mxu0 %v600
    %3065 = vmatprep.subr.bf16.mxu0 %v605
    %3066 = vmatpush1.bf16.msra.mxu0 %v604
    %3067 = vmatprep.subr.bf16.mxu0 %v609
    %3068 = vmatpush1.bf16.msra.mxu0 %v608
    %3069 = vmatprep.subr.bf16.mxu0 %v613
    %3070 = vmatpush1.bf16.msra.mxu0 %v612
    %3071 = vmatprep.subr.bf16.mxu0 %v617
    %3072 = vmatpush1.bf16.msra.mxu0 %v616
    %3073 = vmatprep.subr.bf16.mxu0 %v621
    %3074 = vmatpush1.bf16.msra.mxu0 %v620
    %3075 = vmatprep.subr.bf16.mxu0 0
    %3076 = vmatpush1.bf16.msra.mxu0 0
    %3077 = vmatprep.subr.bf16.mxu0 0
    %3078 = vmatpush1.bf16.msra.mxu0 0
    %3079 = vmatprep.subr.bf16.mxu0 0
    %3080 = vmatpush1.bf16.msra.mxu0 0
    %3081 = vmatprep.subr.bf16.mxu0 0
    %3082 = vmatpush1.bf16.msra.mxu0 0
    %3083 = vmatprep.subr.bf16.mxu0 0
    %3084 = vmatpush1.bf16.msra.mxu0 0
    %3085 = vmatprep.subr.bf16.mxu0 0
    %3086 = vmatpush1.bf16.msra.mxu0 0
    %3087 = vmatprep.subr.bf16.mxu0 0
    %3088 = vmatpush1.bf16.msra.mxu0 0
    %3089 = vmatprep.subr.bf16.mxu0 0
    %3090 = vmatpush1.bf16.msra.mxu0 0
    %3091 = vmatprep.mubr.bf16.mxu0 0
    %3092 = vmatmul.mubr.bf16.gmra.mrb[0].mxu0 %v2929
    %v3093 = vpop.f32.mrb[0].mxu0
    %v3094 = vadd.f32 0.0, %v3093
    %v3095 = vpop.f32.mrb[0].mxu0
    %v3096 = vadd.f32 0.0, %v3095
    %v3097 = vpop.f32.mrb[0].mxu0
    %v3098 = vadd.f32 0.0, %v3097
    %v3099 = vpop.f32.mrb[0].mxu0
    %v3100 = vadd.f32 0.0, %v3099
    %3101 = vdwg.mxu0
    %v3102 = vadd.f32 %v331, %v3051
    %v3103 = vadd.f32 %v333, %v3053
    %v3104 = vadd.f32 %v444, %v3094
    %v3105 = vadd.f32 %v446, %v3096
    %v3106 = vadd.f32 %v335, %v3055
    %v3107 = vadd.f32 %v337, %v3057
    %v3108 = vadd.f32 %v448, %v3098
    %v3109 = vadd.f32 %v450, %v3100
    %v3110 = vmul.f32 %v3102, 0.5
    %v3111 = vmul.f32 %v3106, 0.5
    %v3112 = vtanh.pop %v3110
    %v3113 = vtanh.pop %v3111
    %v3114 = vadd.f32 %v3112, 1.0
    %v3115 = vadd.f32 %v3113, 1.0
    %v3116 = vmul.f32 %v3114, 0.5
    %v3117 = vmul.f32 %v3115, 0.5
    %v3118 = vmul.f32 %v3103, 0.5
    %v3119 = vmul.f32 %v3107, 0.5
    %v3120 = vtanh.pop %v3118
    %v3121 = vtanh.pop %v3119
    %v3122 = vadd.f32 %v3120, 1.0
    %v3123 = vadd.f32 %v3121, 1.0
    %v3124 = vmul.f32 %v3122, 0.5
    %v3125 = vmul.f32 %v3123, 0.5
    %v3126 = vtanh.pop %v3104
    %v3127 = vtanh.pop %v3108
    %v3128 = vmul.f32 %v3105, 0.5
    %v3129 = vmul.f32 %v3109, 0.5
    %v3130 = vtanh.pop %v3128
    %v3131 = vtanh.pop %v3129
    %v3132 = vadd.f32 %v3130, 1.0
    %v3133 = vadd.f32 %v3131, 1.0
    %v3134 = vmul.f32 %v3132, 0.5
    %v3135 = vmul.f32 %v3133, 0.5
    %v3136 = vmul.f32 %v3124, %v2792
    %v3137 = vmul.f32 %v3125, %v2793
    %v3138 = vmul.f32 %v3116, %v3126
    %v3139 = vmul.f32 %v3117, %v3127
    %v3140 = vadd.f32 %v3136, %v3138
    %v3141 = vadd.f32 %v3137, %v3139
    %v3142 = vtanh.pop %v3140
    %v3143 = vtanh.pop %v3141
    %v3144 = vmul.f32 %v3134, %v3142
    %v3145 = vmul.f32 %v3135, %v3143
    %v3146 = vpack.c.bf16 %v2928, %v2927
    %3147 = vmatprep.subr.bf16.mxu0 %v1344
    %3148 = vmatpush1.bf16.msra.mxu0 %v1343
    %3149 = vmatprep.subr.bf16.mxu0 %v1348
    %3150 = vmatpush1.bf16.msra.mxu0 %v1347
    %3151 = vmatprep.subr.bf16.mxu0 %v1352
    %3152 = vmatpush1.bf16.msra.mxu0 %v1351
    %3153 = vmatprep.subr.bf16.mxu0 %v1356
    %3154 = vmatpush1.bf16.msra.mxu0 %v1355
    %3155 = vmatprep.subr.bf16.mxu0 %v1360
    %3156 = vmatpush1.bf16.msra.mxu0 %v1359
    %3157 = vmatprep.subr.bf16.mxu0 %v1364
    %3158 = vmatpush1.bf16.msra.mxu0 %v1363
    %3159 = vmatprep.subr.bf16.mxu0 %v1368
    %3160 = vmatpush1.bf16.msra.mxu0 %v1367
    %3161 = vmatprep.subr.bf16.mxu0 %v1372
    %3162 = vmatpush1.bf16.msra.mxu0 %v1371
    %3163 = vmatprep.subr.bf16.mxu0 0
    %3164 = vmatpush1.bf16.msra.mxu0 0
    %3165 = vmatprep.subr.bf16.mxu0 0
    %3166 = vmatpush1.bf16.msra.mxu0 0
    %3167 = vmatprep.subr.bf16.mxu0 0
    %3168 = vmatpush1.bf16.msra.mxu0 0
    %3169 = vmatprep.subr.bf16.mxu0 0
    %3170 = vmatpush1.bf16.msra.mxu0 0
    %3171 = vmatprep.subr.bf16.mxu0 0
    %3172 = vmatpush1.bf16.msra.mxu0 0
    %3173 = vmatprep.subr.bf16.mxu0 0
    %3174 = vmatpush1.bf16.msra.mxu0 0
    %3175 = vmatprep.subr.bf16.mxu0 0
    %3176 = vmatpush1.bf16.msra.mxu0 0
    %3177 = vmatprep.subr.bf16.mxu0 0
    %3178 = vmatpush1.bf16.msra.mxu0 0
    %3179 = vmatprep.mubr.bf16.mxu0 0
    %3180 = vmatmul.mubr.bf16.gmra.mrb[0].mxu0 %v3146
    %v3181 = vpop.f32.mrb[0].mxu0
    %v3182 = vadd.f32 0.0, %v3181
    %v3183 = vpop.f32.mrb[0].mxu0
    %v3184 = vadd.f32 0.0, %v3183
    %v3185 = vpop.f32.mrb[0].mxu0
    %v3186 = vadd.f32 0.0, %v3185
    %v3187 = vpop.f32.mrb[0].mxu0
    %v3188 = vadd.f32 0.0, %v3187
    %3189 = vdwg.mxu0
    %3190 = vmatprep.subr.bf16.mxu0 %v1346
    %3191 = vmatpush1.bf16.msra.mxu0 %v1345
    %3192 = vmatprep.subr.bf16.mxu0 %v1350
    %3193 = vmatpush1.bf16.msra.mxu0 %v1349
    %3194 = vmatprep.subr.bf16.mxu0 %v1354
    %3195 = vmatpush1.bf16.msra.mxu0 %v1353
    %3196 = vmatprep.subr.bf16.mxu0 %v1358
    %3197 = vmatpush1.bf16.msra.mxu0 %v1357
    %3198 = vmatprep.subr.bf16.mxu0 %v1362
    %3199 = vmatpush1.bf16.msra.mxu0 %v1361
    %3200 = vmatprep.subr.bf16.mxu0 %v1366
    %3201 = vmatpush1.bf16.msra.mxu0 %v1365
    %3202 = vmatprep.subr.bf16.mxu0 %v1370
    %3203 = vmatpush1.bf16.msra.mxu0 %v1369
    %3204 = vmatprep.subr.bf16.mxu0 %v1374
    %3205 = vmatpush1.bf16.msra.mxu0 %v1373
    %3206 = vmatprep.subr.bf16.mxu0 0
    %3207 = vmatpush1.bf16.msra.mxu0 0
    %3208 = vmatprep.subr.bf16.mxu0 0
    %3209 = vmatpush1.bf16.msra.mxu0 0
    %3210 = vmatprep.subr.bf16.mxu0 0
    %3211 = vmatpush1.bf16.msra.mxu0 0
    %3212 = vmatprep.subr.bf16.mxu0 0
    %3213 = vmatpush1.bf16.msra.mxu0 0
    %3214 = vmatprep.subr.bf16.mxu0 0
    %3215 = vmatpush1.bf16.msra.mxu0 0
    %3216 = vmatprep.subr.bf16.mxu0 0
    %3217 = vmatpush1.bf16.msra.mxu0 0
    %3218 = vmatprep.subr.bf16.mxu0 0
    %3219 = vmatpush1.bf16.msra.mxu0 0
    %3220 = vmatprep.subr.bf16.mxu0 0
    %3221 = vmatpush1.bf16.msra.mxu0 0
    %3222 = vmatprep.mubr.bf16.mxu0 0
    %3223 = vmatmul.mubr.bf16.gmra.mrb[0].mxu0 %v3146
    %v3224 = vpop.f32.mrb[0].mxu0
    %v3225 = vadd.f32 0.0, %v3224
    %v3226 = vpop.f32.mrb[0].mxu0
    %v3227 = vadd.f32 0.0, %v3226
    %v3228 = vpop.f32.mrb[0].mxu0
    %v3229 = vadd.f32 0.0, %v3228
    %v3230 = vpop.f32.mrb[0].mxu0
    %v3231 = vadd.f32 0.0, %v3230
    %3232 = vdwg.mxu0
    %v3233 = vadd.f32 %v2965, %v3182
    %v3234 = vadd.f32 %v2967, %v3184
    %v3235 = vadd.f32 %v3008, %v3225
    %v3236 = vadd.f32 %v3010, %v3227
    %v3237 = vadd.f32 %v2969, %v3186
    %v3238 = vadd.f32 %v2971, %v3188
    %v3239 = vadd.f32 %v3012, %v3229
    %v3240 = vadd.f32 %v3014, %v3231
    %v3241 = vmul.f32 %v3233, 0.5
    %v3242 = vmul.f32 %v3237, 0.5
    %v3243 = vtanh.pop %v3241
    %v3244 = vtanh.pop %v3242
    %v3245 = vadd.f32 %v3243, 1.0
    %v3246 = vadd.f32 %v3244, 1.0
    %v3247 = vmul.f32 %v3245, 0.5
    %v3248 = vmul.f32 %v3246, 0.5
    %v3249 = vmul.f32 %v3234, 0.5
    %v3250 = vmul.f32 %v3238, 0.5
    %v3251 = vtanh.pop %v3249
    %v3252 = vtanh.pop %v3250
    %v3253 = vadd.f32 %v3251, 1.0
    %v3254 = vadd.f32 %v3252, 1.0
    %v3255 = vmul.f32 %v3253, 0.5
    %v3256 = vmul.f32 %v3254, 0.5
    %v3257 = vtanh.pop %v3235
    %v3258 = vtanh.pop %v3239
    %v3259 = vmul.f32 %v3236, 0.5
    %v3260 = vmul.f32 %v3240, 0.5
    %v3261 = vtanh.pop %v3259
    %v3262 = vtanh.pop %v3260
    %v3263 = vadd.f32 %v3261, 1.0
    %v3264 = vadd.f32 %v3262, 1.0
    %v3265 = vmul.f32 %v3263, 0.5
    %v3266 = vmul.f32 %v3264, 0.5
    %v3267 = vmul.f32 %v3255, %v2923
    %v3268 = vmul.f32 %v3256, %v2924
    %v3269 = vmul.f32 %v3247, %v3257
    %v3270 = vmul.f32 %v3248, %v3258
    %v3271 = vadd.f32 %v3267, %v3269
    %v3272 = vadd.f32 %v3268, %v3270
    %v3273 = vtanh.pop %v3271
    %v3274 = vtanh.pop %v3272
    %v3275 = vmul.f32 %v3265, %v3273
    %v3276 = vmul.f32 %v3266, %v3274
    %v3277 = vpack.c.bf16 %v3145, %v3144
    %3278 = vmatprep.subr.bf16.mxu0 %v936
    %3279 = vmatpush1.bf16.msra.mxu0 %v935
    %3280 = vmatprep.subr.bf16.mxu0 %v940
    %3281 = vmatpush1.bf16.msra.mxu0 %v939
    %3282 = vmatprep.subr.bf16.mxu0 %v944
    %3283 = vmatpush1.bf16.msra.mxu0 %v943
    %3284 = vmatprep.subr.bf16.mxu0 %v948
    %3285 = vmatpush1.bf16.msra.mxu0 %v947
    %3286 = vmatprep.subr.bf16.mxu0 %v952
    %3287 = vmatpush1.bf16.msra.mxu0 %v951
    %3288 = vmatprep.subr.bf16.mxu0 %v956
    %3289 = vmatpush1.bf16.msra.mxu0 %v955
    %3290 = vmatprep.subr.bf16.mxu0 %v960
    %3291 = vmatpush1.bf16.msra.mxu0 %v959
    %3292 = vmatprep.subr.bf16.mxu0 %v964
    %3293 = vmatpush1.bf16.msra.mxu0 %v963
    %3294 = vmatprep.subr.bf16.mxu0 0
    %3295 = vmatpush1.bf16.msra.mxu0 0
    %3296 = vmatprep.subr.bf16.mxu0 0
    %3297 = vmatpush1.bf16.msra.mxu0 0
    %3298 = vmatprep.subr.bf16.mxu0 0
    %3299 = vmatpush1.bf16.msra.mxu0 0
    %3300 = vmatprep.subr.bf16.mxu0 0
    %3301 = vmatpush1.bf16.msra.mxu0 0
    %3302 = vmatprep.subr.bf16.mxu0 0
    %3303 = vmatpush1.bf16.msra.mxu0 0
    %3304 = vmatprep.subr.bf16.mxu0 0
    %3305 = vmatpush1.bf16.msra.mxu0 0
    %3306 = vmatprep.subr.bf16.mxu0 0
    %3307 = vmatpush1.bf16.msra.mxu0 0
    %3308 = vmatprep.subr.bf16.mxu0 0
    %3309 = vmatpush1.bf16.msra.mxu0 0
    %3310 = vmatprep.mubr.bf16.mxu0 0
    %3311 = vmatmul.mubr.bf16.gmra.mrb[0].mxu0 %v3277
    %v3312 = vpop.f32.mrb[0].mxu0
    %v3313 = vadd.f32 %v822, %v3312
    %v3314 = vpop.f32.mrb[0].mxu0
    %v3315 = vadd.f32 %v826, %v3314
    %v3316 = vpop.f32.mrb[0].mxu0
    %v3317 = vadd.f32 %v822, %v3316
    %v3318 = vpop.f32.mrb[0].mxu0
    %v3319 = vadd.f32 %v826, %v3318
    %3320 = vdwg.mxu0
    %3321 = vmatprep.subr.bf16.mxu0 %v938
    %3322 = vmatpush1.bf16.msra.mxu0 %v937
    %3323 = vmatprep.subr.bf16.mxu0 %v942
    %3324 = vmatpush1.bf16.msra.mxu0 %v941
    %3325 = vmatprep.subr.bf16.mxu0 %v946
    %3326 = vmatpush1.bf16.msra.mxu0 %v945
    %3327 = vmatprep.subr.bf16.mxu0 %v950
    %3328 = vmatpush1.bf16.msra.mxu0 %v949
    %3329 = vmatprep.subr.bf16.mxu0 %v954
    %3330 = vmatpush1.bf16.msra.mxu0 %v953
    %3331 = vmatprep.subr.bf16.mxu0 %v958
    %3332 = vmatpush1.bf16.msra.mxu0 %v957
    %3333 = vmatprep.subr.bf16.mxu0 %v962
    %3334 = vmatpush1.bf16.msra.mxu0 %v961
    %3335 = vmatprep.subr.bf16.mxu0 %v966
    %3336 = vmatpush1.bf16.msra.mxu0 %v965
    %3337 = vmatprep.subr.bf16.mxu0 0
    %3338 = vmatpush1.bf16.msra.mxu0 0
    %3339 = vmatprep.subr.bf16.mxu0 0
    %3340 = vmatpush1.bf16.msra.mxu0 0
    %3341 = vmatprep.subr.bf16.mxu0 0
    %3342 = vmatpush1.bf16.msra.mxu0 0
    %3343 = vmatprep.subr.bf16.mxu0 0
    %3344 = vmatpush1.bf16.msra.mxu0 0
    %3345 = vmatprep.subr.bf16.mxu0 0
    %3346 = vmatpush1.bf16.msra.mxu0 0
    %3347 = vmatprep.subr.bf16.mxu0 0
    %3348 = vmatpush1.bf16.msra.mxu0 0
    %3349 = vmatprep.subr.bf16.mxu0 0
    %3350 = vmatpush1.bf16.msra.mxu0 0
    %3351 = vmatprep.subr.bf16.mxu0 0
    %3352 = vmatpush1.bf16.msra.mxu0 0
    %3353 = vmatprep.mubr.bf16.mxu0 0
    %3354 = vmatmul.mubr.bf16.gmra.mrb[0].mxu0 %v3277
    %v3355 = vpop.f32.mrb[0].mxu0
    %v3356 = vadd.f32 %v830, %v3355
    %v3357 = vpop.f32.mrb[0].mxu0
    %v3358 = vadd.f32 %v834, %v3357
    %v3359 = vpop.f32.mrb[0].mxu0
    %v3360 = vadd.f32 %v830, %v3359
    %v3361 = vpop.f32.mrb[0].mxu0
    %v3362 = vadd.f32 %v834, %v3361
    %3363 = vdwg.mxu0
    %3364 = vmatprep.subr.bf16.mxu0 %v591
    %3365 = vmatpush1.bf16.msra.mxu0 %v590
    %3366 = vmatprep.subr.bf16.mxu0 %v595
    %3367 = vmatpush1.bf16.msra.mxu0 %v594
    %3368 = vmatprep.subr.bf16.mxu0 %v599
    %3369 = vmatpush1.bf16.msra.mxu0 %v598
    %3370 = vmatprep.subr.bf16.mxu0 %v603
    %3371 = vmatpush1.bf16.msra.mxu0 %v602
    %3372 = vmatprep.subr.bf16.mxu0 %v607
    %3373 = vmatpush1.bf16.msra.mxu0 %v606
    %3374 = vmatprep.subr.bf16.mxu0 %v611
    %3375 = vmatpush1.bf16.msra.mxu0 %v610
    %3376 = vmatprep.subr.bf16.mxu0 %v615
    %3377 = vmatpush1.bf16.msra.mxu0 %v614
    %3378 = vmatprep.subr.bf16.mxu0 %v619
    %3379 = vmatpush1.bf16.msra.mxu0 %v618
    %3380 = vmatprep.subr.bf16.mxu0 0
    %3381 = vmatpush1.bf16.msra.mxu0 0
    %3382 = vmatprep.subr.bf16.mxu0 0
    %3383 = vmatpush1.bf16.msra.mxu0 0
    %3384 = vmatprep.subr.bf16.mxu0 0
    %3385 = vmatpush1.bf16.msra.mxu0 0
    %3386 = vmatprep.subr.bf16.mxu0 0
    %3387 = vmatpush1.bf16.msra.mxu0 0
    %3388 = vmatprep.subr.bf16.mxu0 0
    %3389 = vmatpush1.bf16.msra.mxu0 0
    %3390 = vmatprep.subr.bf16.mxu0 0
    %3391 = vmatpush1.bf16.msra.mxu0 0
    %3392 = vmatprep.subr.bf16.mxu0 0
    %3393 = vmatpush1.bf16.msra.mxu0 0
    %3394 = vmatprep.subr.bf16.mxu0 0
    %3395 = vmatpush1.bf16.msra.mxu0 0
    %3396 = vmatprep.mubr.bf16.mxu0 0
    %3397 = vmatmul.mubr.bf16.gmra.mrb[0].mxu0 %v3277
    %v3398 = vpop.f32.mrb[0].mxu0
    %v3399 = vadd.f32 0.0, %v3398
    %v3400 = vpop.f32.mrb[0].mxu0
    %v3401 = vadd.f32 0.0, %v3400
    %v3402 = vpop.f32.mrb[0].mxu0
    %v3403 = vadd.f32 0.0, %v3402
    %v3404 = vpop.f32.mrb[0].mxu0
    %v3405 = vadd.f32 0.0, %v3404
    %3406 = vdwg.mxu0
    %3407 = vmatprep.subr.bf16.mxu0 %v593
    %3408 = vmatpush1.bf16.msra.mxu0 %v592
    %3409 = vmatprep.subr.bf16.mxu0 %v597
    %3410 = vmatpush1.bf16.msra.mxu0 %v596
    %3411 = vmatprep.subr.bf16.mxu0 %v601
    %3412 = vmatpush1.bf16.msra.mxu0 %v600
    %3413 = vmatprep.subr.bf16.mxu0 %v605
    %3414 = vmatpush1.bf16.msra.mxu0 %v604
    %3415 = vmatprep.subr.bf16.mxu0 %v609
    %3416 = vmatpush1.bf16.msra.mxu0 %v608
    %3417 = vmatprep.subr.bf16.mxu0 %v613
    %3418 = vmatpush1.bf16.msra.mxu0 %v612
    %3419 = vmatprep.subr.bf16.mxu0 %v617
    %3420 = vmatpush1.bf16.msra.mxu0 %v616
    %3421 = vmatprep.subr.bf16.mxu0 %v621
    %3422 = vmatpush1.bf16.msra.mxu0 %v620
    %3423 = vmatprep.subr.bf16.mxu0 0
    %3424 = vmatpush1.bf16.msra.mxu0 0
    %3425 = vmatprep.subr.bf16.mxu0 0
    %3426 = vmatpush1.bf16.msra.mxu0 0
    %3427 = vmatprep.subr.bf16.mxu0 0
    %3428 = vmatpush1.bf16.msra.mxu0 0
    %3429 = vmatprep.subr.bf16.mxu0 0
    %3430 = vmatpush1.bf16.msra.mxu0 0
    %3431 = vmatprep.subr.bf16.mxu0 0
    %3432 = vmatpush1.bf16.msra.mxu0 0
    %3433 = vmatprep.subr.bf16.mxu0 0
    %3434 = vmatpush1.bf16.msra.mxu0 0
    %3435 = vmatprep.subr.bf16.mxu0 0
    %3436 = vmatpush1.bf16.msra.mxu0 0
    %3437 = vmatprep.subr.bf16.mxu0 0
    %3438 = vmatpush1.bf16.msra.mxu0 0
    %3439 = vmatprep.mubr.bf16.mxu0 0
    %3440 = vmatmul.mubr.bf16.gmra.mrb[0].mxu0 %v3277
    %v3441 = vpop.f32.mrb[0].mxu0
    %v3442 = vadd.f32 0.0, %v3441
    %v3443 = vpop.f32.mrb[0].mxu0
    %v3444 = vadd.f32 0.0, %v3443
    %v3445 = vpop.f32.mrb[0].mxu0
    %v3446 = vadd.f32 0.0, %v3445
    %v3447 = vpop.f32.mrb[0].mxu0
    %v3448 = vadd.f32 0.0, %v3447
    %3449 = vdwg.mxu0
    %v3450 = vadd.f32 %v341, %v3399
    %v3451 = vadd.f32 %v343, %v3401
    %v3452 = vadd.f32 %v454, %v3442
    %v3453 = vadd.f32 %v456, %v3444
    %v3454 = vadd.f32 %v345, %v3403
    %v3455 = vadd.f32 %v347, %v3405
    %v3456 = vadd.f32 %v458, %v3446
    %v3457 = vadd.f32 %v460, %v3448
    %v3458 = vmul.f32 %v3450, 0.5
    %v3459 = vmul.f32 %v3454, 0.5
    %v3460 = vtanh.pop %v3458
    %v3461 = vtanh.pop %v3459
    %v3462 = vadd.f32 %v3460, 1.0
    %v3463 = vadd.f32 %v3461, 1.0
    %v3464 = vmul.f32 %v3462, 0.5
    %v3465 = vmul.f32 %v3463, 0.5
    %v3466 = vmul.f32 %v3451, 0.5
    %v3467 = vmul.f32 %v3455, 0.5
    %v3468 = vtanh.pop %v3466
    %v3469 = vtanh.pop %v3467
    %v3470 = vadd.f32 %v3468, 1.0
    %v3471 = vadd.f32 %v3469, 1.0
    %v3472 = vmul.f32 %v3470, 0.5
    %v3473 = vmul.f32 %v3471, 0.5
    %v3474 = vtanh.pop %v3452
    %v3475 = vtanh.pop %v3456
    %v3476 = vmul.f32 %v3453, 0.5
    %v3477 = vmul.f32 %v3457, 0.5
    %v3478 = vtanh.pop %v3476
    %v3479 = vtanh.pop %v3477
    %v3480 = vadd.f32 %v3478, 1.0
    %v3481 = vadd.f32 %v3479, 1.0
    %v3482 = vmul.f32 %v3480, 0.5
    %v3483 = vmul.f32 %v3481, 0.5
    %v3484 = vmul.f32 %v3472, %v3140
    %v3485 = vmul.f32 %v3473, %v3141
    %v3486 = vmul.f32 %v3464, %v3474
    %v3487 = vmul.f32 %v3465, %v3475
    %v3488 = vadd.f32 %v3484, %v3486
    %v3489 = vadd.f32 %v3485, %v3487
    %v3490 = vtanh.pop %v3488
    %v3491 = vtanh.pop %v3489
    %v3492 = vmul.f32 %v3482, %v3490
    %v3493 = vmul.f32 %v3483, %v3491
    %v3494 = vpack.c.bf16 %v3276, %v3275
    %3495 = vmatprep.subr.bf16.mxu0 %v1344
    %3496 = vmatpush1.bf16.msra.mxu0 %v1343
    %3497 = vmatprep.subr.bf16.mxu0 %v1348
    %3498 = vmatpush1.bf16.msra.mxu0 %v1347
    %3499 = vmatprep.subr.bf16.mxu0 %v1352
    %3500 = vmatpush1.bf16.msra.mxu0 %v1351
    %3501 = vmatprep.subr.bf16.mxu0 %v1356
    %3502 = vmatpush1.bf16.msra.mxu0 %v1355
    %3503 = vmatprep.subr.bf16.mxu0 %v1360
    %3504 = vmatpush1.bf16.msra.mxu0 %v1359
    %3505 = vmatprep.subr.bf16.mxu0 %v1364
    %3506 = vmatpush1.bf16.msra.mxu0 %v1363
    %3507 = vmatprep.subr.bf16.mxu0 %v1368
    %3508 = vmatpush1.bf16.msra.mxu0 %v1367
    %3509 = vmatprep.subr.bf16.mxu0 %v1372
    %3510 = vmatpush1.bf16.msra.mxu0 %v1371
    %3511 = vmatprep.subr.bf16.mxu0 0
    %3512 = vmatpush1.bf16.msra.mxu0 0
    %3513 = vmatprep.subr.bf16.mxu0 0
    %3514 = vmatpush1.bf16.msra.mxu0 0
    %3515 = vmatprep.subr.bf16.mxu0 0
    %3516 = vmatpush1.bf16.msra.mxu0 0
    %3517 = vmatprep.subr.bf16.mxu0 0
    %3518 = vmatpush1.bf16.msra.mxu0 0
    %3519 = vmatprep.subr.bf16.mxu0 0
    %3520 = vmatpush1.bf16.msra.mxu0 0
    %3521 = vmatprep.subr.bf16.mxu0 0
    %3522 = vmatpush1.bf16.msra.mxu0 0
    %3523 = vmatprep.subr.bf16.mxu0 0
    %3524 = vmatpush1.bf16.msra.mxu0 0
    %3525 = vmatprep.subr.bf16.mxu0 0
    %3526 = vmatpush1.bf16.msra.mxu0 0
    %3527 = vmatprep.mubr.bf16.mxu0 0
    %3528 = vmatmul.mubr.bf16.gmra.mrb[0].mxu0 %v3494
    %v3529 = vpop.f32.mrb[0].mxu0
    %v3530 = vadd.f32 0.0, %v3529
    %v3531 = vpop.f32.mrb[0].mxu0
    %v3532 = vadd.f32 0.0, %v3531
    %v3533 = vpop.f32.mrb[0].mxu0
    %v3534 = vadd.f32 0.0, %v3533
    %v3535 = vpop.f32.mrb[0].mxu0
    %v3536 = vadd.f32 0.0, %v3535
    %3537 = vdwg.mxu0
    %3538 = vmatprep.subr.bf16.mxu0 %v1346
    %3539 = vmatpush1.bf16.msra.mxu0 %v1345
    %3540 = vmatprep.subr.bf16.mxu0 %v1350
    %3541 = vmatpush1.bf16.msra.mxu0 %v1349
    %3542 = vmatprep.subr.bf16.mxu0 %v1354
    %3543 = vmatpush1.bf16.msra.mxu0 %v1353
    %3544 = vmatprep.subr.bf16.mxu0 %v1358
    %3545 = vmatpush1.bf16.msra.mxu0 %v1357
    %3546 = vmatprep.subr.bf16.mxu0 %v1362
    %3547 = vmatpush1.bf16.msra.mxu0 %v1361
    %3548 = vmatprep.subr.bf16.mxu0 %v1366
    %3549 = vmatpush1.bf16.msra.mxu0 %v1365
    %3550 = vmatprep.subr.bf16.mxu0 %v1370
    %3551 = vmatpush1.bf16.msra.mxu0 %v1369
    %3552 = vmatprep.subr.bf16.mxu0 %v1374
    %3553 = vmatpush1.bf16.msra.mxu0 %v1373
    %3554 = vmatprep.subr.bf16.mxu0 0
    %3555 = vmatpush1.bf16.msra.mxu0 0
    %3556 = vmatprep.subr.bf16.mxu0 0
    %3557 = vmatpush1.bf16.msra.mxu0 0
    %3558 = vmatprep.subr.bf16.mxu0 0
    %3559 = vmatpush1.bf16.msra.mxu0 0
    %3560 = vmatprep.subr.bf16.mxu0 0
    %3561 = vmatpush1.bf16.msra.mxu0 0
    %3562 = vmatprep.subr.bf16.mxu0 0
    %3563 = vmatpush1.bf16.msra.mxu0 0
    %3564 = vmatprep.subr.bf16.mxu0 0
    %3565 = vmatpush1.bf16.msra.mxu0 0
    %3566 = vmatprep.subr.bf16.mxu0 0
    %3567 = vmatpush1.bf16.msra.mxu0 0
    %3568 = vmatprep.subr.bf16.mxu0 0
    %3569 = vmatpush1.bf16.msra.mxu0 0
    %3570 = vmatprep.mubr.bf16.mxu0 0
    %3571 = vmatmul.mubr.bf16.gmra.mrb[0].mxu0 %v3494
    %v3572 = vpop.f32.mrb[0].mxu0
    %v3573 = vadd.f32 0.0, %v3572
    %v3574 = vpop.f32.mrb[0].mxu0
    %v3575 = vadd.f32 0.0, %v3574
    %v3576 = vpop.f32.mrb[0].mxu0
    %v3577 = vadd.f32 0.0, %v3576
    %v3578 = vpop.f32.mrb[0].mxu0
    %v3579 = vadd.f32 0.0, %v3578
    %3580 = vdwg.mxu0
    %v3581 = vadd.f32 %v3313, %v3530
    %v3582 = vadd.f32 %v3315, %v3532
    %v3583 = vadd.f32 %v3356, %v3573
    %v3584 = vadd.f32 %v3358, %v3575
    %v3585 = vadd.f32 %v3317, %v3534
    %v3586 = vadd.f32 %v3319, %v3536
    %v3587 = vadd.f32 %v3360, %v3577
    %v3588 = vadd.f32 %v3362, %v3579
    %v3589 = vmul.f32 %v3581, 0.5
    %v3590 = vmul.f32 %v3585, 0.5
    %v3591 = vtanh.pop %v3589
    %v3592 = vtanh.pop %v3590
    %v3593 = vadd.f32 %v3591, 1.0
    %v3594 = vadd.f32 %v3592, 1.0
    %v3595 = vmul.f32 %v3593, 0.5
    %v3596 = vmul.f32 %v3594, 0.5
    %v3597 = vmul.f32 %v3582, 0.5
    %v3598 = vmul.f32 %v3586, 0.5
    %v3599 = vtanh.pop %v3597
    %v3600 = vtanh.pop %v3598
    %v3601 = vadd.f32 %v3599, 1.0
    %v3602 = vadd.f32 %v3600, 1.0
    %v3603 = vmul.f32 %v3601, 0.5
    %v3604 = vmul.f32 %v3602, 0.5
    %v3605 = vtanh.pop %v3583
    %v3606 = vtanh.pop %v3587
    %v3607 = vmul.f32 %v3584, 0.5
    %v3608 = vmul.f32 %v3588, 0.5
    %v3609 = vtanh.pop %v3607
    %v3610 = vtanh.pop %v3608
    %v3611 = vadd.f32 %v3609, 1.0
    %v3612 = vadd.f32 %v3610, 1.0
    %v3613 = vmul.f32 %v3611, 0.5
    %v3614 = vmul.f32 %v3612, 0.5
    %v3615 = vmul.f32 %v3603, %v3271
    %v3616 = vmul.f32 %v3604, %v3272
    %v3617 = vmul.f32 %v3595, %v3605
    %v3618 = vmul.f32 %v3596, %v3606
    %v3619 = vadd.f32 %v3615, %v3617
    %v3620 = vadd.f32 %v3616, %v3618
    %v3621 = vtanh.pop %v3619
    %v3622 = vtanh.pop %v3620
    %v3623 = vmul.f32 %v3613, %v3621
    %v3624 = vmul.f32 %v3614, %v3622
    %v3625 = vpack.c.bf16 %v3493, %v3492
    %3626 = vmatprep.subr.bf16.mxu0 %v936
    %3627 = vmatpush1.bf16.msra.mxu0 %v935
    %3628 = vmatprep.subr.bf16.mxu0 %v940
    %3629 = vmatpush1.bf16.msra.mxu0 %v939
    %3630 = vmatprep.subr.bf16.mxu0 %v944
    %3631 = vmatpush1.bf16.msra.mxu0 %v943
    %3632 = vmatprep.subr.bf16.mxu0 %v948
    %3633 = vmatpush1.bf16.msra.mxu0 %v947
    %3634 = vmatprep.subr.bf16.mxu0 %v952
    %3635 = vmatpush1.bf16.msra.mxu0 %v951
    %3636 = vmatprep.subr.bf16.mxu0 %v956
    %3637 = vmatpush1.bf16.msra.mxu0 %v955
    %3638 = vmatprep.subr.bf16.mxu0 %v960
    %3639 = vmatpush1.bf16.msra.mxu0 %v959
    %3640 = vmatprep.subr.bf16.mxu0 %v964
    %3641 = vmatpush1.bf16.msra.mxu0 %v963
    %3642 = vmatprep.subr.bf16.mxu0 0
    %3643 = vmatpush1.bf16.msra.mxu0 0
    %3644 = vmatprep.subr.bf16.mxu0 0
    %3645 = vmatpush1.bf16.msra.mxu0 0
    %3646 = vmatprep.subr.bf16.mxu0 0
    %3647 = vmatpush1.bf16.msra.mxu0 0
    %3648 = vmatprep.subr.bf16.mxu0 0
    %3649 = vmatpush1.bf16.msra.mxu0 0
    %3650 = vmatprep.subr.bf16.mxu0 0
    %3651 = vmatpush1.bf16.msra.mxu0 0
    %3652 = vmatprep.subr.bf16.mxu0 0
    %3653 = vmatpush1.bf16.msra.mxu0 0
    %3654 = vmatprep.subr.bf16.mxu0 0
    %3655 = vmatpush1.bf16.msra.mxu0 0
    %3656 = vmatprep.subr.bf16.mxu0 0
    %3657 = vmatpush1.bf16.msra.mxu0 0
    %3658 = vmatprep.mubr.bf16.mxu0 0
    %3659 = vmatmul.mubr.bf16.gmra.mrb[0].mxu0 %v3625
    %v3660 = vpop.f32.mrb[0].mxu0
    %v3661 = vadd.f32 %v822, %v3660
    %v3662 = vpop.f32.mrb[0].mxu0
    %v3663 = vadd.f32 %v826, %v3662
    %v3664 = vpop.f32.mrb[0].mxu0
    %v3665 = vadd.f32 %v822, %v3664
    %v3666 = vpop.f32.mrb[0].mxu0
    %v3667 = vadd.f32 %v826, %v3666
    %3668 = vdwg.mxu0
    %3669 = vmatprep.subr.bf16.mxu0 %v938
    %3670 = vmatpush1.bf16.msra.mxu0 %v937
    %3671 = vmatprep.subr.bf16.mxu0 %v942
    %3672 = vmatpush1.bf16.msra.mxu0 %v941
    %3673 = vmatprep.subr.bf16.mxu0 %v946
    %3674 = vmatpush1.bf16.msra.mxu0 %v945
    %3675 = vmatprep.subr.bf16.mxu0 %v950
    %3676 = vmatpush1.bf16.msra.mxu0 %v949
    %3677 = vmatprep.subr.bf16.mxu0 %v954
    %3678 = vmatpush1.bf16.msra.mxu0 %v953
    %3679 = vmatprep.subr.bf16.mxu0 %v958
    %3680 = vmatpush1.bf16.msra.mxu0 %v957
    %3681 = vmatprep.subr.bf16.mxu0 %v962
    %3682 = vmatpush1.bf16.msra.mxu0 %v961
    %3683 = vmatprep.subr.bf16.mxu0 %v966
    %3684 = vmatpush1.bf16.msra.mxu0 %v965
    %3685 = vmatprep.subr.bf16.mxu0 0
    %3686 = vmatpush1.bf16.msra.mxu0 0
    %3687 = vmatprep.subr.bf16.mxu0 0
    %3688 = vmatpush1.bf16.msra.mxu0 0
    %3689 = vmatprep.subr.bf16.mxu0 0
    %3690 = vmatpush1.bf16.msra.mxu0 0
    %3691 = vmatprep.subr.bf16.mxu0 0
    %3692 = vmatpush1.bf16.msra.mxu0 0
    %3693 = vmatprep.subr.bf16.mxu0 0
    %3694 = vmatpush1.bf16.msra.mxu0 0
    %3695 = vmatprep.subr.bf16.mxu0 0
    %3696 = vmatpush1.bf16.msra.mxu0 0
    %3697 = vmatprep.subr.bf16.mxu0 0
    %3698 = vmatpush1.bf16.msra.mxu0 0
    %3699 = vmatprep.subr.bf16.mxu0 0
    %3700 = vmatpush1.bf16.msra.mxu0 0
    %3701 = vmatprep.mubr.bf16.mxu0 0
    %3702 = vmatmul.mubr.bf16.gmra.mrb[0].mxu0 %v3625
    %v3703 = vpop.f32.mrb[0].mxu0
    %v3704 = vadd.f32 %v830, %v3703
    %v3705 = vpop.f32.mrb[0].mxu0
    %v3706 = vadd.f32 %v834, %v3705
    %v3707 = vpop.f32.mrb[0].mxu0
    %v3708 = vadd.f32 %v830, %v3707
    %v3709 = vpop.f32.mrb[0].mxu0
    %v3710 = vadd.f32 %v834, %v3709
    %3711 = vdwg.mxu0
    %v3712 = vpack.c.bf16 %v3624, %v3623
    %3713 = vmatprep.subr.bf16.mxu0 %v1344
    %3714 = vmatpush1.bf16.msra.mxu0 %v1343
    %3715 = vmatprep.subr.bf16.mxu0 %v1348
    %3716 = vmatpush1.bf16.msra.mxu0 %v1347
    %3717 = vmatprep.subr.bf16.mxu0 %v1352
    %3718 = vmatpush1.bf16.msra.mxu0 %v1351
    %3719 = vmatprep.subr.bf16.mxu0 %v1356
    %3720 = vmatpush1.bf16.msra.mxu0 %v1355
    %3721 = vmatprep.subr.bf16.mxu0 %v1360
    %3722 = vmatpush1.bf16.msra.mxu0 %v1359
    %3723 = vmatprep.subr.bf16.mxu0 %v1364
    %3724 = vmatpush1.bf16.msra.mxu0 %v1363
    %3725 = vmatprep.subr.bf16.mxu0 %v1368
    %3726 = vmatpush1.bf16.msra.mxu0 %v1367
    %3727 = vmatprep.subr.bf16.mxu0 %v1372
    %3728 = vmatpush1.bf16.msra.mxu0 %v1371
    %3729 = vmatprep.subr.bf16.mxu0 0
    %3730 = vmatpush1.bf16.msra.mxu0 0
    %3731 = vmatprep.subr.bf16.mxu0 0
    %3732 = vmatpush1.bf16.msra.mxu0 0
    %3733 = vmatprep.subr.bf16.mxu0 0
    %3734 = vmatpush1.bf16.msra.mxu0 0
    %3735 = vmatprep.subr.bf16.mxu0 0
    %3736 = vmatpush1.bf16.msra.mxu0 0
    %3737 = vmatprep.subr.bf16.mxu0 0
    %3738 = vmatpush1.bf16.msra.mxu0 0
    %3739 = vmatprep.subr.bf16.mxu0 0
    %3740 = vmatpush1.bf16.msra.mxu0 0
    %3741 = vmatprep.subr.bf16.mxu0 0
    %3742 = vmatpush1.bf16.msra.mxu0 0
    %3743 = vmatprep.subr.bf16.mxu0 0
    %3744 = vmatpush1.bf16.msra.mxu0 0
    %3745 = vmatprep.mubr.bf16.mxu0 0
    %3746 = vmatmul.mubr.bf16.gmra.mrb[0].mxu0 %v3712
    %v3747 = vpop.f32.mrb[0].mxu0
    %v3748 = vadd.f32 0.0, %v3747
    %v3749 = vpop.f32.mrb[0].mxu0
    %v3750 = vadd.f32 0.0, %v3749
    %v3751 = vpop.f32.mrb[0].mxu0
    %v3752 = vadd.f32 0.0, %v3751
    %v3753 = vpop.f32.mrb[0].mxu0
    %v3754 = vadd.f32 0.0, %v3753
    %3755 = vdwg.mxu0
    %3756 = vmatprep.subr.bf16.mxu0 %v1346
    %3757 = vmatpush1.bf16.msra.mxu0 %v1345
    %3758 = vmatprep.subr.bf16.mxu0 %v1350
    %3759 = vmatpush1.bf16.msra.mxu0 %v1349
    %3760 = vmatprep.subr.bf16.mxu0 %v1354
    %3761 = vmatpush1.bf16.msra.mxu0 %v1353
    %3762 = vmatprep.subr.bf16.mxu0 %v1358
    %3763 = vmatpush1.bf16.msra.mxu0 %v1357
    %3764 = vmatprep.subr.bf16.mxu0 %v1362
    %3765 = vmatpush1.bf16.msra.mxu0 %v1361
    %3766 = vmatprep.subr.bf16.mxu0 %v1366
    %3767 = vmatpush1.bf16.msra.mxu0 %v1365
    %3768 = vmatprep.subr.bf16.mxu0 %v1370
    %3769 = vmatpush1.bf16.msra.mxu0 %v1369
    %3770 = vmatprep.subr.bf16.mxu0 %v1374
    %3771 = vmatpush1.bf16.msra.mxu0 %v1373
    %3772 = vmatprep.subr.bf16.mxu0 0
    %3773 = vmatpush1.bf16.msra.mxu0 0
    %3774 = vmatprep.subr.bf16.mxu0 0
    %3775 = vmatpush1.bf16.msra.mxu0 0
    %3776 = vmatprep.subr.bf16.mxu0 0
    %3777 = vmatpush1.bf16.msra.mxu0 0
    %3778 = vmatprep.subr.bf16.mxu0 0
    %3779 = vmatpush1.bf16.msra.mxu0 0
    %3780 = vmatprep.subr.bf16.mxu0 0
    %3781 = vmatpush1.bf16.msra.mxu0 0
    %3782 = vmatprep.subr.bf16.mxu0 0
    %3783 = vmatpush1.bf16.msra.mxu0 0
    %3784 = vmatprep.subr.bf16.mxu0 0
    %3785 = vmatpush1.bf16.msra.mxu0 0
    %3786 = vmatprep.subr.bf16.mxu0 0
    %3787 = vmatpush1.bf16.msra.mxu0 0
    %3788 = vmatprep.mubr.bf16.mxu0 0
    %3789 = vmatmul.mubr.bf16.gmra.mrb[0].mxu0 %v3712
    %v3790 = vpop.f32.mrb[0].mxu0
    %v3791 = vadd.f32 0.0, %v3790
    %v3792 = vpop.f32.mrb[0].mxu0
    %v3793 = vadd.f32 0.0, %v3792
    %v3794 = vpop.f32.mrb[0].mxu0
    %v3795 = vadd.f32 0.0, %v3794
    %v3796 = vpop.f32.mrb[0].mxu0
    %v3797 = vadd.f32 0.0, %v3796
    %3798 = vdwg.mxu0
    %v3799 = vadd.f32 %v3661, %v3748
    %v3800 = vadd.f32 %v3663, %v3750
    %v3801 = vadd.f32 %v3704, %v3791
    %v3802 = vadd.f32 %v3706, %v3793
    %v3803 = vadd.f32 %v3665, %v3752
    %v3804 = vadd.f32 %v3667, %v3754
    %v3805 = vadd.f32 %v3708, %v3795
    %v3806 = vadd.f32 %v3710, %v3797
    %v3807 = vmul.f32 %v3799, 0.5
    %v3808 = vmul.f32 %v3803, 0.5
    %v3809 = vtanh.pop %v3807
    %v3810 = vtanh.pop %v3808
    %v3811 = vadd.f32 %v3809, 1.0
    %v3812 = vadd.f32 %v3810, 1.0
    %v3813 = vmul.f32 %v3811, 0.5
    %v3814 = vmul.f32 %v3812, 0.5
    %v3815 = vmul.f32 %v3800, 0.5
    %v3816 = vmul.f32 %v3804, 0.5
    %v3817 = vtanh.pop %v3815
    %v3818 = vtanh.pop %v3816
    %v3819 = vadd.f32 %v3817, 1.0
    %v3820 = vadd.f32 %v3818, 1.0
    %v3821 = vmul.f32 %v3819, 0.5
    %v3822 = vmul.f32 %v3820, 0.5
    %v3823 = vtanh.pop %v3801
    %v3824 = vtanh.pop %v3805
    %v3825 = vmul.f32 %v3802, 0.5
    %v3826 = vmul.f32 %v3806, 0.5
    %v3827 = vtanh.pop %v3825
    %v3828 = vtanh.pop %v3826
    %v3829 = vadd.f32 %v3827, 1.0
    %v3830 = vadd.f32 %v3828, 1.0
    %v3831 = vmul.f32 %v3829, 0.5
    %v3832 = vmul.f32 %v3830, 0.5
    %v3833 = vmul.f32 %v3821, %v3619
    %v3834 = vmul.f32 %v3822, %v3620
    %v3835 = vmul.f32 %v3813, %v3823
    %v3836 = vmul.f32 %v3814, %v3824
    %v3837 = vadd.f32 %v3833, %v3835
    %v3838 = vadd.f32 %v3834, %v3836
    %v3839 = vtanh.pop %v3837
    %v3840 = vtanh.pop %v3838
    %v3841 = vmul.f32 %v3831, %v3839
    %v3842 = vmul.f32 %v3832, %v3840
    %3843 = vadd.xlane.f32.xlu0 %v3841
    %v3844 = vpop.xlane.xlu0 %3843
    %3845 = vadd.xlane.f32.xlu0 %v3842
    %v3846 = vpop.xlane.xlu0 %3845
    %v3847 = vrcp.pop 128.0
    %v3848 = vmul.f32 %v3844, %v3847
    %v3849 = vmul.f32 %v3846, %v3847
    %v3850 = vsub.f32 %v3841, %v3848
    %v3851 = vsub.f32 %v3842, %v3849
    %v3852 = vmul.f32 %v3850, %v3850
    %v3853 = vmul.f32 %v3851, %v3851
    %3854 = vadd.xlane.f32.xlu0 %v3852
    %v3855 = vpop.xlane.xlu0 %3854
    %3856 = vadd.xlane.f32.xlu0 %v3853
    %v3857 = vpop.xlane.xlu0 %3856
    %v3858 = vmul.f32 %v3855, %v3847
    %v3859 = vmul.f32 %v3857, %v3847
    %v3860 = vadd.f32 %v3858, 1e-05
    %v3861 = vadd.f32 %v3859, 1e-05
    %v3862 = vrsqrt.pop %v3860
    %v3863 = vrsqrt.pop %v3861
    %v3864 = vmul.f32 %v3850, %v3862
    %v3865 = vmul.f32 %v3851, %v3863
    %v3866 = vld [vmem:[%s7] sm:$0x1]
    %v3868 = vlaneseq
    %v3869 = vshrl.u32 %v3868, 7
    %v3870 = vsub.s32 0, %v3869
    %v3871 = vrot.slane %v3866, %v3870
    %v3873 = vmul.f32 %v3864, %v3871
    %v3874 = vmul.f32 %v3865, %v3871
    %v3875 = vld [vmem:[%s8] sm:$0x1]
    %v3877 = vlaneseq
    %v3878 = vshrl.u32 %v3877, 7
    %v3879 = vsub.s32 0, %v3878
    %v3880 = vrot.slane %v3875, %v3879
    %v3882 = vadd.f32 %v3873, %v3880
    %v3883 = vadd.f32 %v3874, %v3880
    %v3884 = vld [vmem:[#allocation11] sm:$0xff]
    %v3885 = vld [vmem:[#allocation11 + $0x8] sm:$0xff]
    %v3886 = vld [vmem:[#allocation11 + $0x10] sm:$0xff]
    %v3887 = vld [vmem:[#allocation11 + $0x18] sm:$0xff]
    %v3888 = vld [vmem:[#allocation11 + $0x20] sm:$0xff]
    %v3889 = vld [vmem:[#allocation11 + $0x28] sm:$0xff]
    %v3890 = vld [vmem:[#allocation11 + $0x30] sm:$0xff]
    %v3891 = vld [vmem:[#allocation11 + $0x38] sm:$0xff]
    %v3892 = vld [vmem:[#allocation11 + $0x40] sm:$0xff]
    %v3893 = vld [vmem:[#allocation11 + $0x48] sm:$0xff]
    %v3894 = vld [vmem:[#allocation11 + $0x50] sm:$0xff]
    %v3895 = vld [vmem:[#allocation11 + $0x58] sm:$0xff]
    %v3896 = vld [vmem:[#allocation11 + $0x60] sm:$0xff]
    %v3897 = vld [vmem:[#allocation11 + $0x68] sm:$0xff]
    %v3898 = vld [vmem:[#allocation11 + $0x70] sm:$0xff]
    %v3899 = vld [vmem:[#allocation11 + $0x78] sm:$0xff]
    %v3900 = vld [vmem:[%s10] sm:$0x1]
    %v3902 = vlaneseq
    %v3903 = vshrl.u32 %v3902, 7
    %v3904 = vsub.s32 0, %v3903
    %v3905 = vrot.slane %v3900, %v3904
    %3907 = vmatprep.subr.mxu0 0.0
    %3908 = vmatpush1.msra.mxu0 %v3884
    %3909 = vmatprep.subr.mxu0 0.0
    %3910 = vmatpush1.msra.mxu0 %v3885
    %3911 = vmatprep.subr.mxu0 0.0
    %3912 = vmatpush1.msra.mxu0 %v3886
    %3913 = vmatprep.subr.mxu0 0.0
    %3914 = vmatpush1.msra.mxu0 %v3887
    %3915 = vmatprep.subr.mxu0 0.0
    %3916 = vmatpush1.msra.mxu0 %v3888
    %3917 = vmatprep.subr.mxu0 0.0
    %3918 = vmatpush1.msra.mxu0 %v3889
    %3919 = vmatprep.subr.mxu0 0.0
    %3920 = vmatpush1.msra.mxu0 %v3890
    %3921 = vmatprep.subr.mxu0 0.0
    %3922 = vmatpush1.msra.mxu0 %v3891
    %3923 = vmatprep.subr.mxu0 0.0
    %3924 = vmatpush1.msra.mxu0 %v3892
    %3925 = vmatprep.subr.mxu0 0.0
    %3926 = vmatpush1.msra.mxu0 %v3893
    %3927 = vmatprep.subr.mxu0 0.0
    %3928 = vmatpush1.msra.mxu0 %v3894
    %3929 = vmatprep.subr.mxu0 0.0
    %3930 = vmatpush1.msra.mxu0 %v3895
    %3931 = vmatprep.subr.mxu0 0.0
    %3932 = vmatpush1.msra.mxu0 %v3896
    %3933 = vmatprep.subr.mxu0 0.0
    %3934 = vmatpush1.msra.mxu0 %v3897
    %3935 = vmatprep.subr.mxu0 0.0
    %3936 = vmatpush1.msra.mxu0 %v3898
    %3937 = vmatprep.subr.mxu0 0.0
    %3938 = vmatpush1.msra.mxu0 %v3899
    %3939 = vmatprep.subr.mxu0 0.0
    %3940 = vmatpush1.msra.mxu0 0.0
    %3941 = vmatprep.subr.mxu0 0.0
    %3942 = vmatpush1.msra.mxu0 0.0
    %3943 = vmatprep.subr.mxu0 0.0
    %3944 = vmatpush1.msra.mxu0 0.0
    %3945 = vmatprep.subr.mxu0 0.0
    %3946 = vmatpush1.msra.mxu0 0.0
    %3947 = vmatprep.subr.mxu0 0.0
    %3948 = vmatpush1.msra.mxu0 0.0
    %3949 = vmatprep.subr.mxu0 0.0
    %3950 = vmatpush1.msra.mxu0 0.0
    %3951 = vmatprep.subr.mxu0 0.0
    %3952 = vmatpush1.msra.mxu0 0.0
    %3953 = vmatprep.subr.mxu0 0.0
    %3954 = vmatpush1.msra.mxu0 0.0
    %3955 = vmatprep.subr.mxu0 0.0
    %3956 = vmatpush1.msra.mxu0 0.0
    %3957 = vmatprep.subr.mxu0 0.0
    %3958 = vmatpush1.msra.mxu0 0.0
    %3959 = vmatprep.subr.mxu0 0.0
    %3960 = vmatpush1.msra.mxu0 0.0
    %3961 = vmatprep.subr.mxu0 0.0
    %3962 = vmatpush1.msra.mxu0 0.0
    %3963 = vmatprep.subr.mxu0 0.0
    %3964 = vmatpush1.msra.mxu0 0.0
    %3965 = vmatprep.subr.mxu0 0.0
    %3966 = vmatpush1.msra.mxu0 0.0
    %3967 = vmatprep.subr.mxu0 0.0
    %3968 = vmatpush1.msra.mxu0 0.0
    %3969 = vmatprep.subr.mxu0 0.0
    %3970 = vmatpush1.msra.mxu0 0.0
    %3971 = vmatprep.mubr.f32.mxu0 0.0
    %3972 = vmatmul.mubr.f32.gmra.mrb[0].mxu0 %v3882
    %v3973 = vpop.f32.mrb[0].mxu0
    %v3974 = vadd.f32 %v3905, %v3973
    %v3975 = vpop.f32.mrb[0].mxu0
    %3976 = vmatprep.mubr.f32.mxu0 0.0
    %3977 = vmatmul.mubr.f32.gmra.mrb[0].mxu0 %v3883
    %v3978 = vpop.f32.mrb[0].mxu0
    %v3979 = vadd.f32 %v3905, %v3978
    %v3980 = vpop.f32.mrb[0].mxu0
    %3981 = vdwg.mxu0
    %v3982 = vmax.f32 %v3974, 0.0
    %v3983 = vmax.f32 %v3979, 0.0
    %v3984 = vld [vmem:[#allocation13] sm:$0xff]
    %v3985 = vld [vmem:[#allocation13 + $0x8] sm:$0xff]
    %v3986 = vld [vmem:[#allocation13 + $0x10] sm:$0xff]
    %v3987 = vld [vmem:[#allocation13 + $0x18] sm:$0xff]
    %v3988 = vld [vmem:[#allocation13 + $0x20] sm:$0xff]
    %v3989 = vld [vmem:[#allocation13 + $0x28] sm:$0xff]
    %v3990 = vld [vmem:[#allocation13 + $0x30] sm:$0xff]
    %v3991 = vld [vmem:[#allocation13 + $0x38] sm:$0xff]
    %v3992 = vld [vmem:[#allocation13 + $0x40] sm:$0xff]
    %v3993 = vld [vmem:[#allocation13 + $0x48] sm:$0xff]
    %v3994 = vld [vmem:[#allocation13 + $0x50] sm:$0xff]
    %v3995 = vld [vmem:[#allocation13 + $0x58] sm:$0xff]
    %v3996 = vld [vmem:[#allocation13 + $0x60] sm:$0xff]
    %v3997 = vld [vmem:[#allocation13 + $0x68] sm:$0xff]
    %v3998 = vld [vmem:[#allocation13 + $0x70] sm:$0xff]
    %v3999 = vld [vmem:[#allocation13 + $0x78] sm:$0xff]
    %v4000 = vld [vmem:[%s12] sm:$0x1]
    %v4002 = vlaneseq
    %v4003 = vshrl.u32 %v4002, 7
    %v4004 = vsub.s32 0, %v4003
    %v4005 = vrot.slane %v4000, %v4004
    %4007 = vmatprep.subr.mxu0 0.0
    %4008 = vmatpush1.msra.mxu0 %v3984
    %4009 = vmatprep.subr.mxu0 0.0
    %4010 = vmatpush1.msra.mxu0 %v3985
    %4011 = vmatprep.subr.mxu0 0.0
    %4012 = vmatpush1.msra.mxu0 %v3986
    %4013 = vmatprep.subr.mxu0 0.0
    %4014 = vmatpush1.msra.mxu0 %v3987
    %4015 = vmatprep.subr.mxu0 0.0
    %4016 = vmatpush1.msra.mxu0 %v3988
    %4017 = vmatprep.subr.mxu0 0.0
    %4018 = vmatpush1.msra.mxu0 %v3989
    %4019 = vmatprep.subr.mxu0 0.0
    %4020 = vmatpush1.msra.mxu0 %v3990
    %4021 = vmatprep.subr.mxu0 0.0
    %4022 = vmatpush1.msra.mxu0 %v3991
    %4023 = vmatprep.subr.mxu0 0.0
    %4024 = vmatpush1.msra.mxu0 %v3992
    %4025 = vmatprep.subr.mxu0 0.0
    %4026 = vmatpush1.msra.mxu0 %v3993
    %4027 = vmatprep.subr.mxu0 0.0
    %4028 = vmatpush1.msra.mxu0 %v3994
    %4029 = vmatprep.subr.mxu0 0.0
    %4030 = vmatpush1.msra.mxu0 %v3995
    %4031 = vmatprep.subr.mxu0 0.0
    %4032 = vmatpush1.msra.mxu0 %v3996
    %4033 = vmatprep.subr.mxu0 0.0
    %4034 = vmatpush1.msra.mxu0 %v3997
    %4035 = vmatprep.subr.mxu0 0.0
    %4036 = vmatpush1.msra.mxu0 %v3998
    %4037 = vmatprep.subr.mxu0 0.0
    %4038 = vmatpush1.msra.mxu0 %v3999
    %4039 = vmatprep.subr.mxu0 0.0
    %4040 = vmatpush1.msra.mxu0 0.0
    %4041 = vmatprep.subr.mxu0 0.0
    %4042 = vmatpush1.msra.mxu0 0.0
    %4043 = vmatprep.subr.mxu0 0.0
    %4044 = vmatpush1.msra.mxu0 0.0
    %4045 = vmatprep.subr.mxu0 0.0
    %4046 = vmatpush1.msra.mxu0 0.0
    %4047 = vmatprep.subr.mxu0 0.0
    %4048 = vmatpush1.msra.mxu0 0.0
    %4049 = vmatprep.subr.mxu0 0.0
    %4050 = vmatpush1.msra.mxu0 0.0
    %4051 = vmatprep.subr.mxu0 0.0
    %4052 = vmatpush1.msra.mxu0 0.0
    %4053 = vmatprep.subr.mxu0 0.0
    %4054 = vmatpush1.msra.mxu0 0.0
    %4055 = vmatprep.subr.mxu0 0.0
    %4056 = vmatpush1.msra.mxu0 0.0
    %4057 = vmatprep.subr.mxu0 0.0
    %4058 = vmatpush1.msra.mxu0 0.0
    %4059 = vmatprep.subr.mxu0 0.0
    %4060 = vmatpush1.msra.mxu0 0.0
    %4061 = vmatprep.subr.mxu0 0.0
    %4062 = vmatpush1.msra.mxu0 0.0
    %4063 = vmatprep.subr.mxu0 0.0
    %4064 = vmatpush1.msra.mxu0 0.0
    %4065 = vmatprep.subr.mxu0 0.0
    %4066 = vmatpush1.msra.mxu0 0.0
    %4067 = vmatprep.subr.mxu0 0.0
    %4068 = vmatpush1.msra.mxu0 0.0
    %4069 = vmatprep.subr.mxu0 0.0
    %4070 = vmatpush1.msra.mxu0 0.0
    %4071 = vmatprep.mubr.f32.mxu0 0.0
    %4072 = vmatmul.mubr.f32.gmra.mrb[0].mxu0 %v3982
    %v4073 = vpop.f32.mrb[0].mxu0
    %v4074 = vadd.f32 %v4005, %v4073
    %v4075 = vpop.f32.mrb[0].mxu0
    %4076 = vmatprep.mubr.f32.mxu0 0.0
    %4077 = vmatmul.mubr.f32.gmra.mrb[0].mxu0 %v3983
    %v4078 = vpop.f32.mrb[0].mxu0
    %v4079 = vadd.f32 %v4005, %v4078
    %v4080 = vpop.f32.mrb[0].mxu0
    %4081 = vdwg.mxu0
    %4082 = vst [vmem:[#allocation14] sm:$0xff] %v4074
    %4083 = vst [vmem:[#allocation14 + $0x8] sm:$0xff] %v4079
    // Predicated region
    $region82: #{tpu_custom_call.1} parent=1 // pred_check
      _
    $region83: #{tpu_custom_call.1} parent=1 // pred_check_branch
      %4085 = sbr.rel (0) target = $region85
    $region84: #{tpu_custom_call.1} parent=1 // pred_region
      %s4087 = ssub.s32 256, 256
      %4088 = vsyncadd [#allocation4], %s4087
      %s4089 = sshll.u32 [#allocation14], 4
      %s4090 = int_to_ptr.vmem [resolvable:$true] %s4089
      %4095 = dma.vmem_to_hbm [thread:$0]  %s4090, 256, %s13, [#allocation4], 128, 128, 8
    $region85: #{tpu_custom_call.1} parent=1 // pred_fallthru
      _
    // Predicated region
    $region86: #{tpu_custom_call.1} parent=1 // pred_check
      _
    $region87: #{tpu_custom_call.1} parent=1 // pred_check_branch
      %4097 = sbr.rel (0) target = $region89
    $region88: #{tpu_custom_call.1} parent=1 // pred_region
      %4098 = dma.done [#allocation4], 256
    $region89: #{tpu_custom_call.1} parent=1 // pred_fallthru
      _
    %4099 = vsyncpa [#allocation3], 1
    %4100 = vsyncpa [#allocation6], 1
    %4101 = vsyncpa [#allocation9], 1
    %4102 = vsyncpa [#allocation12], 1
    %4103 = vsyncpa [#allocation4], 1

</llo_original>
